<compile_context>
chip_gen: v6e
topology: v6e:2x2x1
jax: 0.10.0
libtpu: 0.0.40
codegen_flags: <defaults>
</compile_context>

<pallas_src>
import functools

import jax
import jax.numpy as jnp
from jax.experimental import pallas as pl
from jax.experimental.pallas import tpu as pltpu

BN_EPS = 1e-5
LANE = 128                        # channel (lane) padding granularity
_SUBLANE = 16                     # sublane alignment (bf16 packing)
_ROW_TILE = 512                   # pass-1 row tile (multiple of _SUBLANE)
_PASS2_CAP = 1024                 # pass-2 row tile cap
_COMPUTE_DTYPE = jnp.bfloat16     # MXU operand / intermediate storage dtype


def _round_up(x, m):
    return (x + m - 1) // m * m


def _default_vmem_limit():
    """~half of physical VMEM (64 MiB on v5e/v6e, 32 MiB on v7x), robust fallback."""
    try:
        info = pltpu.get_tpu_info()
        for name in ("vmem_capacity_bytes", "vmem_size_bytes", "vmem_bytes"):
            cap = getattr(info, name, None)
            if cap:
                return int(min(cap // 2, 100 * 1024 * 1024))
    except Exception:
        pass
    return 48 * 1024 * 1024


_VMEM_LIMIT = _default_vmem_limit()


# ============================== Pallas kernels ==============================

def _conv_stats_kernel(x_ref, w_ref, mask_ref, y_ref, sum_ref, sq_ref, *, taps, tile_rows):
    """Pass 1: tap-folded direct conv + per-tile per-channel sum / sum-of-squares.

    x_ref    : (n_phases, win, Cin_p) bf16  overlapping row window of this tile
    w_ref    : (n_taps*Cin_p, Cp)     bf16  tap-folded filter matrix (lane dense)
    mask_ref : (tile_rows, 1)         f32   1.0 for valid rows of the wide layout
    y_ref    : (1, tile_rows, Cp)     bf16  raw conv output tile
    sum_ref  : (8, Cp)                f32   per-tile partial sum   (host-reduced)
    sq_ref   : (8, Cp)                f32   per-tile partial sum^2 (host-reduced)
    """
    # Static, lane-aligned (Cin_p = multiple of 128) per-tap slices -> one MXU matmul.
    pieces = [x_ref[ph, pl.ds(start, tile_rows), :] for ph, start in taps]
    x_cat = pieces[0] if len(pieces) == 1 else jnp.concatenate(pieces, axis=-1)
    acc = jnp.dot(x_cat, w_ref[...], preferred_element_type=jnp.float32)
    y_ref[...] = acc[None].astype(y_ref.dtype)

    m = mask_ref[...]
    am = acc * m                                   # reuse masked product (v5e VALU saving)
    sum_ref[...] = jnp.broadcast_to(jnp.sum(am, axis=0, keepdims=True), sum_ref.shape)
    sq_ref[...] = jnp.broadcast_to(jnp.sum(am * acc, axis=0, keepdims=True), sq_ref.shape)


def _bn_act_kernel(*refs, relu, has_skip):
    """Pass 2: y*scale + shift (+ skip*skip_scale + skip_shift) (+ ReLU), f32 math."""
    if has_skip:
        y_ref, sc_ref, sh_ref, k_ref, ksc_ref, ksh_ref, o_ref = refs
    else:
        y_ref, sc_ref, sh_ref, o_ref = refs
    v = y_ref[...].astype(jnp.float32) * sc_ref[...] + sh_ref[...]
    if has_skip:
        v = v + (k_ref[...].astype(jnp.float32) * ksc_ref[...] + ksh_ref[...])
    if relu:
        v = jnp.maximum(v, 0.0)
    o_ref[...] = v.astype(o_ref.dtype)


# ============================== pallas_call wrappers ==============================

def _conv_stats_pallas(phases, w, mask, taps, geom):
    n_img, tile_rows, n_rt = geom["N"], geom["tile_rows"], geom["n_row_tiles"]
    rows_padded, win = geom["rows"], geom["win"]
    n_ph, _, cin_p = phases.shape
    k_dim, cp = w.shape
    n_tiles = n_img * n_rt
    kernel = functools.partial(_conv_stats_kernel, taps=taps, tile_rows=tile_rows)

    y, psum, psq = pl.pallas_call(
        kernel,
        grid=(n_img, n_rt),
        in_specs=[
            pl.BlockSpec((n_ph, win, cin_p), lambda i, r: (0, i * n_rt + r, 0)),
            pl.BlockSpec((k_dim, cp), lambda i, r: (0, 0)),
            pl.BlockSpec((tile_rows, 1), lambda i, r: (r, 0)),
        ],
        out_specs=(
            pl.BlockSpec((1, tile_rows, cp), lambda i, r: (i, r, 0)),
            pl.BlockSpec((8, cp), lambda i, r: (i * n_rt + r, 0)),
            pl.BlockSpec((8, cp), lambda i, r: (i * n_rt + r, 0)),
        ),
        out_shape=(
            jax.ShapeDtypeStruct((n_img, rows_padded, cp), _COMPUTE_DTYPE),
            jax.ShapeDtypeStruct((n_tiles * 8, cp), jnp.float32),
            jax.ShapeDtypeStruct((n_tiles * 8, cp), jnp.float32),
        ),
        compiler_params=pltpu.CompilerParams(
            dimension_semantics=("parallel", "parallel"),   # per-tile stats -> no revisits
            vmem_limit_bytes=_VMEM_LIMIT),
    )(phases, w, mask)

    # Host-side (tiny) reduction of the per-tile partial statistics.
    s = psum.reshape(n_tiles, 8, cp)[:, 0, :].sum(axis=0)
    q = psq.reshape(n_tiles, 8, cp)[:, 0, :].sum(axis=0)
    return y.reshape(n_img * rows_padded, cp), s, q


def _pick_tile(m_total, cap=_PASS2_CAP):
    """Largest multiple of _SUBLANE dividing m_total, capped (m_total is a mult of 16)."""
    if m_total <= cap:
        return m_total
    t = (cap // _SUBLANE) * _SUBLANE
    while t > _SUBLANE:
        if m_total % t == 0:
            return t
        t -= _SUBLANE
    return _SUBLANE


def _bn_act_pallas(y, scale, shift, skip=None, skip_scale=None, skip_shift=None,
                   relu=True, out_dtype=jnp.float32):
    m_total, cp = y.shape
    tile = _pick_tile(m_total)
    n_tiles = m_total // tile
    row_spec = pl.BlockSpec((tile, cp), lambda i: (i, 0))
    vec_spec = pl.BlockSpec((1, cp), lambda i: (0, 0))
    inputs = [y, scale, shift]
    in_specs = [row_spec, vec_spec, vec_spec]
    if skip is not None:
        inputs += [skip, skip_scale, skip_shift]
        in_specs += [row_spec, vec_spec, vec_spec]
    kernel = functools.partial(_bn_act_kernel, relu=relu, has_skip=skip is not None)
    return pl.pallas_call(
        kernel,
        grid=(n_tiles,),
        in_specs=in_specs,
        out_specs=row_spec,
        out_shape=jax.ShapeDtypeStruct((m_total, cp), out_dtype),
        compiler_params=pltpu.CompilerParams(
            dimension_semantics=("parallel",),
            vmem_limit_bytes=_VMEM_LIMIT),
    )(*inputs)


# ============================== host-side layout prep ==============================

def _prep_conv_input(x_nhwc, kh, kw, stride, pad, force_geom=None):
    """Stride-phase split + row-flatten + overlapping per-tile row windows.

    "Wide" output layout: per image, flat row f = oh*Wph + ow for ow in [0, Wph);
    columns ow >= Wo (and rows >= Ho*Wph) are garbage, masked out of BN stats and
    sliced away later.  Channels are zero-padded to a multiple of 128 lanes so the
    in-kernel tap concatenation is lane-aligned.
    """
    N, H, W, C = x_nhwc.shape
    cin_p = _round_up(C, LANE)
    Ho = (H + 2 * pad - kh) // stride + 1
    Wo = (W + 2 * pad - kw) // stride + 1
    xp = jnp.pad(x_nhwc, ((0, 0), (pad, pad), (pad, pad), (0, cin_p - C)))

    # tap (ki,kj) -> phase (ki%s, kj%s), offset (ki//s, kj//s)   (space-to-depth)
    tap_raw = [((ki % stride, kj % stride), (ki // stride, kj // stride))
               for ki in range(kh) for kj in range(kw)]
    used = sorted({p for p, _ in tap_raw})
    phase_arrs = [xp[:, a::stride, b::stride, :] for (a, b) in used]
    Hph = max(p.shape[1] for p in phase_arrs)
    Wph_nat = max(p.shape[2] for p in phase_arrs)

    if force_geom is not None:
        # Land directly in the consumer's wide geometry (used by the 1x1 shortcut).
        Wph = force_geom["Wph"]
        assert Wph >= Wph_nat and force_geom["Ho"] == Ho and force_geom["Wo"] == Wo
        tile_rows, n_rt = force_geom["tile_rows"], force_geom["n_row_tiles"]
    else:
        Wph = Wph_nat
        rows_valid = Ho * Wph
        tile_rows = min(_ROW_TILE, _round_up(rows_valid, _SUBLANE))
        n_rt = pl.cdiv(rows_valid, tile_rows)
    rows_padded = tile_rows * n_rt

    taps, max_start = [], 0
    for p, (qi, qj) in tap_raw:
        start = qi * Wph + qj                      # static in-kernel slice start
        taps.append((used.index(p), start))
        max_start = max(max_start, start)

    win = _round_up(tile_rows + max_start, _SUBLANE)       # overlapping window length
    flat_len = (n_rt - 1) * tile_rows + win

    phase_arrs = [jnp.pad(p, ((0, 0), (0, Hph - p.shape[1]), (0, Wph - p.shape[2]), (0, 0)))
                  for p in phase_arrs]
    ph = jnp.stack(phase_arrs, axis=0).reshape(len(used), N, Hph * Wph, cin_p)
    ph = jnp.pad(ph, ((0, 0), (0, 0), (0, max(0, flat_len - Hph * Wph)), (0, 0)))
    ph = ph[:, :, :flat_len, :]
    # Overlapping row-tile windows (keeps every in-kernel tap slice static).
    ph = jnp.stack([ph[:, :, r * tile_rows:r * tile_rows + win, :] for r in range(n_rt)],
                   axis=2)                                   # (n_ph, N, n_rt, win, cin_p)
    ph = ph.reshape(len(used), N * n_rt * win, cin_p).astype(_COMPUTE_DTYPE)

    flat = jnp.arange(rows_padded)
    mask = (((flat % Wph) < Wo) & (flat < Ho * Wph)).astype(jnp.float32).reshape(rows_padded, 1)
    geom = dict(N=N, Ho=Ho, Wo=Wo, Wph=Wph, rows=rows_padded, tile_rows=tile_rows,
                n_row_tiles=n_rt, win=win, cin_p=cin_p)
    return ph, tuple(taps), mask, geom


def _prep_weights(w_hwio, cin_p, cp):
    """(kh,kw,cin,cout) -> tap-folded (kh*kw*cin_p, cp), zero-padded, bf16."""
    kh, kw, cin, cout = w_hwio.shape
    w = jnp.pad(w_hwio, ((0, 0), (0, 0), (0, cin_p - cin), (0, cp - cout)))
    return w.reshape(kh * kw * cin_p, cp).astype(_COMPUTE_DTYPE)


def _bn_scale_shift(s, sq, count, gamma, beta, cp):
    """Fold training-mode BN (batch stats, biased var) into per-channel scale/shift."""
    mean = s / count
    var = jnp.maximum(sq / count - mean * mean, 0.0)
    inv = jax.lax.rsqrt(var + BN_EPS)
    gamma_p = jnp.pad(gamma.astype(jnp.float32), (0, cp - gamma.shape[0]))
    beta_p = jnp.pad(beta.astype(jnp.float32), (0, cp - beta.shape[0]))
    scale = gamma_p * inv
    shift = beta_p - mean * scale
    return scale.reshape(1, cp), shift.reshape(1, cp)


def _narrow(y_wide, geom, n_ch=None):
    """(N*rows, Cp) wide layout -> dense NHWC (N, Ho, Wo, n_ch or Cp)."""
    N, Ho, Wo, Wph, rows = geom["N"], geom["Ho"], geom["Wo"], geom["Wph"], geom["rows"]
    y = y_wide.reshape(N, rows, -1)[:, :Ho * Wph, :].reshape(N, Ho, Wph, -1)[:, :, :Wo, :]
    if n_ch is not None:
        y = y[..., :n_ch]
    return y


def _widen(x_nhwc, geom):
    """Dense NHWC (N, Ho, Wo, Cp) -> (N*rows, Cp) rows aligned with a conv's wide layout."""
    N, Ho, Wo, Wph, rows = geom["N"], geom["Ho"], geom["Wo"], geom["Wph"], geom["rows"]
    cp = x_nhwc.shape[-1]
    x = jnp.pad(x_nhwc, ((0, 0), (0, 0), (0, Wph - Wo), (0, 0))).reshape(N, Ho * Wph, cp)
    x = jnp.pad(x, ((0, 0), (0, rows - Ho * Wph), (0, 0)))
    return x.reshape(N * rows, cp)


def _conv_bn_pass1(x_nhwc, w_hwio, gamma, beta, stride, pad, cp, force_geom=None):
    """Pass 1 (tap-folded conv + BN statistics) and folded scale/shift for pass 2."""
    kh, kw = w_hwio.shape[0], w_hwio.shape[1]
    phases, taps, mask, geom = _prep_conv_input(x_nhwc, kh, kw, stride, pad, force_geom)
    w = _prep_weights(w_hwio, geom["cin_p"], cp)
    y_wide, s, sq = _conv_stats_pallas(phases, w, mask, taps, geom)
    count = geom["N"] * geom["Ho"] * geom["Wo"]              # true (unmasked) sample count
    scale, shift = _bn_scale_shift(s, sq, count, gamma, beta, cp)
    return y_wide, scale, shift, geom


# ============================== BasicBlock forward ==============================

@functools.partial(jax.jit, static_argnames=("stride",))
def basic_block_forward(x_nchw, params, stride=1):
    x = jnp.transpose(x_nchw, (0, 2, 3, 1)).astype(jnp.float32)      # NCHW -> NHWC
    N, H, W, cin = x.shape
    width = params["w1"].shape[-1]
    cout = params["w2"].shape[-1]
    cp = _round_up(max(width, cout, cin), LANE)                      # lane-dense channels

    # conv1 (3x3, stride, pad 1) + BN(train) + ReLU.  Conv biases are dropped from the
    # kernels: a per-channel constant cancels exactly against the batch-mean subtraction
    # (training-mode BN only).
    y1w, sc1, sh1, g1 = _conv_bn_pass1(x, params["w1"], params["g1"], params["be1"],
                                       stride, 1, cp)
    y1w = _bn_act_pallas(y1w, sc1, sh1, relu=True, out_dtype=_COMPUTE_DTYPE)
    # Keep all Cp channels (padded ones are exactly 0; conv2's padded weight rows are 0).
    y1 = _narrow(y1w, g1)                                            # (N, Ho, Wo, Cp) bf16

    # conv2 (3x3, stride 1, pad 1) + BN2 statistics.
    y2w, sc2, sh2, g2 = _conv_bn_pass1(y1, params["w2"], params["g2"], params["be2"],
                                       1, 1, cp)

    # shortcut branch: 1x1 conv computed directly in conv2's wide geometry (its BN is
    # folded into the final pass 2), or identity widened once in bf16.
    if "ws" in params:
        skip_w, sc_s, sh_s, _ = _conv_bn_pass1(x, params["ws"], params["gs"], params["bes"],
                                               stride, 0, cp, force_geom=g2)
    else:
        skipd = jnp.pad(x, ((0, 0), (0, 0), (0, 0), (0, cp - cin))).astype(_COMPUTE_DTYPE)
        skip_w = _widen(skipd, g2)
        sc_s = jnp.ones((1, cp), jnp.float32)
        sh_s = jnp.zeros((1, cp), jnp.float32)

    # final pass 2: BN2 + skip-BN + residual add + ReLU.
    outw = _bn_act_pallas(y2w, sc2, sh2, skip=skip_w, skip_scale=sc_s, skip_shift=sh_s,
                          relu=True, out_dtype=jnp.float32)
    out = _narrow(outw, g2, cout)                                    # (N, Ho, Wo, cout)
    return jnp.transpose(out, (0, 3, 1, 2))                          # NHWC -> NCHW


# ============================== params / pure-JAX reference ==============================

def init_basic_block_params(key, in_channels, channels, stride=1):
    width = channels          # groups=1, width_per_group=64 -> width == channels
    cout = channels           # expansion = 1
    ks = jax.random.split(key, 12)

    def nrm(k, shape, scale=0.1):
        return scale * jax.random.normal(k, shape, jnp.float32)

    params = {
        "w1": nrm(ks[0], (3, 3, in_channels, width)),    # HWIO
        "b1": nrm(ks[1], (width,)),                      # kept for fidelity; cancels in BN
        "g1": 1.0 + nrm(ks[2], (width,)),
        "be1": nrm(ks[3], (width,)),
        "w2": nrm(ks[4], (3, 3, width, cout)),
        "b2": nrm(ks[5], (cout,)),
        "g2": 1.0 + nrm(ks[6], (cout,)),
        "be2": nrm(ks[7], (cout,)),
    }
    if stride != 1 or in_channels != cout:
        params["ws"] = nrm(ks[8], (1, 1, in_channels, cout))
        params["bs"] = nrm(ks[9], (cout,))
        params["gs"] = 1.0 + nrm(ks[10], (cout,))
        params["bes"] = nrm(ks[11], (cout,))
    return params


def _bn_train(y, gamma, beta):
    mean = jnp.mean(y, axis=(0, 1, 2))
    var = jnp.mean((y - mean) ** 2, axis=(0, 1, 2))
    return (y - mean) * jax.lax.rsqrt(var + BN_EPS) * gamma + beta


def reference_forward(x_nchw, params, stride=1):
    x = jnp.transpose(x_nchw, (0, 2, 3, 1)).astype(jnp.float32)

    def conv(inp, w, b, s, pad):
        return jax.lax.conv_general_dilated(
            inp, w, (s, s), [(pad, pad), (pad, pad)],
            dimension_numbers=("NHWC", "HWIO", "NHWC")) + b

    if "ws" in params:
        skip = _bn_train(conv(x, params["ws"], params["bs"], stride, 0),
                         params["gs"], params["bes"])
    else:
        skip = x
    y = jax.nn.relu(_bn_train(conv(x, params["w1"], params["b1"], stride, 1),
                              params["g1"], params["be1"]))
    y = _bn_train(conv(y, params["w2"], params["b2"], 1, 1),
                  params["g2"], params["be2"])
    out = jax.nn.relu(y + skip)
    return jnp.transpose(out, (0, 3, 1, 2))


# ============================== main ==============================

if __name__ == "__main__":
    key = jax.random.PRNGKey(0)
    kx, kp1, kp2, kp3 = jax.random.split(key, 4)

    # PyTorch-style NCHW input.  Tolerance is loose-ish because the kernel feeds the MXU
    # bf16 operands and stores bf16 intermediates (accumulation / BN math stay f32); the
    # reference is pure f32.
    x = jax.random.normal(kx, (2, 4, 16, 16), jnp.float32)
    TOL = dict(atol=5e-2, rtol=5e-2)

    # Case 1: stride=1, channel change (4 -> 8) => shortcut is 1x1 conv + BN
    p1 = init_basic_block_params(kp1, in_channels=4, channels=8, stride=1)
    o1 = jax.block_until_ready(basic_block_forward(x, p1, stride=1))
    r1 = reference_forward(x, p1, stride=1)
    assert o1.shape == (2, 8, 16, 16)
    assert jnp.allclose(o1, r1, **TOL), float(jnp.max(jnp.abs(o1 - r1)))

    # Case 2: stride=2 downsampling block
    p2 = init_basic_block_params(kp2, in_channels=4, channels=8, stride=2)
    o2 = jax.block_until_ready(basic_block_forward(x, p2, stride=2))
    r2 = reference_forward(x, p2, stride=2)
    assert o2.shape == (2, 8, 8, 8)
    assert jnp.allclose(o2, r2, **TOL), float(jnp.max(jnp.abs(o2 - r2)))

    # Case 3: identity shortcut (in_channels == channels, stride=1)
    x3 = jax.random.normal(kx, (2, 8, 16, 16), jnp.float32)
    p3 = init_basic_block_params(kp3, in_channels=8, channels=8, stride=1)
    o3 = jax.block_until_ready(basic_block_forward(x3, p3, stride=1))
    r3 = reference_forward(x3, p3, stride=1)
    assert o3.shape == (2, 8, 16, 16)
    assert jnp.allclose(o3, r3, **TOL), float(jnp.max(jnp.abs(o3 - r3)))

    print("KERNEL_OK")
</pallas_src>

<mosaic_0001>
module attributes {stable_mosaic.version = 11 : i64} {
  func.func @_conv_stats_kernel(%arg0: i32, %arg1: i32, %arg2: memref<1x336x128xbf16, #tpu.memory_space<vmem>>, %arg3: memref<1152x128xbf16, #tpu.memory_space<vmem>>, %arg4: memref<288x1xf32, #tpu.memory_space<vmem>>, %arg5: memref<1x288x128xbf16, #tpu.memory_space<vmem>>, %arg6: memref<8x128xf32, #tpu.memory_space<vmem>>, %arg7: memref<8x128xf32, #tpu.memory_space<vmem>>) attributes {dimension_semantics = [#tpu.dimension_semantics<parallel>, #tpu.dimension_semantics<parallel>], iteration_bounds = array<i64: 2, 1>, scalar_prefetch = 0 : i64, scratch_operands = 0 : i64, tpu.core_type = #tpu.core_type<tc>, window_params = [{transform_indices = @transform_0, window_bounds = array<i64: 1, 336, 128>}, {pipeline_mode = #tpu.pipeline_mode<synchronous>, transform_indices = @transform_1, window_bounds = array<i64: 1152, 128>}, {transform_indices = @transform_2, window_bounds = array<i64: 288, 1>}, {transform_indices = @transform_3, window_bounds = array<i64: 1, 288, 128>}, {transform_indices = @transform_4, window_bounds = array<i64: 8, 128>}, {transform_indices = @transform_5, window_bounds = array<i64: 8, 128>}]} {
    %c0 = arith.constant 0 : index
    %c0_0 = arith.constant 0 : index
    %c0_1 = arith.constant 0 : index
    %0 = vector.load %arg2[%c0, %c0_0, %c0_1] : memref<1x336x128xbf16, #tpu.memory_space<vmem>>, vector<1x288x128xbf16>
    %1 = vector.shape_cast %0 : vector<1x288x128xbf16> to vector<288x128xbf16>
    %c0_2 = arith.constant 0 : index
    %c1 = arith.constant 1 : index
    %c0_3 = arith.constant 0 : index
    %2 = vector.load %arg2[%c0_2, %c1, %c0_3] : memref<1x336x128xbf16, #tpu.memory_space<vmem>>, vector<1x288x128xbf16>
    %3 = vector.shape_cast %2 : vector<1x288x128xbf16> to vector<288x128xbf16>
    %c0_4 = arith.constant 0 : index
    %c2 = arith.constant 2 : index
    %c0_5 = arith.constant 0 : index
    %4 = vector.load %arg2[%c0_4, %c2, %c0_5] : memref<1x336x128xbf16, #tpu.memory_space<vmem>>, vector<1x288x128xbf16>
    %5 = vector.shape_cast %4 : vector<1x288x128xbf16> to vector<288x128xbf16>
    %c0_6 = arith.constant 0 : index
    %c18 = arith.constant 18 : index
    %c0_7 = arith.constant 0 : index
    %6 = vector.load %arg2[%c0_6, %c18, %c0_7] : memref<1x336x128xbf16, #tpu.memory_space<vmem>>, vector<1x288x128xbf16>
    %7 = vector.shape_cast %6 : vector<1x288x128xbf16> to vector<288x128xbf16>
    %c0_8 = arith.constant 0 : index
    %c19 = arith.constant 19 : index
    %c0_9 = arith.constant 0 : index
    %8 = vector.load %arg2[%c0_8, %c19, %c0_9] : memref<1x336x128xbf16, #tpu.memory_space<vmem>>, vector<1x288x128xbf16>
    %9 = vector.shape_cast %8 : vector<1x288x128xbf16> to vector<288x128xbf16>
    %c0_10 = arith.constant 0 : index
    %c20 = arith.constant 20 : index
    %c0_11 = arith.constant 0 : index
    %10 = vector.load %arg2[%c0_10, %c20, %c0_11] : memref<1x336x128xbf16, #tpu.memory_space<vmem>>, vector<1x288x128xbf16>
    %11 = vector.shape_cast %10 : vector<1x288x128xbf16> to vector<288x128xbf16>
    %c0_12 = arith.constant 0 : index
    %c36 = arith.constant 36 : index
    %c0_13 = arith.constant 0 : index
    %12 = vector.load %arg2[%c0_12, %c36, %c0_13] : memref<1x336x128xbf16, #tpu.memory_space<vmem>>, vector<1x288x128xbf16>
    %13 = vector.shape_cast %12 : vector<1x288x128xbf16> to vector<288x128xbf16>
    %c0_14 = arith.constant 0 : index
    %c37 = arith.constant 37 : index
    %c0_15 = arith.constant 0 : index
    %14 = vector.load %arg2[%c0_14, %c37, %c0_15] : memref<1x336x128xbf16, #tpu.memory_space<vmem>>, vector<1x288x128xbf16>
    %15 = vector.shape_cast %14 : vector<1x288x128xbf16> to vector<288x128xbf16>
    %c0_16 = arith.constant 0 : index
    %c38 = arith.constant 38 : index
    %c0_17 = arith.constant 0 : index
    %16 = vector.load %arg2[%c0_16, %c38, %c0_17] : memref<1x336x128xbf16, #tpu.memory_space<vmem>>, vector<1x288x128xbf16>
    %17 = vector.shape_cast %16 : vector<1x288x128xbf16> to vector<288x128xbf16>
    %18 = tpu.concatenate %1, %3, %5, %7, %9, %11, %13, %15, %17 in 1 : vector<288x128xbf16>, vector<288x128xbf16>, vector<288x128xbf16>, vector<288x128xbf16>, vector<288x128xbf16>, vector<288x128xbf16>, vector<288x128xbf16>, vector<288x128xbf16>, vector<288x128xbf16> -> vector<288x1152xbf16>
    %c0_18 = arith.constant 0 : index
    %c0_19 = arith.constant 0 : index
    %19 = vector.load %arg3[%c0_18, %c0_19] : memref<1152x128xbf16, #tpu.memory_space<vmem>>, vector<1152x128xbf16>
    %cst = arith.constant dense<0.000000e+00> : vector<288x128xf32>
    %20 = tpu.matmul %18, %19, %cst {dimension_numbers = #tpu.dot_dimension_numbers<[1], [0], [0], [1], [0, 0, 1, 1], [], []>} : vector<288x1152xbf16>, vector<1152x128xbf16>, vector<288x128xf32> -> vector<288x128xf32>
    %21 = vector.shape_cast %20 : vector<288x128xf32> to vector<1x288x128xf32>
    %22 = arith.truncf %21 : vector<1x288x128xf32> to vector<1x288x128xbf16>
    %c0_20 = arith.constant 0 : index
    %c0_21 = arith.constant 0 : index
    %c0_22 = arith.constant 0 : index
    %23 = vector.load %arg5[%c0_20, %c0_21, %c0_22] : memref<1x288x128xbf16, #tpu.memory_space<vmem>>, vector<1x288x128xbf16>
    tpu.vector_store %arg5[%c0_20, %c0_21, %c0_22], %22 {strides = array<i32>} : memref<1x288x128xbf16, #tpu.memory_space<vmem>>, vector<1x288x128xbf16>,
    %c0_23 = arith.constant 0 : index
    %c0_24 = arith.constant 0 : index
    %24 = vector.load %arg4[%c0_23, %c0_24] : memref<288x1xf32, #tpu.memory_space<vmem>>, vector<288x1xf32>
    %25 = vector.broadcast %24 : vector<288x1xf32> to vector<288x128xf32>
    %26 = arith.mulf %20, %25 : vector<288x128xf32>
    %cst_25 = arith.constant dense<0.000000e+00> : vector<128xf32>
    %27 = vector.multi_reduction <add>, %26, %cst_25 [0] : vector<288x128xf32> to vector<128xf32>
    %28 = vector.shape_cast %27 : vector<128xf32> to vector<1x128xf32>
    %29 = vector.shape_cast %28 : vector<1x128xf32> to vector<1x128xf32>
    %30 = vector.broadcast %29 : vector<1x128xf32> to vector<8x128xf32>
    %c0_26 = arith.constant 0 : index
    %c0_27 = arith.constant 0 : index
    %31 = vector.load %arg6[%c0_26, %c0_27] : memref<8x128xf32, #tpu.memory_space<vmem>>, vector<8x128xf32>
    tpu.vector_store %arg6[%c0_26, %c0_27], %30 {strides = array<i32>} : memref<8x128xf32, #tpu.memory_space<vmem>>, vector<8x128xf32>,
    %32 = arith.mulf %26, %20 : vector<288x128xf32>
    %cst_28 = arith.constant dense<0.000000e+00> : vector<128xf32>
    %33 = vector.multi_reduction <add>, %32, %cst_28 [0] : vector<288x128xf32> to vector<128xf32>
    %34 = vector.shape_cast %33 : vector<128xf32> to vector<1x128xf32>
    %35 = vector.shape_cast %34 : vector<1x128xf32> to vector<1x128xf32>
    %36 = vector.broadcast %35 : vector<1x128xf32> to vector<8x128xf32>
    %c0_29 = arith.constant 0 : index
    %c0_30 = arith.constant 0 : index
    %37 = vector.load %arg7[%c0_29, %c0_30] : memref<8x128xf32, #tpu.memory_space<vmem>>, vector<8x128xf32>
    tpu.vector_store %arg7[%c0_29, %c0_30], %36 {strides = array<i32>} : memref<8x128xf32, #tpu.memory_space<vmem>>, vector<8x128xf32>,
    return
  }
  func.func @transform_0(%arg0: i32, %arg1: i32) -> (i32, i32, i32) {
    %c1_i32 = arith.constant 1 : i32
    %0 = arith.muli %arg0, %c1_i32 : i32
    %1 = arith.addi %0, %arg1 : i32
    %c0_i32 = arith.constant 0 : i32
    %c0_i32_0 = arith.constant 0 : i32
    %c0_i32_1 = arith.constant 0 : i32
    return %c0_i32, %1, %c0_i32_0 : i32, i32, i32
  }
  func.func @transform_1(%arg0: i32, %arg1: i32) -> (i32, i32) {
    %c0_i32 = arith.constant 0 : i32
    %c0_i32_0 = arith.constant 0 : i32
    %c0_i32_1 = arith.constant 0 : i32
    return %c0_i32, %c0_i32_0 : i32, i32
  }
  func.func @transform_2(%arg0: i32, %arg1: i32) -> (i32, i32) {
    %c0_i32 = arith.constant 0 : i32
    %c0_i32_0 = arith.constant 0 : i32
    return %arg1, %c0_i32 : i32, i32
  }
  func.func @transform_3(%arg0: i32, %arg1: i32) -> (i32, i32, i32) {
    %c0_i32 = arith.constant 0 : i32
    %c0_i32_0 = arith.constant 0 : i32
    return %arg0, %arg1, %c0_i32 : i32, i32, i32
  }
  func.func @transform_4(%arg0: i32, %arg1: i32) -> (i32, i32) {
    %c1_i32 = arith.constant 1 : i32
    %0 = arith.muli %arg0, %c1_i32 : i32
    %1 = arith.addi %0, %arg1 : i32
    %c0_i32 = arith.constant 0 : i32
    %c0_i32_0 = arith.constant 0 : i32
    return %1, %c0_i32 : i32, i32
  }
  func.func @transform_5(%arg0: i32, %arg1: i32) -> (i32, i32) {
    %c1_i32 = arith.constant 1 : i32
    %0 = arith.muli %arg0, %c1_i32 : i32
    %1 = arith.addi %0, %arg1 : i32
    %c0_i32 = arith.constant 0 : i32
    %c0_i32_0 = arith.constant 0 : i32
    return %1, %c0_i32 : i32, i32
  }
}

module attributes {stable_mosaic.version = 11 : i64} {
  func.func @_bn_act_kernel(%arg0: i32, %arg1: memref<576x128xbf16, #tpu.memory_space<vmem>>, %arg2: memref<1x128xf32, #tpu.memory_space<vmem>>, %arg3: memref<1x128xf32, #tpu.memory_space<vmem>>, %arg4: memref<576x128xbf16, #tpu.memory_space<vmem>>) attributes {dimension_semantics = [#tpu.dimension_semantics<parallel>], iteration_bounds = array<i64: 1>, scalar_prefetch = 0 : i64, scratch_operands = 0 : i64, tpu.core_type = #tpu.core_type<tc>, window_params = [{transform_indices = @transform_0, window_bounds = array<i64: 576, 128>}, {pipeline_mode = #tpu.pipeline_mode<synchronous>, transform_indices = @transform_1, window_bounds = array<i64: 1, 128>}, {pipeline_mode = #tpu.pipeline_mode<synchronous>, transform_indices = @transform_2, window_bounds = array<i64: 1, 128>}, {transform_indices = @transform_3, window_bounds = array<i64: 576, 128>}]} {
    %c0 = arith.constant 0 : index
    %c0_0 = arith.constant 0 : index
    %0 = vector.load %arg1[%c0, %c0_0] : memref<576x128xbf16, #tpu.memory_space<vmem>>, vector<576x128xbf16>
    %1 = arith.extf %0 : vector<576x128xbf16> to vector<576x128xf32>
    %c0_1 = arith.constant 0 : index
    %c0_2 = arith.constant 0 : index
    %2 = vector.load %arg2[%c0_1, %c0_2] : memref<1x128xf32, #tpu.memory_space<vmem>>, vector<1x128xf32>
    %3 = vector.broadcast %2 : vector<1x128xf32> to vector<576x128xf32>
    %4 = arith.mulf %1, %3 : vector<576x128xf32>
    %c0_3 = arith.constant 0 : index
    %c0_4 = arith.constant 0 : index
    %5 = vector.load %arg3[%c0_3, %c0_4] : memref<1x128xf32, #tpu.memory_space<vmem>>, vector<1x128xf32>
    %6 = vector.broadcast %5 : vector<1x128xf32> to vector<576x128xf32>
    %7 = arith.addf %4, %6 : vector<576x128xf32>
    %cst = arith.constant 0.000000e+00 : f32
    %8 = vector.broadcast %cst : f32 to vector<576x128xf32>
    %9 = arith.maximumf %7, %8 : vector<576x128xf32>
    %10 = arith.truncf %9 : vector<576x128xf32> to vector<576x128xbf16>
    %c0_5 = arith.constant 0 : index
    %c0_6 = arith.constant 0 : index
    %11 = vector.load %arg4[%c0_5, %c0_6] : memref<576x128xbf16, #tpu.memory_space<vmem>>, vector<576x128xbf16>
    tpu.vector_store %arg4[%c0_5, %c0_6], %10 {strides = array<i32>} : memref<576x128xbf16, #tpu.memory_space<vmem>>, vector<576x128xbf16>,
    return
  }
  func.func @transform_0(%arg0: i32) -> (i32, i32) {
    %c0_i32 = arith.constant 0 : i32
    %c0_i32_0 = arith.constant 0 : i32
    return %arg0, %c0_i32 : i32, i32
  }
  func.func @transform_1(%arg0: i32) -> (i32, i32) {
    %c0_i32 = arith.constant 0 : i32
    %c0_i32_0 = arith.constant 0 : i32
    %c0_i32_1 = arith.constant 0 : i32
    return %c0_i32, %c0_i32_0 : i32, i32
  }
  func.func @transform_2(%arg0: i32) -> (i32, i32) {
    %c0_i32 = arith.constant 0 : i32
    %c0_i32_0 = arith.constant 0 : i32
    %c0_i32_1 = arith.constant 0 : i32
    return %c0_i32, %c0_i32_0 : i32, i32
  }
  func.func @transform_3(%arg0: i32) -> (i32, i32) {
    %c0_i32 = arith.constant 0 : i32
    %c0_i32_0 = arith.constant 0 : i32
    return %arg0, %c0_i32 : i32, i32
  }
}

module attributes {stable_mosaic.version = 11 : i64} {
  func.func @_bn_act_kernel(%arg0: i32, %arg1: memref<576x128xbf16, #tpu.memory_space<vmem>>, %arg2: memref<1x128xf32, #tpu.memory_space<vmem>>, %arg3: memref<1x128xf32, #tpu.memory_space<vmem>>, %arg4: memref<576x128xbf16, #tpu.memory_space<vmem>>, %arg5: memref<1x128xf32, #tpu.memory_space<vmem>>, %arg6: memref<1x128xf32, #tpu.memory_space<vmem>>, %arg7: memref<576x128xf32, #tpu.memory_space<vmem>>) attributes {dimension_semantics = [#tpu.dimension_semantics<parallel>], iteration_bounds = array<i64: 1>, scalar_prefetch = 0 : i64, scratch_operands = 0 : i64, tpu.core_type = #tpu.core_type<tc>, window_params = [{transform_indices = @transform_0, window_bounds = array<i64: 576, 128>}, {pipeline_mode = #tpu.pipeline_mode<synchronous>, transform_indices = @transform_1, window_bounds = array<i64: 1, 128>}, {pipeline_mode = #tpu.pipeline_mode<synchronous>, transform_indices = @transform_2, window_bounds = array<i64: 1, 128>}, {transform_indices = @transform_3, window_bounds = array<i64: 576, 128>}, {pipeline_mode = #tpu.pipeline_mode<synchronous>, transform_indices = @transform_4, window_bounds = array<i64: 1, 128>}, {pipeline_mode = #tpu.pipeline_mode<synchronous>, transform_indices = @transform_5, window_bounds = array<i64: 1, 128>}, {transform_indices = @transform_6, window_bounds = array<i64: 576, 128>}]} {
    %c0 = arith.constant 0 : index
    %c0_0 = arith.constant 0 : index
    %0 = vector.load %arg1[%c0, %c0_0] : memref<576x128xbf16, #tpu.memory_space<vmem>>, vector<576x128xbf16>
    %1 = arith.extf %0 : vector<576x128xbf16> to vector<576x128xf32>
    %c0_1 = arith.constant 0 : index
    %c0_2 = arith.constant 0 : index
    %2 = vector.load %arg2[%c0_1, %c0_2] : memref<1x128xf32, #tpu.memory_space<vmem>>, vector<1x128xf32>
    %3 = vector.broadcast %2 : vector<1x128xf32> to vector<576x128xf32>
    %4 = arith.mulf %1, %3 : vector<576x128xf32>
    %c0_3 = arith.constant 0 : index
    %c0_4 = arith.constant 0 : index
    %5 = vector.load %arg3[%c0_3, %c0_4] : memref<1x128xf32, #tpu.memory_space<vmem>>, vector<1x128xf32>
    %6 = vector.broadcast %5 : vector<1x128xf32> to vector<576x128xf32>
    %7 = arith.addf %4, %6 : vector<576x128xf32>
    %c0_5 = arith.constant 0 : index
    %c0_6 = arith.constant 0 : index
    %8 = vector.load %arg4[%c0_5, %c0_6] : memref<576x128xbf16, #tpu.memory_space<vmem>>, vector<576x128xbf16>
    %9 = arith.extf %8 : vector<576x128xbf16> to vector<576x128xf32>
    %c0_7 = arith.constant 0 : index
    %c0_8 = arith.constant 0 : index
    %10 = vector.load %arg5[%c0_7, %c0_8] : memref<1x128xf32, #tpu.memory_space<vmem>>, vector<1x128xf32>
    %11 = vector.broadcast %10 : vector<1x128xf32> to vector<576x128xf32>
    %12 = arith.mulf %9, %11 : vector<576x128xf32>
    %c0_9 = arith.constant 0 : index
    %c0_10 = arith.constant 0 : index
    %13 = vector.load %arg6[%c0_9, %c0_10] : memref<1x128xf32, #tpu.memory_space<vmem>>, vector<1x128xf32>
    %14 = vector.broadcast %13 : vector<1x128xf32> to vector<576x128xf32>
    %15 = arith.addf %12, %14 : vector<576x128xf32>
    %16 = arith.addf %7, %15 : vector<576x128xf32>
    %cst = arith.constant 0.000000e+00 : f32
    %17 = vector.broadcast %cst : f32 to vector<576x128xf32>
    %18 = arith.maximumf %16, %17 : vector<576x128xf32>
    %c0_11 = arith.constant 0 : index
    %c0_12 = arith.constant 0 : index
    %19 = vector.load %arg7[%c0_11, %c0_12] : memref<576x128xf32, #tpu.memory_space<vmem>>, vector<576x128xf32>
    tpu.vector_store %arg7[%c0_11, %c0_12], %18 {strides = array<i32>} : memref<576x128xf32, #tpu.memory_space<vmem>>, vector<576x128xf32>,
    return
  }
  func.func @transform_0(%arg0: i32) -> (i32, i32) {
    %c0_i32 = arith.constant 0 : i32
    %c0_i32_0 = arith.constant 0 : i32
    return %arg0, %c0_i32 : i32, i32
  }
  func.func @transform_1(%arg0: i32) -> (i32, i32) {
    %c0_i32 = arith.constant 0 : i32
    %c0_i32_0 = arith.constant 0 : i32
    %c0_i32_1 = arith.constant 0 : i32
    return %c0_i32, %c0_i32_0 : i32, i32
  }
  func.func @transform_2(%arg0: i32) -> (i32, i32) {
    %c0_i32 = arith.constant 0 : i32
    %c0_i32_0 = arith.constant 0 : i32
    %c0_i32_1 = arith.constant 0 : i32
    return %c0_i32, %c0_i32_0 : i32, i32
  }
  func.func @transform_3(%arg0: i32) -> (i32, i32) {
    %c0_i32 = arith.constant 0 : i32
    %c0_i32_0 = arith.constant 0 : i32
    return %arg0, %c0_i32 : i32, i32
  }
  func.func @transform_4(%arg0: i32) -> (i32, i32) {
    %c0_i32 = arith.constant 0 : i32
    %c0_i32_0 = arith.constant 0 : i32
    %c0_i32_1 = arith.constant 0 : i32
    return %c0_i32, %c0_i32_0 : i32, i32
  }
  func.func @transform_5(%arg0: i32) -> (i32, i32) {
    %c0_i32 = arith.constant 0 : i32
    %c0_i32_0 = arith.constant 0 : i32
    %c0_i32_1 = arith.constant 0 : i32
    return %c0_i32, %c0_i32_0 : i32, i32
  }
  func.func @transform_6(%arg0: i32) -> (i32, i32) {
    %c0_i32 = arith.constant 0 : i32
    %c0_i32_0 = arith.constant 0 : i32
    return %arg0, %c0_i32 : i32, i32
  }
}

module attributes {stable_mosaic.version = 11 : i64} {
  func.func @_conv_stats_kernel(%arg0: i32, %arg1: i32, %arg2: memref<1x288x128xbf16, #tpu.memory_space<vmem>>, %arg3: memref<128x128xbf16, #tpu.memory_space<vmem>>, %arg4: memref<288x1xf32, #tpu.memory_space<vmem>>, %arg5: memref<1x288x128xbf16, #tpu.memory_space<vmem>>, %arg6: memref<8x128xf32, #tpu.memory_space<vmem>>, %arg7: memref<8x128xf32, #tpu.memory_space<vmem>>) attributes {dimension_semantics = [#tpu.dimension_semantics<parallel>, #tpu.dimension_semantics<parallel>], iteration_bounds = array<i64: 2, 1>, scalar_prefetch = 0 : i64, scratch_operands = 0 : i64, tpu.core_type = #tpu.core_type<tc>, window_params = [{transform_indices = @transform_0, window_bounds = array<i64: 1, 288, 128>}, {pipeline_mode = #tpu.pipeline_mode<synchronous>, transform_indices = @transform_1, window_bounds = array<i64: 128, 128>}, {transform_indices = @transform_2, window_bounds = array<i64: 288, 1>}, {transform_indices = @transform_3, window_bounds = array<i64: 1, 288, 128>}, {transform_indices = @transform_4, window_bounds = array<i64: 8, 128>}, {transform_indices = @transform_5, window_bounds = array<i64: 8, 128>}]} {
    %c0 = arith.constant 0 : index
    %c0_0 = arith.constant 0 : index
    %c0_1 = arith.constant 0 : index
    %0 = vector.load %arg2[%c0, %c0_0, %c0_1] : memref<1x288x128xbf16, #tpu.memory_space<vmem>>, vector<1x288x128xbf16>
    %1 = vector.shape_cast %0 : vector<1x288x128xbf16> to vector<288x128xbf16>
    %c0_2 = arith.constant 0 : index
    %c0_3 = arith.constant 0 : index
    %2 = vector.load %arg3[%c0_2, %c0_3] : memref<128x128xbf16, #tpu.memory_space<vmem>>, vector<128x128xbf16>
    %cst = arith.constant dense<0.000000e+00> : vector<288x128xf32>
    %3 = tpu.matmul %1, %2, %cst {dimension_numbers = #tpu.dot_dimension_numbers<[1], [0], [0], [1], [0, 0, 1, 1], [], []>} : vector<288x128xbf16>, vector<128x128xbf16>, vector<288x128xf32> -> vector<288x128xf32>
    %4 = vector.shape_cast %3 : vector<288x128xf32> to vector<1x288x128xf32>
    %5 = arith.truncf %4 : vector<1x288x128xf32> to vector<1x288x128xbf16>
    %c0_4 = arith.constant 0 : index
    %c0_5 = arith.constant 0 : index
    %c0_6 = arith.constant 0 : index
    %6 = vector.load %arg5[%c0_4, %c0_5, %c0_6] : memref<1x288x128xbf16, #tpu.memory_space<vmem>>, vector<1x288x128xbf16>
    tpu.vector_store %arg5[%c0_4, %c0_5, %c0_6], %5 {strides = array<i32>} : memref<1x288x128xbf16, #tpu.memory_space<vmem>>, vector<1x288x128xbf16>,
    %c0_7 = arith.constant 0 : index
    %c0_8 = arith.constant 0 : index
    %7 = vector.load %arg4[%c0_7, %c0_8] : memref<288x1xf32, #tpu.memory_space<vmem>>, vector<288x1xf32>
    %8 = vector.broadcast %7 : vector<288x1xf32> to vector<288x128xf32>
    %9 = arith.mulf %3, %8 : vector<288x128xf32>
    %cst_9 = arith.constant dense<0.000000e+00> : vector<128xf32>
    %10 = vector.multi_reduction <add>, %9, %cst_9 [0] : vector<288x128xf32> to vector<128xf32>
    %11 = vector.shape_cast %10 : vector<128xf32> to vector<1x128xf32>
    %12 = vector.shape_cast %11 : vector<1x128xf32> to vector<1x128xf32>
    %13 = vector.broadcast %12 : vector<1x128xf32> to vector<8x128xf32>
    %c0_10 = arith.constant 0 : index
    %c0_11 = arith.constant 0 : index
    %14 = vector.load %arg6[%c0_10, %c0_11] : memref<8x128xf32, #tpu.memory_space<vmem>>, vector<8x128xf32>
    tpu.vector_store %arg6[%c0_10, %c0_11], %13 {strides = array<i32>} : memref<8x128xf32, #tpu.memory_space<vmem>>, vector<8x128xf32>,
    %15 = arith.mulf %9, %3 : vector<288x128xf32>
    %cst_12 = arith.constant dense<0.000000e+00> : vector<128xf32>
    %16 = vector.multi_reduction <add>, %15, %cst_12 [0] : vector<288x128xf32> to vector<128xf32>
    %17 = vector.shape_cast %16 : vector<128xf32> to vector<1x128xf32>
    %18 = vector.shape_cast %17 : vector<1x128xf32> to vector<1x128xf32>
    %19 = vector.broadcast %18 : vector<1x128xf32> to vector<8x128xf32>
    %c0_13 = arith.constant 0 : index
    %c0_14 = arith.constant 0 : index
    %20 = vector.load %arg7[%c0_13, %c0_14] : memref<8x128xf32, #tpu.memory_space<vmem>>, vector<8x128xf32>
    tpu.vector_store %arg7[%c0_13, %c0_14], %19 {strides = array<i32>} : memref<8x128xf32, #tpu.memory_space<vmem>>, vector<8x128xf32>,
    return
  }
  func.func @transform_0(%arg0: i32, %arg1: i32) -> (i32, i32, i32) {
    %c1_i32 = arith.constant 1 : i32
    %0 = arith.muli %arg0, %c1_i32 : i32
    %1 = arith.addi %0, %arg1 : i32
    %c0_i32 = arith.constant 0 : i32
    %c0_i32_0 = arith.constant 0 : i32
    %c0_i32_1 = arith.constant 0 : i32
    return %c0_i32, %1, %c0_i32_0 : i32, i32, i32
  }
  func.func @transform_1(%arg0: i32, %arg1: i32) -> (i32, i32) {
    %c0_i32 = arith.constant 0 : i32
    %c0_i32_0 = arith.constant 0 : i32
    %c0_i32_1 = arith.constant 0 : i32
    return %c0_i32, %c0_i32_0 : i32, i32
  }
  func.func @transform_2(%arg0: i32, %arg1: i32) -> (i32, i32) {
    %c0_i32 = arith.constant 0 : i32
    %c0_i32_0 = arith.constant 0 : i32
    return %arg1, %c0_i32 : i32, i32
  }
  func.func @transform_3(%arg0: i32, %arg1: i32) -> (i32, i32, i32) {
    %c0_i32 = arith.constant 0 : i32
    %c0_i32_0 = arith.constant 0 : i32
    return %arg0, %arg1, %c0_i32 : i32, i32, i32
  }
  func.func @transform_4(%arg0: i32, %arg1: i32) -> (i32, i32) {
    %c1_i32 = arith.constant 1 : i32
    %0 = arith.muli %arg0, %c1_i32 : i32
    %1 = arith.addi %0, %arg1 : i32
    %c0_i32 = arith.constant 0 : i32
    %c0_i32_0 = arith.constant 0 : i32
    return %1, %c0_i32 : i32, i32
  }
  func.func @transform_5(%arg0: i32, %arg1: i32) -> (i32, i32) {
    %c1_i32 = arith.constant 1 : i32
    %0 = arith.muli %arg0, %c1_i32 : i32
    %1 = arith.addi %0, %arg1 : i32
    %c0_i32 = arith.constant 0 : i32
    %c0_i32_0 = arith.constant 0 : i32
    return %1, %c0_i32 : i32, i32
  }
}

</mosaic_0001>

<llo_original>
// kernel: basic_block_forward.6
$region0: #{basic_block_forward.6}
  #allocation0 [shape = 'u32[]', space=smem, size = 0x4, offset = 0x4, fixed_abs, tag = 'smem constant byte address 0x4 - core index']
  #allocation1 [shape = 'u32[144,128]{1,0:T(1,128)}', space=vmem, size = 0x12000, scoped, tag = 'internal scratch']
  %s0 = inlined_call_operand.vmem [shape: bf16[576,128], index: 0, kind: input, shape index: {}]
  %s1 = inlined_call_operand.vmem [shape: f32[1,128], index: 1, kind: input, shape index: {}]
  %s2 = inlined_call_operand.vmem [shape: f32[1,128], index: 2, kind: input, shape index: {}]
  %s3 = inlined_call_operand.vmem [shape: bf16[576,128], index: 3, kind: output, shape index: {}]
  %s4 = sld [smem:[#allocation0]]
  $region22: #{basic_block_forward.6} parent=0
    _
  %s6 = ssub.s32 1, %s4
  %s7 = scalar_select 0, %s6, %s4
  // Predicated region
  $region2: #{basic_block_forward.6} parent=0 // pred_check
    _
  $region3: #{basic_block_forward.6} parent=0 // pred_check_branch
    %9 = sbr.rel (0) target = $region5
  $region4: #{basic_block_forward.6} parent=0 // pred_region
    _
  $region5: #{basic_block_forward.6} parent=0 // pred_fallthru
    _
  // Predicated region
  $region6: #{basic_block_forward.6} parent=0 // pred_check
    _
  $region7: #{basic_block_forward.6} parent=0 // pred_check_branch
    %11 = sbr.rel (0) target = $region9
  $region8: #{basic_block_forward.6} parent=0 // pred_region
    _
  $region9: #{basic_block_forward.6} parent=0 // pred_fallthru
    _
  // Predicated region
  $region10: #{basic_block_forward.6} parent=0 // pred_check
    _
  $region11: #{basic_block_forward.6} parent=0 // pred_check_branch
    %13 = sbr.rel (0) target = $region13
  $region12: #{basic_block_forward.6} parent=0 // pred_region
    _
  $region13: #{basic_block_forward.6} parent=0 // pred_fallthru
    _
  %v14 = vld [vmem:[%s0] sm:$0xf]
  %v15 = vld [vmem:[%s0 + $0x4] sm:$0xf]
  %v16 = vld [vmem:[%s0 + $0x8] sm:$0xf]
  %v17 = vld [vmem:[%s0 + $0xc] sm:$0xf]
  %v18 = vld [vmem:[%s0 + $0x10] sm:$0xf]
  %v19 = vld [vmem:[%s0 + $0x14] sm:$0xf]
  %v20 = vld [vmem:[%s0 + $0x18] sm:$0xf]
  %v21 = vld [vmem:[%s0 + $0x1c] sm:$0xf]
  %v22 = vld [vmem:[%s0 + $0x20] sm:$0xf]
  %v23 = vld [vmem:[%s0 + $0x24] sm:$0xf]
  %v24 = vld [vmem:[%s0 + $0x28] sm:$0xf]
  %v25 = vld [vmem:[%s0 + $0x2c] sm:$0xf]
  %v26 = vld [vmem:[%s0 + $0x30] sm:$0xf]
  %v27 = vld [vmem:[%s0 + $0x34] sm:$0xf]
  %v28 = vld [vmem:[%s0 + $0x38] sm:$0xf]
  %v29 = vld [vmem:[%s0 + $0x3c] sm:$0xf]
  %v30 = vld [vmem:[%s0 + $0x40] sm:$0xf]
  %v31 = vld [vmem:[%s0 + $0x44] sm:$0xf]
  %v32 = vld [vmem:[%s0 + $0x48] sm:$0xf]
  %v33 = vld [vmem:[%s0 + $0x4c] sm:$0xf]
  %v34 = vld [vmem:[%s0 + $0x50] sm:$0xf]
  %v35 = vld [vmem:[%s0 + $0x54] sm:$0xf]
  %v36 = vld [vmem:[%s0 + $0x58] sm:$0xf]
  %v37 = vld [vmem:[%s0 + $0x5c] sm:$0xf]
  %v38 = vld [vmem:[%s0 + $0x60] sm:$0xf]
  %v39 = vld [vmem:[%s0 + $0x64] sm:$0xf]
  %v40 = vld [vmem:[%s0 + $0x68] sm:$0xf]
  %v41 = vld [vmem:[%s0 + $0x6c] sm:$0xf]
  %v42 = vld [vmem:[%s0 + $0x70] sm:$0xf]
  %v43 = vld [vmem:[%s0 + $0x74] sm:$0xf]
  %v44 = vld [vmem:[%s0 + $0x78] sm:$0xf]
  %v45 = vld [vmem:[%s0 + $0x7c] sm:$0xf]
  %v46 = vld [vmem:[%s0 + $0x80] sm:$0xf]
  %v47 = vld [vmem:[%s0 + $0x84] sm:$0xf]
  %v48 = vld [vmem:[%s0 + $0x88] sm:$0xf]
  %v49 = vld [vmem:[%s0 + $0x8c] sm:$0xf]
  %v50 = vld [vmem:[%s0 + $0x90] sm:$0xf]
  %v51 = vld [vmem:[%s0 + $0x94] sm:$0xf]
  %v52 = vld [vmem:[%s0 + $0x98] sm:$0xf]
  %v53 = vld [vmem:[%s0 + $0x9c] sm:$0xf]
  %v54 = vld [vmem:[%s0 + $0xa0] sm:$0xf]
  %v55 = vld [vmem:[%s0 + $0xa4] sm:$0xf]
  %v56 = vld [vmem:[%s0 + $0xa8] sm:$0xf]
  %v57 = vld [vmem:[%s0 + $0xac] sm:$0xf]
  %v58 = vld [vmem:[%s0 + $0xb0] sm:$0xf]
  %v59 = vld [vmem:[%s0 + $0xb4] sm:$0xf]
  %v60 = vld [vmem:[%s0 + $0xb8] sm:$0xf]
  %v61 = vld [vmem:[%s0 + $0xbc] sm:$0xf]
  %v62 = vld [vmem:[%s0 + $0xc0] sm:$0xf]
  %v63 = vld [vmem:[%s0 + $0xc4] sm:$0xf]
  %v64 = vld [vmem:[%s0 + $0xc8] sm:$0xf]
  %v65 = vld [vmem:[%s0 + $0xcc] sm:$0xf]
  %v66 = vld [vmem:[%s0 + $0xd0] sm:$0xf]
  %v67 = vld [vmem:[%s0 + $0xd4] sm:$0xf]
  %v68 = vld [vmem:[%s0 + $0xd8] sm:$0xf]
  %v69 = vld [vmem:[%s0 + $0xdc] sm:$0xf]
  %v70 = vld [vmem:[%s0 + $0xe0] sm:$0xf]
  %v71 = vld [vmem:[%s0 + $0xe4] sm:$0xf]
  %v72 = vld [vmem:[%s0 + $0xe8] sm:$0xf]
  %v73 = vld [vmem:[%s0 + $0xec] sm:$0xf]
  %v74 = vld [vmem:[%s0 + $0xf0] sm:$0xf]
  %v75 = vld [vmem:[%s0 + $0xf4] sm:$0xf]
  %v76 = vld [vmem:[%s0 + $0xf8] sm:$0xf]
  %v77 = vld [vmem:[%s0 + $0xfc] sm:$0xf]
  %v78 = vld [vmem:[%s0 + $0x100] sm:$0xf]
  %v79 = vld [vmem:[%s0 + $0x104] sm:$0xf]
  %v80 = vld [vmem:[%s0 + $0x108] sm:$0xf]
  %v81 = vld [vmem:[%s0 + $0x10c] sm:$0xf]
  %v82 = vld [vmem:[%s0 + $0x110] sm:$0xf]
  %v83 = vld [vmem:[%s0 + $0x114] sm:$0xf]
  %v84 = vld [vmem:[%s0 + $0x118] sm:$0xf]
  %v85 = vld [vmem:[%s0 + $0x11c] sm:$0xf]
  %v86 = vunpack.c.l.bf16 %v14
  %v87 = vunpack.c.l.bf16 %v15
  %v88 = vunpack.c.l.bf16 %v16
  %v89 = vunpack.c.l.bf16 %v17
  %v90 = vunpack.c.l.bf16 %v18
  %v91 = vunpack.c.l.bf16 %v19
  %v92 = vunpack.c.l.bf16 %v20
  %v93 = vunpack.c.l.bf16 %v21
  %v94 = vunpack.c.l.bf16 %v22
  %v95 = vunpack.c.l.bf16 %v23
  %v96 = vunpack.c.l.bf16 %v24
  %v97 = vunpack.c.l.bf16 %v25
  %v98 = vunpack.c.l.bf16 %v26
  %v99 = vunpack.c.l.bf16 %v27
  %v100 = vunpack.c.l.bf16 %v28
  %v101 = vunpack.c.l.bf16 %v29
  %v102 = vunpack.c.l.bf16 %v30
  %v103 = vunpack.c.l.bf16 %v31
  %v104 = vunpack.c.l.bf16 %v32
  %v105 = vunpack.c.l.bf16 %v33
  %v106 = vunpack.c.l.bf16 %v34
  %v107 = vunpack.c.l.bf16 %v35
  %v108 = vunpack.c.l.bf16 %v36
  %v109 = vunpack.c.l.bf16 %v37
  %v110 = vunpack.c.l.bf16 %v38
  %v111 = vunpack.c.l.bf16 %v39
  %v112 = vunpack.c.l.bf16 %v40
  %v113 = vunpack.c.l.bf16 %v41
  %v114 = vunpack.c.l.bf16 %v42
  %v115 = vunpack.c.l.bf16 %v43
  %v116 = vunpack.c.l.bf16 %v44
  %v117 = vunpack.c.l.bf16 %v45
  %v118 = vunpack.c.l.bf16 %v46
  %v119 = vunpack.c.l.bf16 %v47
  %v120 = vunpack.c.l.bf16 %v48
  %v121 = vunpack.c.l.bf16 %v49
  %v122 = vunpack.c.l.bf16 %v50
  %v123 = vunpack.c.l.bf16 %v51
  %v124 = vunpack.c.l.bf16 %v52
  %v125 = vunpack.c.l.bf16 %v53
  %v126 = vunpack.c.l.bf16 %v54
  %v127 = vunpack.c.l.bf16 %v55
  %v128 = vunpack.c.l.bf16 %v56
  %v129 = vunpack.c.l.bf16 %v57
  %v130 = vunpack.c.l.bf16 %v58
  %v131 = vunpack.c.l.bf16 %v59
  %v132 = vunpack.c.l.bf16 %v60
  %v133 = vunpack.c.l.bf16 %v61
  %v134 = vunpack.c.l.bf16 %v62
  %v135 = vunpack.c.l.bf16 %v63
  %v136 = vunpack.c.l.bf16 %v64
  %v137 = vunpack.c.l.bf16 %v65
  %v138 = vunpack.c.l.bf16 %v66
  %v139 = vunpack.c.l.bf16 %v67
  %v140 = vunpack.c.l.bf16 %v68
  %v141 = vunpack.c.l.bf16 %v69
  %v142 = vunpack.c.l.bf16 %v70
  %v143 = vunpack.c.l.bf16 %v71
  %v144 = vunpack.c.l.bf16 %v72
  %v145 = vunpack.c.l.bf16 %v73
  %v146 = vunpack.c.l.bf16 %v74
  %v147 = vunpack.c.l.bf16 %v75
  %v148 = vunpack.c.l.bf16 %v76
  %v149 = vunpack.c.l.bf16 %v77
  %v150 = vunpack.c.l.bf16 %v78
  %v151 = vunpack.c.l.bf16 %v79
  %v152 = vunpack.c.l.bf16 %v80
  %v153 = vunpack.c.l.bf16 %v81
  %v154 = vunpack.c.l.bf16 %v82
  %v155 = vunpack.c.l.bf16 %v83
  %v156 = vunpack.c.l.bf16 %v84
  %v157 = vunpack.c.l.bf16 %v85
  %v158 = vld [vmem:[%s1] sm:$0x1]
  %v160 = vlaneseq
  %v161 = vshrl.u32 %v160, 7
  %v162 = vsub.s32 0, %v161
  %v163 = vrot.slane %v158, %v162
  %v165 = vmul.f32 %v86, %v163
  %v166 = vmul.f32 %v87, %v163
  %v167 = vmul.f32 %v88, %v163
  %v168 = vmul.f32 %v89, %v163
  %v169 = vmul.f32 %v90, %v163
  %v170 = vmul.f32 %v91, %v163
  %v171 = vmul.f32 %v92, %v163
  %v172 = vmul.f32 %v93, %v163
  %v173 = vmul.f32 %v94, %v163
  %v174 = vmul.f32 %v95, %v163
  %v175 = vmul.f32 %v96, %v163
  %v176 = vmul.f32 %v97, %v163
  %v177 = vmul.f32 %v98, %v163
  %v178 = vmul.f32 %v99, %v163
  %v179 = vmul.f32 %v100, %v163
  %v180 = vmul.f32 %v101, %v163
  %v181 = vmul.f32 %v102, %v163
  %v182 = vmul.f32 %v103, %v163
  %v183 = vmul.f32 %v104, %v163
  %v184 = vmul.f32 %v105, %v163
  %v185 = vmul.f32 %v106, %v163
  %v186 = vmul.f32 %v107, %v163
  %v187 = vmul.f32 %v108, %v163
  %v188 = vmul.f32 %v109, %v163
  %v189 = vmul.f32 %v110, %v163
  %v190 = vmul.f32 %v111, %v163
  %v191 = vmul.f32 %v112, %v163
  %v192 = vmul.f32 %v113, %v163
  %v193 = vmul.f32 %v114, %v163
  %v194 = vmul.f32 %v115, %v163
  %v195 = vmul.f32 %v116, %v163
  %v196 = vmul.f32 %v117, %v163
  %v197 = vmul.f32 %v118, %v163
  %v198 = vmul.f32 %v119, %v163
  %v199 = vmul.f32 %v120, %v163
  %v200 = vmul.f32 %v121, %v163
  %v201 = vmul.f32 %v122, %v163
  %v202 = vmul.f32 %v123, %v163
  %v203 = vmul.f32 %v124, %v163
  %v204 = vmul.f32 %v125, %v163
  %v205 = vmul.f32 %v126, %v163
  %v206 = vmul.f32 %v127, %v163
  %v207 = vmul.f32 %v128, %v163
  %v208 = vmul.f32 %v129, %v163
  %v209 = vmul.f32 %v130, %v163
  %v210 = vmul.f32 %v131, %v163
  %v211 = vmul.f32 %v132, %v163
  %v212 = vmul.f32 %v133, %v163
  %v213 = vmul.f32 %v134, %v163
  %v214 = vmul.f32 %v135, %v163
  %v215 = vmul.f32 %v136, %v163
  %v216 = vmul.f32 %v137, %v163
  %v217 = vmul.f32 %v138, %v163
  %v218 = vmul.f32 %v139, %v163
  %v219 = vmul.f32 %v140, %v163
  %v220 = vmul.f32 %v141, %v163
  %v221 = vmul.f32 %v142, %v163
  %v222 = vmul.f32 %v143, %v163
  %v223 = vmul.f32 %v144, %v163
  %v224 = vmul.f32 %v145, %v163
  %v225 = vmul.f32 %v146, %v163
  %v226 = vmul.f32 %v147, %v163
  %v227 = vmul.f32 %v148, %v163
  %v228 = vmul.f32 %v149, %v163
  %v229 = vmul.f32 %v150, %v163
  %v230 = vmul.f32 %v151, %v163
  %v231 = vmul.f32 %v152, %v163
  %v232 = vmul.f32 %v153, %v163
  %v233 = vmul.f32 %v154, %v163
  %v234 = vmul.f32 %v155, %v163
  %v235 = vmul.f32 %v156, %v163
  %v236 = vmul.f32 %v157, %v163
  %v237 = vld [vmem:[%s2] sm:$0x1]
  %v239 = vlaneseq
  %v240 = vshrl.u32 %v239, 7
  %v241 = vsub.s32 0, %v240
  %v242 = vrot.slane %v237, %v241
  %v244 = vadd.f32 %v165, %v242
  %v245 = vadd.f32 %v166, %v242
  %v246 = vadd.f32 %v167, %v242
  %v247 = vadd.f32 %v168, %v242
  %v248 = vadd.f32 %v169, %v242
  %v249 = vadd.f32 %v170, %v242
  %v250 = vadd.f32 %v171, %v242
  %v251 = vadd.f32 %v172, %v242
  %v252 = vadd.f32 %v173, %v242
  %v253 = vadd.f32 %v174, %v242
  %v254 = vadd.f32 %v175, %v242
  %v255 = vadd.f32 %v176, %v242
  %v256 = vadd.f32 %v177, %v242
  %v257 = vadd.f32 %v178, %v242
  %v258 = vadd.f32 %v179, %v242
  %v259 = vadd.f32 %v180, %v242
  %v260 = vadd.f32 %v181, %v242
  %v261 = vadd.f32 %v182, %v242
  %v262 = vadd.f32 %v183, %v242
  %v263 = vadd.f32 %v184, %v242
  %v264 = vadd.f32 %v185, %v242
  %v265 = vadd.f32 %v186, %v242
  %v266 = vadd.f32 %v187, %v242
  %v267 = vadd.f32 %v188, %v242
  %v268 = vadd.f32 %v189, %v242
  %v269 = vadd.f32 %v190, %v242
  %v270 = vadd.f32 %v191, %v242
  %v271 = vadd.f32 %v192, %v242
  %v272 = vadd.f32 %v193, %v242
  %v273 = vadd.f32 %v194, %v242
  %v274 = vadd.f32 %v195, %v242
  %v275 = vadd.f32 %v196, %v242
  %v276 = vadd.f32 %v197, %v242
  %v277 = vadd.f32 %v198, %v242
  %v278 = vadd.f32 %v199, %v242
  %v279 = vadd.f32 %v200, %v242
  %v280 = vadd.f32 %v201, %v242
  %v281 = vadd.f32 %v202, %v242
  %v282 = vadd.f32 %v203, %v242
  %v283 = vadd.f32 %v204, %v242
  %v284 = vadd.f32 %v205, %v242
  %v285 = vadd.f32 %v206, %v242
  %v286 = vadd.f32 %v207, %v242
  %v287 = vadd.f32 %v208, %v242
  %v288 = vadd.f32 %v209, %v242
  %v289 = vadd.f32 %v210, %v242
  %v290 = vadd.f32 %v211, %v242
  %v291 = vadd.f32 %v212, %v242
  %v292 = vadd.f32 %v213, %v242
  %v293 = vadd.f32 %v214, %v242
  %v294 = vadd.f32 %v215, %v242
  %v295 = vadd.f32 %v216, %v242
  %v296 = vadd.f32 %v217, %v242
  %v297 = vadd.f32 %v218, %v242
  %v298 = vadd.f32 %v219, %v242
  %v299 = vadd.f32 %v220, %v242
  %v300 = vadd.f32 %v221, %v242
  %v301 = vadd.f32 %v222, %v242
  %v302 = vadd.f32 %v223, %v242
  %v303 = vadd.f32 %v224, %v242
  %v304 = vadd.f32 %v225, %v242
  %v305 = vadd.f32 %v226, %v242
  %v306 = vadd.f32 %v227, %v242
  %v307 = vadd.f32 %v228, %v242
  %v308 = vadd.f32 %v229, %v242
  %v309 = vadd.f32 %v230, %v242
  %v310 = vadd.f32 %v231, %v242
  %v311 = vadd.f32 %v232, %v242
  %v312 = vadd.f32 %v233, %v242
  %v313 = vadd.f32 %v234, %v242
  %v314 = vadd.f32 %v235, %v242
  %v315 = vadd.f32 %v236, %v242
  %v316 = vmax.f32 %v244, 0.0
  %v317 = vmax.f32 %v245, 0.0
  %v318 = vmax.f32 %v246, 0.0
  %v319 = vmax.f32 %v247, 0.0
  %v320 = vmax.f32 %v248, 0.0
  %v321 = vmax.f32 %v249, 0.0
  %v322 = vmax.f32 %v250, 0.0
  %v323 = vmax.f32 %v251, 0.0
  %v324 = vmax.f32 %v252, 0.0
  %v325 = vmax.f32 %v253, 0.0
  %v326 = vmax.f32 %v254, 0.0
  %v327 = vmax.f32 %v255, 0.0
  %v328 = vmax.f32 %v256, 0.0
  %v329 = vmax.f32 %v257, 0.0
  %v330 = vmax.f32 %v258, 0.0
  %v331 = vmax.f32 %v259, 0.0
  %v332 = vmax.f32 %v260, 0.0
  %v333 = vmax.f32 %v261, 0.0
  %v334 = vmax.f32 %v262, 0.0
  %v335 = vmax.f32 %v263, 0.0
  %v336 = vmax.f32 %v264, 0.0
  %v337 = vmax.f32 %v265, 0.0
  %v338 = vmax.f32 %v266, 0.0
  %v339 = vmax.f32 %v267, 0.0
  %v340 = vmax.f32 %v268, 0.0
  %v341 = vmax.f32 %v269, 0.0
  %v342 = vmax.f32 %v270, 0.0
  %v343 = vmax.f32 %v271, 0.0
  %v344 = vmax.f32 %v272, 0.0
  %v345 = vmax.f32 %v273, 0.0
  %v346 = vmax.f32 %v274, 0.0
  %v347 = vmax.f32 %v275, 0.0
  %v348 = vmax.f32 %v276, 0.0
  %v349 = vmax.f32 %v277, 0.0
  %v350 = vmax.f32 %v278, 0.0
  %v351 = vmax.f32 %v279, 0.0
  %v352 = vmax.f32 %v280, 0.0
  %v353 = vmax.f32 %v281, 0.0
  %v354 = vmax.f32 %v282, 0.0
  %v355 = vmax.f32 %v283, 0.0
  %v356 = vmax.f32 %v284, 0.0
  %v357 = vmax.f32 %v285, 0.0
  %v358 = vmax.f32 %v286, 0.0
  %v359 = vmax.f32 %v287, 0.0
  %v360 = vmax.f32 %v288, 0.0
  %v361 = vmax.f32 %v289, 0.0
  %v362 = vmax.f32 %v290, 0.0
  %v363 = vmax.f32 %v291, 0.0
  %v364 = vmax.f32 %v292, 0.0
  %v365 = vmax.f32 %v293, 0.0
  %v366 = vmax.f32 %v294, 0.0
  %v367 = vmax.f32 %v295, 0.0
  %v368 = vmax.f32 %v296, 0.0
  %v369 = vmax.f32 %v297, 0.0
  %v370 = vmax.f32 %v298, 0.0
  %v371 = vmax.f32 %v299, 0.0
  %v372 = vmax.f32 %v300, 0.0
  %v373 = vmax.f32 %v301, 0.0
  %v374 = vmax.f32 %v302, 0.0
  %v375 = vmax.f32 %v303, 0.0
  %v376 = vmax.f32 %v304, 0.0
  %v377 = vmax.f32 %v305, 0.0
  %v378 = vmax.f32 %v306, 0.0
  %v379 = vmax.f32 %v307, 0.0
  %v380 = vmax.f32 %v308, 0.0
  %v381 = vmax.f32 %v309, 0.0
  %v382 = vmax.f32 %v310, 0.0
  %v383 = vmax.f32 %v311, 0.0
  %v384 = vmax.f32 %v312, 0.0
  %v385 = vmax.f32 %v313, 0.0
  %v386 = vmax.f32 %v314, 0.0
  %v387 = vmax.f32 %v315, 0.0
  %v388 = vpack.c.bf16 %v317, %v316
  %v389 = vpack.c.bf16 %v319, %v318
  %v390 = vpack.c.bf16 %v321, %v320
  %v391 = vpack.c.bf16 %v323, %v322
  %v392 = vpack.c.bf16 %v325, %v324
  %v393 = vpack.c.bf16 %v327, %v326
  %v394 = vpack.c.bf16 %v329, %v328
  %v395 = vpack.c.bf16 %v331, %v330
  %v396 = vpack.c.bf16 %v333, %v332
  %v397 = vpack.c.bf16 %v335, %v334
  %v398 = vpack.c.bf16 %v337, %v336
  %v399 = vpack.c.bf16 %v339, %v338
  %v400 = vpack.c.bf16 %v341, %v340
  %v401 = vpack.c.bf16 %v343, %v342
  %v402 = vpack.c.bf16 %v345, %v344
  %v403 = vpack.c.bf16 %v347, %v346
  %v404 = vpack.c.bf16 %v349, %v348
  %v405 = vpack.c.bf16 %v351, %v350
  %v406 = vpack.c.bf16 %v353, %v352
  %v407 = vpack.c.bf16 %v355, %v354
  %v408 = vpack.c.bf16 %v357, %v356
  %v409 = vpack.c.bf16 %v359, %v358
  %v410 = vpack.c.bf16 %v361, %v360
  %v411 = vpack.c.bf16 %v363, %v362
  %v412 = vpack.c.bf16 %v365, %v364
  %v413 = vpack.c.bf16 %v367, %v366
  %v414 = vpack.c.bf16 %v369, %v368
  %v415 = vpack.c.bf16 %v371, %v370
  %v416 = vpack.c.bf16 %v373, %v372
  %v417 = vpack.c.bf16 %v375, %v374
  %v418 = vpack.c.bf16 %v377, %v376
  %v419 = vpack.c.bf16 %v379, %v378
  %v420 = vpack.c.bf16 %v381, %v380
  %v421 = vpack.c.bf16 %v383, %v382
  %v422 = vpack.c.bf16 %v385, %v384
  %v423 = vpack.c.bf16 %v387, %v386
  %v460 = vunpack.c.l.b16 %v388
  %v461 = vunpack.c.h.b16 %v388
  %v462 = vunpack.c.l.b16 %v389
  %v463 = vunpack.c.h.b16 %v389
  %v464 = vunpack.c.l.b16 %v390
  %v465 = vunpack.c.h.b16 %v390
  %v466 = vunpack.c.l.b16 %v391
  %v467 = vunpack.c.h.b16 %v391
  %v468 = vunpack.c.l.b16 %v392
  %v469 = vunpack.c.h.b16 %v392
  %v470 = vunpack.c.l.b16 %v393
  %v471 = vunpack.c.h.b16 %v393
  %v472 = vunpack.c.l.b16 %v394
  %v473 = vunpack.c.h.b16 %v394
  %v474 = vunpack.c.l.b16 %v395
  %v475 = vunpack.c.h.b16 %v395
  %v476 = vunpack.c.l.b16 %v396
  %v477 = vunpack.c.h.b16 %v396
  %v478 = vunpack.c.l.b16 %v397
  %v479 = vunpack.c.h.b16 %v397
  %v480 = vunpack.c.l.b16 %v398
  %v481 = vunpack.c.h.b16 %v398
  %v482 = vunpack.c.l.b16 %v399
  %v483 = vunpack.c.h.b16 %v399
  %v484 = vunpack.c.l.b16 %v400
  %v485 = vunpack.c.h.b16 %v400
  %v486 = vunpack.c.l.b16 %v401
  %v487 = vunpack.c.h.b16 %v401
  %v488 = vunpack.c.l.b16 %v402
  %v489 = vunpack.c.h.b16 %v402
  %v490 = vunpack.c.l.b16 %v403
  %v491 = vunpack.c.h.b16 %v403
  %v492 = vunpack.c.l.b16 %v404
  %v493 = vunpack.c.h.b16 %v404
  %v494 = vunpack.c.l.b16 %v405
  %v495 = vunpack.c.h.b16 %v405
  %v496 = vunpack.c.l.b16 %v406
  %v497 = vunpack.c.h.b16 %v406
  %v498 = vunpack.c.l.b16 %v407
  %v499 = vunpack.c.h.b16 %v407
  %v500 = vunpack.c.l.b16 %v408
  %v501 = vunpack.c.h.b16 %v408
  %v502 = vunpack.c.l.b16 %v409
  %v503 = vunpack.c.h.b16 %v409
  %v504 = vunpack.c.l.b16 %v410
  %v505 = vunpack.c.h.b16 %v410
  %v506 = vunpack.c.l.b16 %v411
  %v507 = vunpack.c.h.b16 %v411
  %v508 = vunpack.c.l.b16 %v412
  %v509 = vunpack.c.h.b16 %v412
  %v510 = vunpack.c.l.b16 %v413
  %v511 = vunpack.c.h.b16 %v413
  %v512 = vunpack.c.l.b16 %v414
  %v513 = vunpack.c.h.b16 %v414
  %v514 = vunpack.c.l.b16 %v415
  %v515 = vunpack.c.h.b16 %v415
  %v516 = vunpack.c.l.b16 %v416
  %v517 = vunpack.c.h.b16 %v416
  %v518 = vunpack.c.l.b16 %v417
  %v519 = vunpack.c.h.b16 %v417
  %v520 = vunpack.c.l.b16 %v418
  %v521 = vunpack.c.h.b16 %v418
  %v522 = vunpack.c.l.b16 %v419
  %v523 = vunpack.c.h.b16 %v419
  %v524 = vunpack.c.l.b16 %v420
  %v525 = vunpack.c.h.b16 %v420
  %v526 = vunpack.c.l.b16 %v421
  %v527 = vunpack.c.h.b16 %v421
  %v528 = vunpack.c.l.b16 %v422
  %v529 = vunpack.c.h.b16 %v422
  %v530 = vunpack.c.l.b16 %v423
  %v531 = vunpack.c.h.b16 %v423
  %v532 = vpack.c.b16 %v460, %v460
  %v533 = vpack.c.b16 %v461, %v461
  %v534 = vpack.c.b16 %v462, %v462
  %v535 = vpack.c.b16 %v463, %v463
  %v536 = vpack.c.b16 %v464, %v464
  %v537 = vpack.c.b16 %v465, %v465
  %v538 = vpack.c.b16 %v466, %v466
  %v539 = vpack.c.b16 %v467, %v467
  %v540 = vpack.c.b16 %v468, %v468
  %v541 = vpack.c.b16 %v469, %v469
  %v542 = vpack.c.b16 %v470, %v470
  %v543 = vpack.c.b16 %v471, %v471
  %v544 = vpack.c.b16 %v472, %v472
  %v545 = vpack.c.b16 %v473, %v473
  %v546 = vpack.c.b16 %v474, %v474
  %v547 = vpack.c.b16 %v475, %v475
  %v548 = vpack.c.b16 %v476, %v476
  %v549 = vpack.c.b16 %v477, %v477
  %v550 = vpack.c.b16 %v478, %v478
  %v551 = vpack.c.b16 %v479, %v479
  %v552 = vpack.c.b16 %v480, %v480
  %v553 = vpack.c.b16 %v481, %v481
  %v554 = vpack.c.b16 %v482, %v482
  %v555 = vpack.c.b16 %v483, %v483
  %v556 = vpack.c.b16 %v484, %v484
  %v557 = vpack.c.b16 %v485, %v485
  %v558 = vpack.c.b16 %v486, %v486
  %v559 = vpack.c.b16 %v487, %v487
  %v560 = vpack.c.b16 %v488, %v488
  %v561 = vpack.c.b16 %v489, %v489
  %v562 = vpack.c.b16 %v490, %v490
  %v563 = vpack.c.b16 %v491, %v491
  %v564 = vpack.c.b16 %v492, %v492
  %v565 = vpack.c.b16 %v493, %v493
  %v566 = vpack.c.b16 %v494, %v494
  %v567 = vpack.c.b16 %v495, %v495
  %v568 = vpack.c.b16 %v496, %v496
  %v569 = vpack.c.b16 %v497, %v497
  %v570 = vpack.c.b16 %v498, %v498
  %v571 = vpack.c.b16 %v499, %v499
  %v572 = vpack.c.b16 %v500, %v500
  %v573 = vpack.c.b16 %v501, %v501
  %v574 = vpack.c.b16 %v502, %v502
  %v575 = vpack.c.b16 %v503, %v503
  %v576 = vpack.c.b16 %v504, %v504
  %v577 = vpack.c.b16 %v505, %v505
  %v578 = vpack.c.b16 %v506, %v506
  %v579 = vpack.c.b16 %v507, %v507
  %v580 = vpack.c.b16 %v508, %v508
  %v581 = vpack.c.b16 %v509, %v509
  %v582 = vpack.c.b16 %v510, %v510
  %v583 = vpack.c.b16 %v511, %v511
  %v584 = vpack.c.b16 %v512, %v512
  %v585 = vpack.c.b16 %v513, %v513
  %v586 = vpack.c.b16 %v514, %v514
  %v587 = vpack.c.b16 %v515, %v515
  %v588 = vpack.c.b16 %v516, %v516
  %v589 = vpack.c.b16 %v517, %v517
  %v590 = vpack.c.b16 %v518, %v518
  %v591 = vpack.c.b16 %v519, %v519
  %v592 = vpack.c.b16 %v520, %v520
  %v593 = vpack.c.b16 %v521, %v521
  %v594 = vpack.c.b16 %v522, %v522
  %v595 = vpack.c.b16 %v523, %v523
  %v596 = vpack.c.b16 %v524, %v524
  %v597 = vpack.c.b16 %v525, %v525
  %v598 = vpack.c.b16 %v526, %v526
  %v599 = vpack.c.b16 %v527, %v527
  %v600 = vpack.c.b16 %v528, %v528
  %v601 = vpack.c.b16 %v529, %v529
  %v602 = vpack.c.b16 %v530, %v530
  %v603 = vpack.c.b16 %v531, %v531
  %676 = vst [vmem:[%s3] sm:$0xf] %v532
  %677 = vst [vmem:[%s3 + $0x4] sm:$0xf] %v533
  %678 = vst [vmem:[%s3 + $0x8] sm:$0xf] %v534
  %679 = vst [vmem:[%s3 + $0xc] sm:$0xf] %v535
  %680 = vst [vmem:[%s3 + $0x10] sm:$0xf] %v536
  %681 = vst [vmem:[%s3 + $0x14] sm:$0xf] %v537
  %682 = vst [vmem:[%s3 + $0x18] sm:$0xf] %v538
  %683 = vst [vmem:[%s3 + $0x1c] sm:$0xf] %v539
  %684 = vst [vmem:[%s3 + $0x20] sm:$0xf] %v540
  %685 = vst [vmem:[%s3 + $0x24] sm:$0xf] %v541
  %686 = vst [vmem:[%s3 + $0x28] sm:$0xf] %v542
  %687 = vst [vmem:[%s3 + $0x2c] sm:$0xf] %v543
  %688 = vst [vmem:[%s3 + $0x30] sm:$0xf] %v544
  %689 = vst [vmem:[%s3 + $0x34] sm:$0xf] %v545
  %690 = vst [vmem:[%s3 + $0x38] sm:$0xf] %v546
  %691 = vst [vmem:[%s3 + $0x3c] sm:$0xf] %v547
  %692 = vst [vmem:[%s3 + $0x40] sm:$0xf] %v548
  %693 = vst [vmem:[%s3 + $0x44] sm:$0xf] %v549
  %694 = vst [vmem:[%s3 + $0x48] sm:$0xf] %v550
  %695 = vst [vmem:[%s3 + $0x4c] sm:$0xf] %v551
  %696 = vst [vmem:[%s3 + $0x50] sm:$0xf] %v552
  %697 = vst [vmem:[%s3 + $0x54] sm:$0xf] %v553
  %698 = vst [vmem:[%s3 + $0x58] sm:$0xf] %v554
  %699 = vst [vmem:[%s3 + $0x5c] sm:$0xf] %v555
  %700 = vst [vmem:[%s3 + $0x60] sm:$0xf] %v556
  %701 = vst [vmem:[%s3 + $0x64] sm:$0xf] %v557
  %702 = vst [vmem:[%s3 + $0x68] sm:$0xf] %v558
  %703 = vst [vmem:[%s3 + $0x6c] sm:$0xf] %v559
  %704 = vst [vmem:[%s3 + $0x70] sm:$0xf] %v560
  %705 = vst [vmem:[%s3 + $0x74] sm:$0xf] %v561
  %706 = vst [vmem:[%s3 + $0x78] sm:$0xf] %v562
  %707 = vst [vmem:[%s3 + $0x7c] sm:$0xf] %v563
  %708 = vst [vmem:[%s3 + $0x80] sm:$0xf] %v564
  %709 = vst [vmem:[%s3 + $0x84] sm:$0xf] %v565
  %710 = vst [vmem:[%s3 + $0x88] sm:$0xf] %v566
  %711 = vst [vmem:[%s3 + $0x8c] sm:$0xf] %v567
  %712 = vst [vmem:[%s3 + $0x90] sm:$0xf] %v568
  %713 = vst [vmem:[%s3 + $0x94] sm:$0xf] %v569
  %714 = vst [vmem:[%s3 + $0x98] sm:$0xf] %v570
  %715 = vst [vmem:[%s3 + $0x9c] sm:$0xf] %v571
  %716 = vst [vmem:[%s3 + $0xa0] sm:$0xf] %v572
  %717 = vst [vmem:[%s3 + $0xa4] sm:$0xf] %v573
  %718 = vst [vmem:[%s3 + $0xa8] sm:$0xf] %v574
  %719 = vst [vmem:[%s3 + $0xac] sm:$0xf] %v575
  %720 = vst [vmem:[%s3 + $0xb0] sm:$0xf] %v576
  %721 = vst [vmem:[%s3 + $0xb4] sm:$0xf] %v577
  %722 = vst [vmem:[%s3 + $0xb8] sm:$0xf] %v578
  %723 = vst [vmem:[%s3 + $0xbc] sm:$0xf] %v579
  %724 = vst [vmem:[%s3 + $0xc0] sm:$0xf] %v580
  %725 = vst [vmem:[%s3 + $0xc4] sm:$0xf] %v581
  %726 = vst [vmem:[%s3 + $0xc8] sm:$0xf] %v582
  %727 = vst [vmem:[%s3 + $0xcc] sm:$0xf] %v583
  %728 = vst [vmem:[%s3 + $0xd0] sm:$0xf] %v584
  %729 = vst [vmem:[%s3 + $0xd4] sm:$0xf] %v585
  %730 = vst [vmem:[%s3 + $0xd8] sm:$0xf] %v586
  %731 = vst [vmem:[%s3 + $0xdc] sm:$0xf] %v587
  %732 = vst [vmem:[%s3 + $0xe0] sm:$0xf] %v588
  %733 = vst [vmem:[%s3 + $0xe4] sm:$0xf] %v589
  %734 = vst [vmem:[%s3 + $0xe8] sm:$0xf] %v590
  %735 = vst [vmem:[%s3 + $0xec] sm:$0xf] %v591
  %736 = vst [vmem:[%s3 + $0xf0] sm:$0xf] %v592
  %737 = vst [vmem:[%s3 + $0xf4] sm:$0xf] %v593
  %738 = vst [vmem:[%s3 + $0xf8] sm:$0xf] %v594
  %739 = vst [vmem:[%s3 + $0xfc] sm:$0xf] %v595
  %740 = vst [vmem:[%s3 + $0x100] sm:$0xf] %v596
  %741 = vst [vmem:[%s3 + $0x104] sm:$0xf] %v597
  %742 = vst [vmem:[%s3 + $0x108] sm:$0xf] %v598
  %743 = vst [vmem:[%s3 + $0x10c] sm:$0xf] %v599
  %744 = vst [vmem:[%s3 + $0x110] sm:$0xf] %v600
  %745 = vst [vmem:[%s3 + $0x114] sm:$0xf] %v601
  %746 = vst [vmem:[%s3 + $0x118] sm:$0xf] %v602
  %747 = vst [vmem:[%s3 + $0x11c] sm:$0xf] %v603
  // Predicated region
  $region14: #{basic_block_forward.6} parent=0 // pred_check
    _
  $region15: #{basic_block_forward.6} parent=0 // pred_check_branch
    %749 = sbr.rel (0) target = $region17
  $region16: #{basic_block_forward.6} parent=0 // pred_region
    _
  $region17: #{basic_block_forward.6} parent=0 // pred_fallthru
    _
  // Predicated region
  $region18: #{basic_block_forward.6} parent=0 // pred_check
    _
  $region19: #{basic_block_forward.6} parent=0 // pred_check_branch
    %751 = sbr.rel (0) target = $region21
  $region20: #{basic_block_forward.6} parent=0 // pred_region
    _
  $region21: #{basic_block_forward.6} parent=0 // pred_fallthru
    _

// kernel: basic_block_forward.5
$region0: #{basic_block_forward.5}
  #allocation0 [shape = 'u32[]', space=smem, size = 0x4, offset = 0x4, fixed_abs, tag = 'smem constant byte address 0x4 - core index']
  #allocation1 [shape = 'u32[144,128]{1,0:T(1,128)}', space=vmem, size = 0x12000, scoped, tag = 'internal scratch']
  %s0 = inlined_call_operand.vmem [shape: bf16[1,672,128], index: 0, kind: input, shape index: {}]
  %s1 = inlined_call_operand.vmem [shape: bf16[1152,128], index: 1, kind: input, shape index: {}]
  %s2 = inlined_call_operand.vmem [shape: f32[288,1], index: 2, kind: input, shape index: {}]
  %s3 = inlined_call_operand.vmem [shape: bf16[2,288,128], index: 3, kind: output, shape index: {0}]
  %s4 = inlined_call_operand.vmem [shape: f32[16,128], index: 4, kind: output, shape index: {1}]
  %s5 = inlined_call_operand.vmem [shape: f32[16,128], index: 5, kind: output, shape index: {2}]
  %6 = xla_tuple %s3, %s4, %s5
  %s7 = sld [smem:[#allocation0]]
  $region61: #{basic_block_forward.5} parent=0
    _
  %s9 = ssub.s32 1, %s7
  %s10 = scalar_select 0, %s9, %s7
  loop: start=0, step=1, limit=4
  $region2: #{basic_block_forward.5} parent=0 // loop_pre_header
    _
  $region3: #{basic_block_forward.5} parent=0 // loop_header
    %s12 = sphi 0, %s16
    %p13 = scmp.ge.s32.totalorder %s12, 4
    %s19 = sphi 0, %s31
    %s20 = sphi 0, %s27
    %s21 = sphi 0, %s19
    %s22 = sphi 0, %s20
    %s23 = sphi 0, %s21
    %s24 = sphi 0, %s22
    %s36 = sphi 0, %s38
    %s39 = sphi 0, %s36
    %s40 = sphi 0, %s39
    %s56 = sphi 0, %s40
    %s60 = sphi 0, %s60
    %s62 = sphi 0, %s60
    %s63 = sphi 0, %s62
    %s77 = sphi 0, %s63
    %s83 = sphi 0, %s85
    %s86 = sphi 0, %s83
    %s87 = sphi 0, %s86
    %s103 = sphi 0, %s87
    %s111 = sphi 0, %s113
    %s114 = sphi 0, %s111
    %s115 = sphi 0, %s114
    %s131 = sphi 0, %s115
    %s139 = sphi 0, %s141
    %s142 = sphi 0, %s139
    %s143 = sphi 0, %s142
    %s159 = sphi 0, %s143
    %s167 = sphi 0, %s169
    %s170 = sphi 0, %s167
    %s171 = sphi 0, %s170
    %s187 = sphi 0, %s171
  $region4: #{basic_block_forward.5} parent=0 // loop_header_branch
    %15 = sbr.rel (%p13) target = $region8
  $region5: #{basic_block_forward.5} parent=0 // loop_body
    %s17 = ssub.s32 %s12, 1
    %s18 = ssub.s32 %s12, 2
    %s25 = sadd.s32 1, %s20
    %p26 = scmp.ge.s32.totalorder %s25, 1
    %s27 = scalar_select %p26, 0, %s25
    %s28 = sadd.s32 1, %s19
    %s29 = scalar_select %p26, %s28, %s19
    %p30 = scmp.ge.s32.totalorder %s29, 2
    %s31 = scalar_select %p30, 0, %s29
    %s32 = sadd.s32 %s19, %s20
    %s33 = sadd.s32 %s31, %s27
    %s34 = ssub.s32 %s32, %s33
    %p35 = scmp.eq.s32.totalorder %s34, 0
    %s37 = sadd.s32 %s36, 1
    %s38 = scalar_select %p35, %s36, %s37
    %p41 = pneg %p35
    %p42 = scmp.eq.s32.totalorder %s12, 1
    %p43 = por %p41, %p42
    %p44 = scmp.ne.s32.totalorder %s36, %s39
    %p45 = scmp.eq.s32.totalorder %s12, 0
    %p46 = por %p44, %p45
    %p47 = scmp.ne.s32.totalorder %s36, %s39
    %p48 = scmp.eq.s32.totalorder %s17, 1
    %p49 = por %p47, %p48
    %p50 = scmp.ne.s32.totalorder %s39, %s40
    %p51 = scmp.eq.s32.totalorder %s17, 0
    %p52 = por %p50, %p51
    %p53 = scmp.ne.s32.totalorder %s39, %s40
    %p54 = scmp.eq.s32.totalorder %s18, 1
    %p55 = por %p53, %p54
    %p57 = scmp.ne.s32.totalorder %s40, %s56
    %p58 = scmp.eq.s32.totalorder %s18, 0
    %p59 = por %p57, %p58
    %s61 = sadd.s32 %s60, 1
    %p64 = scmp.eq.s32.totalorder %s12, 1
    %p65 = scmp.ne.s32.totalorder %s60, %s62
    %p66 = scmp.eq.s32.totalorder %s12, 0
    %p67 = por %p65, %p66
    %p68 = scmp.ne.s32.totalorder %s60, %s62
    %p69 = scmp.eq.s32.totalorder %s17, 1
    %p70 = por %p68, %p69
    %p71 = scmp.ne.s32.totalorder %s62, %s63
    %p72 = scmp.eq.s32.totalorder %s17, 0
    %p73 = por %p71, %p72
    %p74 = scmp.ne.s32.totalorder %s62, %s63
    %p75 = scmp.eq.s32.totalorder %s18, 1
    %p76 = por %p74, %p75
    %p78 = scmp.ne.s32.totalorder %s63, %s77
    %p79 = scmp.eq.s32.totalorder %s18, 0
    %p80 = por %p78, %p79
    %s81 = ssub.s32 %s20, %s27
    %p82 = scmp.eq.s32.totalorder %s81, 0
    %s84 = sadd.s32 %s83, 1
    %s85 = scalar_select %p82, %s83, %s84
    %p88 = pneg %p82
    %p89 = scmp.eq.s32.totalorder %s12, 1
    %p90 = por %p88, %p89
    %p91 = scmp.ne.s32.totalorder %s83, %s86
    %p92 = scmp.eq.s32.totalorder %s12, 0
    %p93 = por %p91, %p92
    %p94 = scmp.ne.s32.totalorder %s83, %s86
    %p95 = scmp.eq.s32.totalorder %s17, 1
    %p96 = por %p94, %p95
    %p97 = scmp.ne.s32.totalorder %s86, %s87
    %p98 = scmp.eq.s32.totalorder %s17, 0
    %p99 = por %p97, %p98
    %p100 = scmp.ne.s32.totalorder %s86, %s87
    %p101 = scmp.eq.s32.totalorder %s18, 1
    %p102 = por %p100, %p101
    %p104 = scmp.ne.s32.totalorder %s87, %s103
    %p105 = scmp.eq.s32.totalorder %s18, 0
    %p106 = por %p104, %p105
    %s107 = ssub.s32 %s19, %s31
    %s108 = ssub.s32 %s20, %s27
    %s109 = sor.u32 %s107, %s108
    %p110 = scmp.eq.s32.totalorder %s109, 0
    %s112 = sadd.s32 %s111, 1
    %s113 = scalar_select %p110, %s111, %s112
    %p116 = pneg %p110
    %p117 = scmp.eq.s32.totalorder %s12, 1
    %p118 = por %p116, %p117
    %p119 = scmp.ne.s32.totalorder %s111, %s114
    %p120 = scmp.eq.s32.totalorder %s12, 0
    %p121 = por %p119, %p120
    %p122 = scmp.ne.s32.totalorder %s111, %s114
    %p123 = scmp.eq.s32.totalorder %s17, 1
    %p124 = por %p122, %p123
    %p125 = scmp.ne.s32.totalorder %s114, %s115
    %p126 = scmp.eq.s32.totalorder %s17, 0
    %p127 = por %p125, %p126
    %p128 = scmp.ne.s32.totalorder %s114, %s115
    %p129 = scmp.eq.s32.totalorder %s18, 1
    %p130 = por %p128, %p129
    %p132 = scmp.ne.s32.totalorder %s115, %s131
    %p133 = scmp.eq.s32.totalorder %s18, 0
    %p134 = por %p132, %p133
    %s135 = sadd.s32 %s19, %s20
    %s136 = sadd.s32 %s31, %s27
    %s137 = ssub.s32 %s135, %s136
    %p138 = scmp.eq.s32.totalorder %s137, 0
    %s140 = sadd.s32 %s139, 1
    %s141 = scalar_select %p138, %s139, %s140
    %p144 = pneg %p138
    %p145 = scmp.eq.s32.totalorder %s12, 1
    %p146 = por %p144, %p145
    %p147 = scmp.ne.s32.totalorder %s139, %s142
    %p148 = scmp.eq.s32.totalorder %s12, 0
    %p149 = por %p147, %p148
    %p150 = scmp.ne.s32.totalorder %s139, %s142
    %p151 = scmp.eq.s32.totalorder %s17, 1
    %p152 = por %p150, %p151
    %p153 = scmp.ne.s32.totalorder %s142, %s143
    %p154 = scmp.eq.s32.totalorder %s17, 0
    %p155 = por %p153, %p154
    %p156 = scmp.ne.s32.totalorder %s142, %s143
    %p157 = scmp.eq.s32.totalorder %s18, 1
    %p158 = por %p156, %p157
    %p160 = scmp.ne.s32.totalorder %s143, %s159
    %p161 = scmp.eq.s32.totalorder %s18, 0
    %p162 = por %p160, %p161
    %s163 = sadd.s32 %s19, %s20
    %s164 = sadd.s32 %s31, %s27
    %s165 = ssub.s32 %s163, %s164
    %p166 = scmp.eq.s32.totalorder %s165, 0
    %s168 = sadd.s32 %s167, 1
    %s169 = scalar_select %p166, %s167, %s168
    %p172 = pneg %p166
    %p173 = scmp.eq.s32.totalorder %s12, 1
    %p174 = por %p172, %p173
    %p175 = scmp.ne.s32.totalorder %s167, %s170
    %p176 = scmp.eq.s32.totalorder %s12, 0
    %p177 = por %p175, %p176
    %p178 = scmp.ne.s32.totalorder %s167, %s170
    %p179 = scmp.eq.s32.totalorder %s17, 1
    %p180 = por %p178, %p179
    %p181 = scmp.ne.s32.totalorder %s170, %s171
    %p182 = scmp.eq.s32.totalorder %s17, 0
    %p183 = por %p181, %p182
    %p184 = scmp.ne.s32.totalorder %s170, %s171
    %p185 = scmp.eq.s32.totalorder %s18, 1
    %p186 = por %p184, %p185
    %p188 = scmp.ne.s32.totalorder %s171, %s187
    %p189 = scmp.eq.s32.totalorder %s18, 0
    %p190 = por %p188, %p189
    %p191 = scmp.le.s32.totalorder 1, %s12
    %p192 = scmp.lt.s32.totalorder %s12, 3
    %p193 = pnand %p191, %p192
    %p194 = pneg %p193
    // Predicated region
    $region9: #{basic_block_forward.5} parent=5 // pred_check
      _
    $region10: #{basic_block_forward.5} parent=5 // pred_check_branch
      %196 = sbr.rel (%p193) target = $region12
    $region11: #{basic_block_forward.5} parent=5 // pred_region
      %s197 = ssub.s32 %s12, 1
      // Predicated region
      $region13: #{basic_block_forward.5} parent=11 // pred_check
        %p198 = pneg %p73
      $region14: #{basic_block_forward.5} parent=11 // pred_check_branch
        %200 = sbr.rel (%p198) target = $region16
      $region15: #{basic_block_forward.5} parent=11 // pred_region
        _
      $region16: #{basic_block_forward.5} parent=11 // pred_fallthru
        _
      // Predicated region
      $region17: #{basic_block_forward.5} parent=11 // pred_check
        %p201 = pneg %p99
      $region18: #{basic_block_forward.5} parent=11 // pred_check_branch
        %203 = sbr.rel (%p201) target = $region20
      $region19: #{basic_block_forward.5} parent=11 // pred_region
        %s204 = smul.u32 36, %s22
        %p205 = scmp.lt.s32.totalorder %s204, 35
        %s206 = scalar_select %p205, %s204, 35
        %s207 = smul.addr %s206, 8
        %s208 = scalar_lea.vmem %s2, %s207
        %s209 = smul.u32 36, %s22
      $region20: #{basic_block_forward.5} parent=11 // pred_fallthru
        _
    $region12: #{basic_block_forward.5} parent=5 // pred_fallthru
      _
    %p210 = scmp.lt.s32.totalorder %s12, 2
    // Predicated region
    $region21: #{basic_block_forward.5} parent=5 // pred_check
      %p211 = pneg %p210
    $region22: #{basic_block_forward.5} parent=5 // pred_check_branch
      %213 = sbr.rel (%p211) target = $region24
    $region23: #{basic_block_forward.5} parent=5 // pred_region
      // Predicated region
      $region25: #{basic_block_forward.5} parent=23 // pred_check
        %p214 = pneg %p46
      $region26: #{basic_block_forward.5} parent=23 // pred_check_branch
        %216 = sbr.rel (%p214) target = $region28
      $region27: #{basic_block_forward.5} parent=23 // pred_region
        %s217 = sadd.s32 %s19, %s20
        %s218 = smul.u32 42, %s217
        %p219 = scmp.lt.s32.totalorder %s218, 83
        %s220 = scalar_select %p219, %s218, 83
        %s221 = smul.addr %s220, 4
        %s222 = scalar_lea.vmem %s0, %s221
        %s223 = sadd.s32 %s19, %s20
        %s224 = smul.u32 42, %s223
      $region28: #{basic_block_forward.5} parent=23 // pred_fallthru
        _
    $region24: #{basic_block_forward.5} parent=5 // pred_fallthru
      _
    %p225 = scmp.le.s32.totalorder 1, %s12
    %p226 = scmp.lt.s32.totalorder %s12, 3
    %p227 = pnand %p225, %p226
    %p228 = pneg %p227
    // Predicated region
    $region29: #{basic_block_forward.5} parent=5 // pred_check
      _
    $region30: #{basic_block_forward.5} parent=5 // pred_check_branch
      %230 = sbr.rel (%p227) target = $region32
    $region31: #{basic_block_forward.5} parent=5 // pred_region
      %s231 = ssub.s32 %s12, 1
      %s232 = sadd.s32 %s21, %s22
      %s233 = smul.u32 42, %s232
      %p234 = scmp.lt.s32.totalorder %s233, 83
      %s235 = scalar_select %p234, %s233, 83
      %s236 = smul.addr %s235, 4
      %s237 = scalar_lea.vmem %s0, %s236
      %p238 = pneg %p52
      %p239 = pneg %p49
      %p240 = pneg %p73
      %p241 = pneg %p70
      %s242 = smul.u32 36, %s22
      %p243 = scmp.lt.s32.totalorder %s242, 35
      %s244 = scalar_select %p243, %s242, 35
      %s245 = smul.addr %s244, 8
      %s246 = scalar_lea.vmem %s2, %s245
      %p247 = pneg %p99
      %p248 = pneg %p96
      %p249 = pneg %p127
      %p250 = pneg %p124
      %s251 = smul.u32 36, %s22
      %p252 = scmp.lt.s32.totalorder %s21, 1
      %s253 = scalar_select %p252, %s21, 1
      %p254 = scmp.lt.s32.totalorder %s251, 35
      %s255 = scalar_select %p254, %s251, 35
      %s256 = smul.addr %s253, 36
      %s257 = sadd.s32 %s255, %s256
      %s258 = smul.addr %s257, 4
      %s259 = scalar_lea.vmem %s3, %s258
      %p260 = pneg %p155
      %p261 = pneg %p152
      %s262 = sadd.s32 %s21, %s22
      %p263 = scmp.lt.s32.totalorder %s262, 1
      %s264 = scalar_select %p263, %s262, 1
      %s265 = smul.addr %s264, 8
      %s266 = scalar_lea.vmem %s4, %s265
      %p267 = pneg %p183
      %p268 = pneg %p180
      %s269 = sadd.s32 %s21, %s22
      %p270 = scmp.lt.s32.totalorder %s269, 1
      %s271 = scalar_select %p270, %s269, 1
      %s272 = smul.addr %s271, 8
      %s273 = scalar_lea.vmem %s5, %s272
      %s274 = sadd.s32 %s21, %s22
      %s275 = smul.u32 42, %s274
      %p276 = scmp.lt.s32.totalorder %s275, 83
      %s277 = scalar_select %p276, %s275, 83
      %s278 = smul.addr %s277, 4
      %s279 = scalar_lea.vmem %s0, %s278
      %s280 = sadd.s32 %s21, %s22
      %s281 = smul.u32 42, %s280
      %s282 = smul.u32 36, %s22
      %p283 = scmp.lt.s32.totalorder %s282, 35
      %s284 = scalar_select %p283, %s282, 35
      %s285 = smul.addr %s284, 8
      %s286 = scalar_lea.vmem %s2, %s285
      %s287 = smul.u32 36, %s22
      %s288 = smul.u32 36, %s22
      %p289 = scmp.lt.s32.totalorder %s21, 1
      %s290 = scalar_select %p289, %s21, 1
      %p291 = scmp.lt.s32.totalorder %s288, 35
      %s292 = scalar_select %p291, %s288, 35
      %s293 = smul.addr %s290, 36
      %s294 = sadd.s32 %s292, %s293
      %s295 = smul.addr %s294, 4
      %s296 = scalar_lea.vmem %s3, %s295
      %s297 = smul.u32 36, %s22
      %s298 = sadd.s32 %s21, %s22
      %p299 = scmp.lt.s32.totalorder %s298, 1
      %s300 = scalar_select %p299, %s298, 1
      %s301 = smul.addr %s300, 8
      %s302 = scalar_lea.vmem %s4, %s301
      %s303 = sadd.s32 %s21, %s22
      %s304 = sadd.s32 %s21, %s22
      %p305 = scmp.lt.s32.totalorder %s304, 1
      %s306 = scalar_select %p305, %s304, 1
      %s307 = smul.addr %s306, 8
      %s308 = scalar_lea.vmem %s5, %s307
      %s309 = sadd.s32 %s21, %s22
      %v311 = vld [vmem:[%s279] sm:$0xf]
      %v312 = vld [vmem:[%s279 + $0x4] sm:$0xf]
      %v313 = vld [vmem:[%s279 + $0x8] sm:$0xf]
      %v314 = vld [vmem:[%s279 + $0xc] sm:$0xf]
      %v315 = vld [vmem:[%s279 + $0x10] sm:$0xf]
      %v316 = vld [vmem:[%s279 + $0x14] sm:$0xf]
      %v317 = vld [vmem:[%s279 + $0x18] sm:$0xf]
      %v318 = vld [vmem:[%s279 + $0x1c] sm:$0xf]
      %v319 = vld [vmem:[%s279 + $0x20] sm:$0xf]
      %v320 = vld [vmem:[%s279 + $0x24] sm:$0xf]
      %v321 = vld [vmem:[%s279 + $0x28] sm:$0xf]
      %v322 = vld [vmem:[%s279 + $0x2c] sm:$0xf]
      %v323 = vld [vmem:[%s279 + $0x30] sm:$0xf]
      %v324 = vld [vmem:[%s279 + $0x34] sm:$0xf]
      %v325 = vld [vmem:[%s279 + $0x38] sm:$0xf]
      %v326 = vld [vmem:[%s279 + $0x3c] sm:$0xf]
      %v327 = vld [vmem:[%s279 + $0x40] sm:$0xf]
      %v328 = vld [vmem:[%s279 + $0x44] sm:$0xf]
      %v329 = vld [vmem:[%s279 + $0x48] sm:$0xf]
      %v330 = vld [vmem:[%s279 + $0x4c] sm:$0xf]
      %v331 = vld [vmem:[%s279 + $0x50] sm:$0xf]
      %v332 = vld [vmem:[%s279 + $0x54] sm:$0xf]
      %v333 = vld [vmem:[%s279 + $0x58] sm:$0xf]
      %v334 = vld [vmem:[%s279 + $0x5c] sm:$0xf]
      %v335 = vld [vmem:[%s279 + $0x60] sm:$0xf]
      %v336 = vld [vmem:[%s279 + $0x64] sm:$0xf]
      %v337 = vld [vmem:[%s279 + $0x68] sm:$0xf]
      %v338 = vld [vmem:[%s279 + $0x6c] sm:$0xf]
      %v339 = vld [vmem:[%s279 + $0x70] sm:$0xf]
      %v340 = vld [vmem:[%s279 + $0x74] sm:$0xf]
      %v341 = vld [vmem:[%s279 + $0x78] sm:$0xf]
      %v342 = vld [vmem:[%s279 + $0x7c] sm:$0xf]
      %v343 = vld [vmem:[%s279 + $0x80] sm:$0xf]
      %v344 = vld [vmem:[%s279 + $0x84] sm:$0xf]
      %v345 = vld [vmem:[%s279 + $0x88] sm:$0xf]
      %v346 = vld [vmem:[%s279 + $0x8c] sm:$0xf]
      %v347 = vld [vmem:[%s279 + $0x90] sm:$0x1]
      %v348 = vld [vmem:[%s279] sm:$0xe]
      %v349 = vld [vmem:[%s279 + $0x8] sm:$0xe]
      %v350 = vld [vmem:[%s279 + $0x90] sm:$0xf]
      %v351 = vld [vmem:[%s279 + $0x94] sm:$0xf]
      %v352 = vld [vmem:[%s279 + $0x98] sm:$0x1]
      %v353 = vld [vmem:[%s279 + $0x98] sm:$0x3]
      %v354 = vld [vmem:[%s279 + $0x8] sm:$0xc]
      %v355 = vld [vmem:[%s279 + $0x10] sm:$0xc]
      %v356 = vld [vmem:[%s279 + $0x98] sm:$0xf]
      %v357 = vld [vmem:[%s279 + $0x9c] sm:$0xf]
      %v358 = vld [vmem:[%s279 + $0xa0] sm:$0x3]
      %v359 = vld [vmem:[%s279 + $0xa0] sm:$0x7]
      %v360 = vld [vmem:[%s279 + $0x10] sm:$0x8]
      %v397 = vunpack.c.l.b16 %v311
      %v398 = vunpack.c.l.b16 %v312
      %v399 = vunpack.c.l.b16 %v313
      %v400 = vunpack.c.l.b16 %v314
      %v401 = vunpack.c.l.b16 %v315
      %v402 = vunpack.c.l.b16 %v316
      %v403 = vunpack.c.l.b16 %v317
      %v404 = vunpack.c.l.b16 %v318
      %v405 = vunpack.c.l.b16 %v319
      %v406 = vunpack.c.l.b16 %v320
      %v407 = vunpack.c.l.b16 %v321
      %v408 = vunpack.c.l.b16 %v322
      %v409 = vunpack.c.l.b16 %v323
      %v410 = vunpack.c.l.b16 %v324
      %v411 = vunpack.c.l.b16 %v325
      %v412 = vunpack.c.l.b16 %v326
      %v413 = vunpack.c.l.b16 %v327
      %v414 = vunpack.c.l.b16 %v328
      %v415 = vunpack.c.l.b16 %v329
      %v416 = vunpack.c.l.b16 %v330
      %v417 = vunpack.c.l.b16 %v331
      %v418 = vunpack.c.l.b16 %v332
      %v419 = vunpack.c.l.b16 %v333
      %v420 = vunpack.c.l.b16 %v334
      %v421 = vunpack.c.l.b16 %v335
      %v422 = vunpack.c.l.b16 %v336
      %v423 = vunpack.c.l.b16 %v337
      %v424 = vunpack.c.l.b16 %v338
      %v425 = vunpack.c.l.b16 %v339
      %v426 = vunpack.c.l.b16 %v340
      %v427 = vunpack.c.l.b16 %v341
      %v428 = vunpack.c.l.b16 %v342
      %v429 = vunpack.c.l.b16 %v343
      %v430 = vunpack.c.l.b16 %v344
      %v431 = vunpack.c.l.b16 %v345
      %v432 = vunpack.c.l.b16 %v346
      %v433 = vpack.c.b16 %v398, %v397
      %v434 = vpack.c.b16 %v400, %v399
      %v435 = vpack.c.b16 %v402, %v401
      %v436 = vpack.c.b16 %v404, %v403
      %v437 = vpack.c.b16 %v406, %v405
      %v438 = vpack.c.b16 %v408, %v407
      %v439 = vpack.c.b16 %v410, %v409
      %v440 = vpack.c.b16 %v412, %v411
      %v441 = vpack.c.b16 %v414, %v413
      %v442 = vpack.c.b16 %v416, %v415
      %v443 = vpack.c.b16 %v418, %v417
      %v444 = vpack.c.b16 %v420, %v419
      %v445 = vpack.c.b16 %v422, %v421
      %v446 = vpack.c.b16 %v424, %v423
      %v447 = vpack.c.b16 %v426, %v425
      %v448 = vpack.c.b16 %v428, %v427
      %v449 = vpack.c.b16 %v430, %v429
      %v450 = vpack.c.b16 %v432, %v431
      %v470 = vunpack.c.l.b16 %v347
      %v471 = vpack.c.b16 %v470, %v470
      %vm472 = vsmask.f32 7424
      %v474 = vshrl.u32 %v433, 16
      %v476 = vshll.u32 %v433, 16
      %v478 = vrot.slane %v476, 1
      %v479 = vor.u32 %v474, %v478
      %v481 = vshll.u32 %v434, 16
      %v483 = vrot.slane %v481, 1
      %v484 = vsel %vm472, %v479, %v483
      %v485 = vshrl.u32 %v434, 16
      %v487 = vor.u32 %v485, %v483
      %v489 = vshll.u32 %v435, 16
      %v491 = vrot.slane %v489, 1
      %v492 = vsel %vm472, %v487, %v491
      %v493 = vshrl.u32 %v435, 16
      %v495 = vor.u32 %v493, %v491
      %v497 = vshll.u32 %v436, 16
      %v499 = vrot.slane %v497, 1
      %v500 = vsel %vm472, %v495, %v499
      %v501 = vshrl.u32 %v436, 16
      %v503 = vor.u32 %v501, %v499
      %v505 = vshll.u32 %v437, 16
      %v507 = vrot.slane %v505, 1
      %v508 = vsel %vm472, %v503, %v507
      %v509 = vshrl.u32 %v437, 16
      %v511 = vor.u32 %v509, %v507
      %v513 = vshll.u32 %v438, 16
      %v515 = vrot.slane %v513, 1
      %v516 = vsel %vm472, %v511, %v515
      %v517 = vshrl.u32 %v438, 16
      %v519 = vor.u32 %v517, %v515
      %v521 = vshll.u32 %v439, 16
      %v523 = vrot.slane %v521, 1
      %v524 = vsel %vm472, %v519, %v523
      %v525 = vshrl.u32 %v439, 16
      %v527 = vor.u32 %v525, %v523
      %v529 = vshll.u32 %v440, 16
      %v531 = vrot.slane %v529, 1
      %v532 = vsel %vm472, %v527, %v531
      %v533 = vshrl.u32 %v440, 16
      %v535 = vor.u32 %v533, %v531
      %v537 = vshll.u32 %v441, 16
      %v539 = vrot.slane %v537, 1
      %v540 = vsel %vm472, %v535, %v539
      %v541 = vshrl.u32 %v441, 16
      %v543 = vor.u32 %v541, %v539
      %v545 = vshll.u32 %v442, 16
      %v547 = vrot.slane %v545, 1
      %v548 = vsel %vm472, %v543, %v547
      %v549 = vshrl.u32 %v442, 16
      %v551 = vor.u32 %v549, %v547
      %v553 = vshll.u32 %v443, 16
      %v555 = vrot.slane %v553, 1
      %v556 = vsel %vm472, %v551, %v555
      %v557 = vshrl.u32 %v443, 16
      %v559 = vor.u32 %v557, %v555
      %v561 = vshll.u32 %v444, 16
      %v563 = vrot.slane %v561, 1
      %v564 = vsel %vm472, %v559, %v563
      %v565 = vshrl.u32 %v444, 16
      %v567 = vor.u32 %v565, %v563
      %v569 = vshll.u32 %v445, 16
      %v571 = vrot.slane %v569, 1
      %v572 = vsel %vm472, %v567, %v571
      %v573 = vshrl.u32 %v445, 16
      %v575 = vor.u32 %v573, %v571
      %v577 = vshll.u32 %v446, 16
      %v579 = vrot.slane %v577, 1
      %v580 = vsel %vm472, %v575, %v579
      %v581 = vshrl.u32 %v446, 16
      %v583 = vor.u32 %v581, %v579
      %v585 = vshll.u32 %v447, 16
      %v587 = vrot.slane %v585, 1
      %v588 = vsel %vm472, %v583, %v587
      %v589 = vshrl.u32 %v447, 16
      %v591 = vor.u32 %v589, %v587
      %v593 = vshll.u32 %v448, 16
      %v595 = vrot.slane %v593, 1
      %v596 = vsel %vm472, %v591, %v595
      %v597 = vshrl.u32 %v448, 16
      %v599 = vor.u32 %v597, %v595
      %v601 = vshll.u32 %v449, 16
      %v603 = vrot.slane %v601, 1
      %v604 = vsel %vm472, %v599, %v603
      %v605 = vshrl.u32 %v449, 16
      %v607 = vor.u32 %v605, %v603
      %v609 = vshll.u32 %v450, 16
      %v611 = vrot.slane %v609, 1
      %v612 = vsel %vm472, %v607, %v611
      %v613 = vshrl.u32 %v450, 16
      %v615 = vor.u32 %v613, %v611
      %v617 = vshll.u32 %v471, 16
      %v619 = vrot.slane %v617, 1
      %v620 = vsel %vm472, %v615, %v619
      %v640 = vunpack.c.l.b16 %v348
      %v641 = vpack.c.b16 %v398, %v640
      %vm642 = vcmask 1046528
      %v643 = vrot.slane %v641, 1
      %v644 = vrot.slane %v434, 1
      %v645 = vsel %vm642, %v643, %v644
      %v646 = vrot.slane %v435, 1
      %v647 = vsel %vm642, %v644, %v646
      %v648 = vrot.slane %v436, 1
      %v649 = vsel %vm642, %v646, %v648
      %v650 = vrot.slane %v437, 1
      %v651 = vsel %vm642, %v648, %v650
      %v652 = vrot.slane %v438, 1
      %v653 = vsel %vm642, %v650, %v652
      %v654 = vrot.slane %v439, 1
      %v655 = vsel %vm642, %v652, %v654
      %v656 = vrot.slane %v440, 1
      %v657 = vsel %vm642, %v654, %v656
      %v658 = vrot.slane %v441, 1
      %v659 = vsel %vm642, %v656, %v658
      %v660 = vrot.slane %v442, 1
      %v661 = vsel %vm642, %v658, %v660
      %v662 = vrot.slane %v443, 1
      %v663 = vsel %vm642, %v660, %v662
      %v664 = vrot.slane %v444, 1
      %v665 = vsel %vm642, %v662, %v664
      %v666 = vrot.slane %v445, 1
      %v667 = vsel %vm642, %v664, %v666
      %v668 = vrot.slane %v446, 1
      %v669 = vsel %vm642, %v666, %v668
      %v670 = vrot.slane %v447, 1
      %v671 = vsel %vm642, %v668, %v670
      %v672 = vrot.slane %v448, 1
      %v673 = vsel %vm642, %v670, %v672
      %v674 = vrot.slane %v449, 1
      %v675 = vsel %vm642, %v672, %v674
      %v676 = vrot.slane %v450, 1
      %v677 = vsel %vm642, %v674, %v676
      %v678 = vrot.slane %v471, 1
      %v679 = vsel %vm642, %v676, %v678
      %v702 = vunpack.c.l.b16 %v349
      %v703 = vunpack.c.l.b16 %v350
      %v704 = vunpack.c.l.b16 %v351
      %v705 = vunpack.c.l.b16 %v352
      %v706 = vpack.c.b16 %v400, %v702
      %v707 = vpack.c.b16 %v704, %v703
      %v708 = vpack.c.b16 %v705, %v705
      %v709 = vrot.slane %v706, 1
      %v710 = vsel %vm642, %v709, %v646
      %v711 = vrot.slane %v707, 1
      %v712 = vsel %vm642, %v676, %v711
      %v713 = vrot.slane %v708, 1
      %v714 = vsel %vm642, %v711, %v713
      %v719 = vunpack.c.l.b16 %v353
      %v720 = vpack.c.b16 %v719, %v719
      %vm721 = vsmask.f32 6400
      %v723 = vshrl.u32 %v706, 16
      %v725 = vrot.slane %v723, 1
      %v726 = vshll.u32 %v706, 16
      %v728 = vrot.slane %v726, 2
      %v729 = vor.u32 %v725, %v728
      %v730 = vrot.slane %v493, 1
      %v731 = vrot.slane %v489, 2
      %v732 = vor.u32 %v730, %v731
      %v733 = vsel %vm721, %v729, %v732
      %v734 = vrot.slane %v501, 1
      %v735 = vrot.slane %v497, 2
      %v736 = vor.u32 %v734, %v735
      %v737 = vsel %vm721, %v732, %v736
      %v738 = vrot.slane %v509, 1
      %v739 = vrot.slane %v505, 2
      %v740 = vor.u32 %v738, %v739
      %v741 = vsel %vm721, %v736, %v740
      %v742 = vrot.slane %v517, 1
      %v743 = vrot.slane %v513, 2
      %v744 = vor.u32 %v742, %v743
      %v745 = vsel %vm721, %v740, %v744
      %v746 = vrot.slane %v525, 1
      %v747 = vrot.slane %v521, 2
      %v748 = vor.u32 %v746, %v747
      %v749 = vsel %vm721, %v744, %v748
      %v750 = vrot.slane %v533, 1
      %v751 = vrot.slane %v529, 2
      %v752 = vor.u32 %v750, %v751
      %v753 = vsel %vm721, %v748, %v752
      %v754 = vrot.slane %v541, 1
      %v755 = vrot.slane %v537, 2
      %v756 = vor.u32 %v754, %v755
      %v757 = vsel %vm721, %v752, %v756
      %v758 = vrot.slane %v549, 1
      %v759 = vrot.slane %v545, 2
      %v760 = vor.u32 %v758, %v759
      %v761 = vsel %vm721, %v756, %v760
      %v762 = vrot.slane %v557, 1
      %v763 = vrot.slane %v553, 2
      %v764 = vor.u32 %v762, %v763
      %v765 = vsel %vm721, %v760, %v764
      %v766 = vrot.slane %v565, 1
      %v767 = vrot.slane %v561, 2
      %v768 = vor.u32 %v766, %v767
      %v769 = vsel %vm721, %v764, %v768
      %v770 = vrot.slane %v573, 1
      %v771 = vrot.slane %v569, 2
      %v772 = vor.u32 %v770, %v771
      %v773 = vsel %vm721, %v768, %v772
      %v774 = vrot.slane %v581, 1
      %v775 = vrot.slane %v577, 2
      %v776 = vor.u32 %v774, %v775
      %v777 = vsel %vm721, %v772, %v776
      %v778 = vrot.slane %v589, 1
      %v779 = vrot.slane %v585, 2
      %v780 = vor.u32 %v778, %v779
      %v781 = vsel %vm721, %v776, %v780
      %v782 = vrot.slane %v597, 1
      %v783 = vrot.slane %v593, 2
      %v784 = vor.u32 %v782, %v783
      %v785 = vsel %vm721, %v780, %v784
      %v786 = vrot.slane %v605, 1
      %v787 = vrot.slane %v601, 2
      %v788 = vor.u32 %v786, %v787
      %v789 = vsel %vm721, %v784, %v788
      %v790 = vrot.slane %v613, 1
      %v791 = vrot.slane %v609, 2
      %v792 = vor.u32 %v790, %v791
      %v793 = vsel %vm721, %v788, %v792
      %v795 = vshrl.u32 %v707, 16
      %v797 = vrot.slane %v795, 1
      %v798 = vshll.u32 %v707, 16
      %v800 = vrot.slane %v798, 2
      %v801 = vor.u32 %v797, %v800
      %v802 = vsel %vm721, %v792, %v801
      %v804 = vshrl.u32 %v720, 16
      %v806 = vrot.slane %v804, 1
      %v807 = vshll.u32 %v720, 16
      %v809 = vrot.slane %v807, 2
      %v810 = vor.u32 %v806, %v809
      %v811 = vsel %vm721, %v801, %v810
      %v831 = vunpack.c.l.b16 %v354
      %v832 = vpack.c.b16 %v400, %v831
      %vm833 = vcmask 1045504
      %v834 = vrot.slane %v832, 2
      %v835 = vrot.slane %v435, 2
      %v836 = vsel %vm833, %v834, %v835
      %v837 = vrot.slane %v436, 2
      %v838 = vsel %vm833, %v835, %v837
      %v839 = vrot.slane %v437, 2
      %v840 = vsel %vm833, %v837, %v839
      %v841 = vrot.slane %v438, 2
      %v842 = vsel %vm833, %v839, %v841
      %v843 = vrot.slane %v439, 2
      %v844 = vsel %vm833, %v841, %v843
      %v845 = vrot.slane %v440, 2
      %v846 = vsel %vm833, %v843, %v845
      %v847 = vrot.slane %v441, 2
      %v848 = vsel %vm833, %v845, %v847
      %v849 = vrot.slane %v442, 2
      %v850 = vsel %vm833, %v847, %v849
      %v851 = vrot.slane %v443, 2
      %v852 = vsel %vm833, %v849, %v851
      %v853 = vrot.slane %v444, 2
      %v854 = vsel %vm833, %v851, %v853
      %v855 = vrot.slane %v445, 2
      %v856 = vsel %vm833, %v853, %v855
      %v857 = vrot.slane %v446, 2
      %v858 = vsel %vm833, %v855, %v857
      %v859 = vrot.slane %v447, 2
      %v860 = vsel %vm833, %v857, %v859
      %v861 = vrot.slane %v448, 2
      %v862 = vsel %vm833, %v859, %v861
      %v863 = vrot.slane %v449, 2
      %v864 = vsel %vm833, %v861, %v863
      %v865 = vrot.slane %v450, 2
      %v866 = vsel %vm833, %v863, %v865
      %v867 = vrot.slane %v707, 2
      %v868 = vsel %vm833, %v865, %v867
      %v869 = vrot.slane %v720, 2
      %v870 = vsel %vm833, %v867, %v869
      %v893 = vunpack.c.l.b16 %v355
      %v894 = vunpack.c.l.b16 %v356
      %v895 = vunpack.c.l.b16 %v357
      %v896 = vunpack.c.l.b16 %v358
      %v897 = vpack.c.b16 %v402, %v893
      %v898 = vpack.c.b16 %v895, %v894
      %v899 = vpack.c.b16 %v896, %v896
      %v900 = vrot.slane %v897, 2
      %v901 = vsel %vm833, %v900, %v837
      %v902 = vrot.slane %v898, 2
      %v903 = vsel %vm833, %v867, %v902
      %v904 = vrot.slane %v899, 2
      %v905 = vsel %vm833, %v902, %v904
      %v910 = vunpack.c.l.b16 %v359
      %v911 = vpack.c.b16 %v910, %v910
      %vm912 = vsmask.f32 5376
      %v914 = vshrl.u32 %v897, 16
      %v916 = vrot.slane %v914, 2
      %v917 = vshll.u32 %v897, 16
      %v919 = vrot.slane %v917, 3
      %v920 = vor.u32 %v916, %v919
      %v921 = vrot.slane %v501, 2
      %v922 = vrot.slane %v497, 3
      %v923 = vor.u32 %v921, %v922
      %v924 = vsel %vm912, %v920, %v923
      %v925 = vrot.slane %v509, 2
      %v926 = vrot.slane %v505, 3
      %v927 = vor.u32 %v925, %v926
      %v928 = vsel %vm912, %v923, %v927
      %v929 = vrot.slane %v517, 2
      %v930 = vrot.slane %v513, 3
      %v931 = vor.u32 %v929, %v930
      %v932 = vsel %vm912, %v927, %v931
      %v933 = vrot.slane %v525, 2
      %v934 = vrot.slane %v521, 3
      %v935 = vor.u32 %v933, %v934
      %v936 = vsel %vm912, %v931, %v935
      %v937 = vrot.slane %v533, 2
      %v938 = vrot.slane %v529, 3
      %v939 = vor.u32 %v937, %v938
      %v940 = vsel %vm912, %v935, %v939
      %v941 = vrot.slane %v541, 2
      %v942 = vrot.slane %v537, 3
      %v943 = vor.u32 %v941, %v942
      %v944 = vsel %vm912, %v939, %v943
      %v945 = vrot.slane %v549, 2
      %v946 = vrot.slane %v545, 3
      %v947 = vor.u32 %v945, %v946
      %v948 = vsel %vm912, %v943, %v947
      %v949 = vrot.slane %v557, 2
      %v950 = vrot.slane %v553, 3
      %v951 = vor.u32 %v949, %v950
      %v952 = vsel %vm912, %v947, %v951
      %v953 = vrot.slane %v565, 2
      %v954 = vrot.slane %v561, 3
      %v955 = vor.u32 %v953, %v954
      %v956 = vsel %vm912, %v951, %v955
      %v957 = vrot.slane %v573, 2
      %v958 = vrot.slane %v569, 3
      %v959 = vor.u32 %v957, %v958
      %v960 = vsel %vm912, %v955, %v959
      %v961 = vrot.slane %v581, 2
      %v962 = vrot.slane %v577, 3
      %v963 = vor.u32 %v961, %v962
      %v964 = vsel %vm912, %v959, %v963
      %v965 = vrot.slane %v589, 2
      %v966 = vrot.slane %v585, 3
      %v967 = vor.u32 %v965, %v966
      %v968 = vsel %vm912, %v963, %v967
      %v969 = vrot.slane %v597, 2
      %v970 = vrot.slane %v593, 3
      %v971 = vor.u32 %v969, %v970
      %v972 = vsel %vm912, %v967, %v971
      %v973 = vrot.slane %v605, 2
      %v974 = vrot.slane %v601, 3
      %v975 = vor.u32 %v973, %v974
      %v976 = vsel %vm912, %v971, %v975
      %v977 = vrot.slane %v613, 2
      %v978 = vrot.slane %v609, 3
      %v979 = vor.u32 %v977, %v978
      %v980 = vsel %vm912, %v975, %v979
      %v981 = vrot.slane %v795, 2
      %v982 = vrot.slane %v798, 3
      %v983 = vor.u32 %v981, %v982
      %v984 = vsel %vm912, %v979, %v983
      %v986 = vshrl.u32 %v898, 16
      %v988 = vrot.slane %v986, 2
      %v989 = vshll.u32 %v898, 16
      %v991 = vrot.slane %v989, 3
      %v992 = vor.u32 %v988, %v991
      %v993 = vsel %vm912, %v983, %v992
      %v995 = vshrl.u32 %v911, 16
      %v997 = vrot.slane %v995, 2
      %v998 = vshll.u32 %v911, 16
      %v1000 = vrot.slane %v998, 3
      %v1001 = vor.u32 %v997, %v1000
      %v1002 = vsel %vm912, %v992, %v1001
      %v1022 = vunpack.c.l.b16 %v360
      %v1023 = vpack.c.b16 %v402, %v1022
      %vm1024 = vcmask 1044480
      %v1025 = vrot.slane %v1023, 3
      %v1026 = vrot.slane %v436, 3
      %v1027 = vsel %vm1024, %v1025, %v1026
      %v1028 = vrot.slane %v437, 3
      %v1029 = vsel %vm1024, %v1026, %v1028
      %v1030 = vrot.slane %v438, 3
      %v1031 = vsel %vm1024, %v1028, %v1030
      %v1032 = vrot.slane %v439, 3
      %v1033 = vsel %vm1024, %v1030, %v1032
      %v1034 = vrot.slane %v440, 3
      %v1035 = vsel %vm1024, %v1032, %v1034
      %v1036 = vrot.slane %v441, 3
      %v1037 = vsel %vm1024, %v1034, %v1036
      %v1038 = vrot.slane %v442, 3
      %v1039 = vsel %vm1024, %v1036, %v1038
      %v1040 = vrot.slane %v443, 3
      %v1041 = vsel %vm1024, %v1038, %v1040
      %v1042 = vrot.slane %v444, 3
      %v1043 = vsel %vm1024, %v1040, %v1042
      %v1044 = vrot.slane %v445, 3
      %v1045 = vsel %vm1024, %v1042, %v1044
      %v1046 = vrot.slane %v446, 3
      %v1047 = vsel %vm1024, %v1044, %v1046
      %v1048 = vrot.slane %v447, 3
      %v1049 = vsel %vm1024, %v1046, %v1048
      %v1050 = vrot.slane %v448, 3
      %v1051 = vsel %vm1024, %v1048, %v1050
      %v1052 = vrot.slane %v449, 3
      %v1053 = vsel %vm1024, %v1050, %v1052
      %v1054 = vrot.slane %v450, 3
      %v1055 = vsel %vm1024, %v1052, %v1054
      %v1056 = vrot.slane %v707, 3
      %v1057 = vsel %vm1024, %v1054, %v1056
      %v1058 = vrot.slane %v898, 3
      %v1059 = vsel %vm1024, %v1056, %v1058
      %v1060 = vrot.slane %v911, 3
      %v1061 = vsel %vm1024, %v1058, %v1060
      %v1080 = vld [vmem:[%s1] sm:$0xf]
      %v1081 = vld [vmem:[%s1 + $0x4] sm:$0xf]
      %v1082 = vld [vmem:[%s1 + $0x8] sm:$0xf]
      %v1083 = vld [vmem:[%s1 + $0xc] sm:$0xf]
      %v1084 = vld [vmem:[%s1 + $0x10] sm:$0xf]
      %v1085 = vld [vmem:[%s1 + $0x14] sm:$0xf]
      %v1086 = vld [vmem:[%s1 + $0x18] sm:$0xf]
      %v1087 = vld [vmem:[%s1 + $0x1c] sm:$0xf]
      %v1088 = vld [vmem:[%s1 + $0x20] sm:$0xf]
      %v1089 = vld [vmem:[%s1 + $0x24] sm:$0xf]
      %v1090 = vld [vmem:[%s1 + $0x28] sm:$0xf]
      %v1091 = vld [vmem:[%s1 + $0x2c] sm:$0xf]
      %v1092 = vld [vmem:[%s1 + $0x30] sm:$0xf]
      %v1093 = vld [vmem:[%s1 + $0x34] sm:$0xf]
      %v1094 = vld [vmem:[%s1 + $0x38] sm:$0xf]
      %v1095 = vld [vmem:[%s1 + $0x3c] sm:$0xf]
      %v1096 = vld [vmem:[%s1 + $0x40] sm:$0xf]
      %v1097 = vld [vmem:[%s1 + $0x44] sm:$0xf]
      %v1098 = vld [vmem:[%s1 + $0x48] sm:$0xf]
      %v1099 = vld [vmem:[%s1 + $0x4c] sm:$0xf]
      %v1100 = vld [vmem:[%s1 + $0x50] sm:$0xf]
      %v1101 = vld [vmem:[%s1 + $0x54] sm:$0xf]
      %v1102 = vld [vmem:[%s1 + $0x58] sm:$0xf]
      %v1103 = vld [vmem:[%s1 + $0x5c] sm:$0xf]
      %v1104 = vld [vmem:[%s1 + $0x60] sm:$0xf]
      %v1105 = vld [vmem:[%s1 + $0x64] sm:$0xf]
      %v1106 = vld [vmem:[%s1 + $0x68] sm:$0xf]
      %v1107 = vld [vmem:[%s1 + $0x6c] sm:$0xf]
      %v1108 = vld [vmem:[%s1 + $0x70] sm:$0xf]
      %v1109 = vld [vmem:[%s1 + $0x74] sm:$0xf]
      %v1110 = vld [vmem:[%s1 + $0x78] sm:$0xf]
      %v1111 = vld [vmem:[%s1 + $0x7c] sm:$0xf]
      %v1112 = vld [vmem:[%s1 + $0x80] sm:$0xf]
      %v1113 = vld [vmem:[%s1 + $0x84] sm:$0xf]
      %v1114 = vld [vmem:[%s1 + $0x88] sm:$0xf]
      %v1115 = vld [vmem:[%s1 + $0x8c] sm:$0xf]
      %v1116 = vld [vmem:[%s1 + $0x90] sm:$0xf]
      %v1117 = vld [vmem:[%s1 + $0x94] sm:$0xf]
      %v1118 = vld [vmem:[%s1 + $0x98] sm:$0xf]
      %v1119 = vld [vmem:[%s1 + $0x9c] sm:$0xf]
      %v1120 = vld [vmem:[%s1 + $0xa0] sm:$0xf]
      %v1121 = vld [vmem:[%s1 + $0xa4] sm:$0xf]
      %v1122 = vld [vmem:[%s1 + $0xa8] sm:$0xf]
      %v1123 = vld [vmem:[%s1 + $0xac] sm:$0xf]
      %v1124 = vld [vmem:[%s1 + $0xb0] sm:$0xf]
      %v1125 = vld [vmem:[%s1 + $0xb4] sm:$0xf]
      %v1126 = vld [vmem:[%s1 + $0xb8] sm:$0xf]
      %v1127 = vld [vmem:[%s1 + $0xbc] sm:$0xf]
      %v1128 = vld [vmem:[%s1 + $0xc0] sm:$0xf]
      %v1129 = vld [vmem:[%s1 + $0xc4] sm:$0xf]
      %v1130 = vld [vmem:[%s1 + $0xc8] sm:$0xf]
      %v1131 = vld [vmem:[%s1 + $0xcc] sm:$0xf]
      %v1132 = vld [vmem:[%s1 + $0xd0] sm:$0xf]
      %v1133 = vld [vmem:[%s1 + $0xd4] sm:$0xf]
      %v1134 = vld [vmem:[%s1 + $0xd8] sm:$0xf]
      %v1135 = vld [vmem:[%s1 + $0xdc] sm:$0xf]
      %v1136 = vld [vmem:[%s1 + $0xe0] sm:$0xf]
      %v1137 = vld [vmem:[%s1 + $0xe4] sm:$0xf]
      %v1138 = vld [vmem:[%s1 + $0xe8] sm:$0xf]
      %v1139 = vld [vmem:[%s1 + $0xec] sm:$0xf]
      %v1140 = vld [vmem:[%s1 + $0xf0] sm:$0xf]
      %v1141 = vld [vmem:[%s1 + $0xf4] sm:$0xf]
      %v1142 = vld [vmem:[%s1 + $0xf8] sm:$0xf]
      %v1143 = vld [vmem:[%s1 + $0xfc] sm:$0xf]
      %v1144 = vld [vmem:[%s1 + $0x100] sm:$0xf]
      %v1145 = vld [vmem:[%s1 + $0x104] sm:$0xf]
      %v1146 = vld [vmem:[%s1 + $0x108] sm:$0xf]
      %v1147 = vld [vmem:[%s1 + $0x10c] sm:$0xf]
      %v1148 = vld [vmem:[%s1 + $0x110] sm:$0xf]
      %v1149 = vld [vmem:[%s1 + $0x114] sm:$0xf]
      %v1150 = vld [vmem:[%s1 + $0x118] sm:$0xf]
      %v1151 = vld [vmem:[%s1 + $0x11c] sm:$0xf]
      %v1152 = vld [vmem:[%s1 + $0x120] sm:$0xf]
      %v1153 = vld [vmem:[%s1 + $0x124] sm:$0xf]
      %v1154 = vld [vmem:[%s1 + $0x128] sm:$0xf]
      %v1155 = vld [vmem:[%s1 + $0x12c] sm:$0xf]
      %v1156 = vld [vmem:[%s1 + $0x130] sm:$0xf]
      %v1157 = vld [vmem:[%s1 + $0x134] sm:$0xf]
      %v1158 = vld [vmem:[%s1 + $0x138] sm:$0xf]
      %v1159 = vld [vmem:[%s1 + $0x13c] sm:$0xf]
      %v1160 = vld [vmem:[%s1 + $0x140] sm:$0xf]
      %v1161 = vld [vmem:[%s1 + $0x144] sm:$0xf]
      %v1162 = vld [vmem:[%s1 + $0x148] sm:$0xf]
      %v1163 = vld [vmem:[%s1 + $0x14c] sm:$0xf]
      %v1164 = vld [vmem:[%s1 + $0x150] sm:$0xf]
      %v1165 = vld [vmem:[%s1 + $0x154] sm:$0xf]
      %v1166 = vld [vmem:[%s1 + $0x158] sm:$0xf]
      %v1167 = vld [vmem:[%s1 + $0x15c] sm:$0xf]
      %v1168 = vld [vmem:[%s1 + $0x160] sm:$0xf]
      %v1169 = vld [vmem:[%s1 + $0x164] sm:$0xf]
      %v1170 = vld [vmem:[%s1 + $0x168] sm:$0xf]
      %v1171 = vld [vmem:[%s1 + $0x16c] sm:$0xf]
      %v1172 = vld [vmem:[%s1 + $0x170] sm:$0xf]
      %v1173 = vld [vmem:[%s1 + $0x174] sm:$0xf]
      %v1174 = vld [vmem:[%s1 + $0x178] sm:$0xf]
      %v1175 = vld [vmem:[%s1 + $0x17c] sm:$0xf]
      %v1176 = vld [vmem:[%s1 + $0x180] sm:$0xf]
      %v1177 = vld [vmem:[%s1 + $0x184] sm:$0xf]
      %v1178 = vld [vmem:[%s1 + $0x188] sm:$0xf]
      %v1179 = vld [vmem:[%s1 + $0x18c] sm:$0xf]
      %v1180 = vld [vmem:[%s1 + $0x190] sm:$0xf]
      %v1181 = vld [vmem:[%s1 + $0x194] sm:$0xf]
      %v1182 = vld [vmem:[%s1 + $0x198] sm:$0xf]
      %v1183 = vld [vmem:[%s1 + $0x19c] sm:$0xf]
      %v1184 = vld [vmem:[%s1 + $0x1a0] sm:$0xf]
      %v1185 = vld [vmem:[%s1 + $0x1a4] sm:$0xf]
      %v1186 = vld [vmem:[%s1 + $0x1a8] sm:$0xf]
      %v1187 = vld [vmem:[%s1 + $0x1ac] sm:$0xf]
      %v1188 = vld [vmem:[%s1 + $0x1b0] sm:$0xf]
      %v1189 = vld [vmem:[%s1 + $0x1b4] sm:$0xf]
      %v1190 = vld [vmem:[%s1 + $0x1b8] sm:$0xf]
      %v1191 = vld [vmem:[%s1 + $0x1bc] sm:$0xf]
      %v1192 = vld [vmem:[%s1 + $0x1c0] sm:$0xf]
      %v1193 = vld [vmem:[%s1 + $0x1c4] sm:$0xf]
      %v1194 = vld [vmem:[%s1 + $0x1c8] sm:$0xf]
      %v1195 = vld [vmem:[%s1 + $0x1cc] sm:$0xf]
      %v1196 = vld [vmem:[%s1 + $0x1d0] sm:$0xf]
      %v1197 = vld [vmem:[%s1 + $0x1d4] sm:$0xf]
      %v1198 = vld [vmem:[%s1 + $0x1d8] sm:$0xf]
      %v1199 = vld [vmem:[%s1 + $0x1dc] sm:$0xf]
      %v1200 = vld [vmem:[%s1 + $0x1e0] sm:$0xf]
      %v1201 = vld [vmem:[%s1 + $0x1e4] sm:$0xf]
      %v1202 = vld [vmem:[%s1 + $0x1e8] sm:$0xf]
      %v1203 = vld [vmem:[%s1 + $0x1ec] sm:$0xf]
      %v1204 = vld [vmem:[%s1 + $0x1f0] sm:$0xf]
      %v1205 = vld [vmem:[%s1 + $0x1f4] sm:$0xf]
      %v1206 = vld [vmem:[%s1 + $0x1f8] sm:$0xf]
      %v1207 = vld [vmem:[%s1 + $0x1fc] sm:$0xf]
      %v1208 = vld [vmem:[%s1 + $0x200] sm:$0xf]
      %v1209 = vld [vmem:[%s1 + $0x204] sm:$0xf]
      %v1210 = vld [vmem:[%s1 + $0x208] sm:$0xf]
      %v1211 = vld [vmem:[%s1 + $0x20c] sm:$0xf]
      %v1212 = vld [vmem:[%s1 + $0x210] sm:$0xf]
      %v1213 = vld [vmem:[%s1 + $0x214] sm:$0xf]
      %v1214 = vld [vmem:[%s1 + $0x218] sm:$0xf]
      %v1215 = vld [vmem:[%s1 + $0x21c] sm:$0xf]
      %v1216 = vld [vmem:[%s1 + $0x220] sm:$0xf]
      %v1217 = vld [vmem:[%s1 + $0x224] sm:$0xf]
      %v1218 = vld [vmem:[%s1 + $0x228] sm:$0xf]
      %v1219 = vld [vmem:[%s1 + $0x22c] sm:$0xf]
      %v1220 = vld [vmem:[%s1 + $0x230] sm:$0xf]
      %v1221 = vld [vmem:[%s1 + $0x234] sm:$0xf]
      %v1222 = vld [vmem:[%s1 + $0x238] sm:$0xf]
      %v1223 = vld [vmem:[%s1 + $0x23c] sm:$0xf]
      %v1368 = vunpack.c.l.b16 %v1080
      %v1369 = vunpack.c.l.b16 %v1081
      %v1370 = vunpack.c.l.b16 %v1082
      %v1371 = vunpack.c.l.b16 %v1083
      %v1372 = vunpack.c.l.b16 %v1084
      %v1373 = vunpack.c.l.b16 %v1085
      %v1374 = vunpack.c.l.b16 %v1086
      %v1375 = vunpack.c.l.b16 %v1087
      %v1376 = vunpack.c.l.b16 %v1088
      %v1377 = vunpack.c.l.b16 %v1089
      %v1378 = vunpack.c.l.b16 %v1090
      %v1379 = vunpack.c.l.b16 %v1091
      %v1380 = vunpack.c.l.b16 %v1092
      %v1381 = vunpack.c.l.b16 %v1093
      %v1382 = vunpack.c.l.b16 %v1094
      %v1383 = vunpack.c.l.b16 %v1095
      %v1384 = vunpack.c.l.b16 %v1096
      %v1385 = vunpack.c.l.b16 %v1097
      %v1386 = vunpack.c.l.b16 %v1098
      %v1387 = vunpack.c.l.b16 %v1099
      %v1388 = vunpack.c.l.b16 %v1100
      %v1389 = vunpack.c.l.b16 %v1101
      %v1390 = vunpack.c.l.b16 %v1102
      %v1391 = vunpack.c.l.b16 %v1103
      %v1392 = vunpack.c.l.b16 %v1104
      %v1393 = vunpack.c.l.b16 %v1105
      %v1394 = vunpack.c.l.b16 %v1106
      %v1395 = vunpack.c.l.b16 %v1107
      %v1396 = vunpack.c.l.b16 %v1108
      %v1397 = vunpack.c.l.b16 %v1109
      %v1398 = vunpack.c.l.b16 %v1110
      %v1399 = vunpack.c.l.b16 %v1111
      %v1400 = vunpack.c.l.b16 %v1112
      %v1401 = vunpack.c.l.b16 %v1113
      %v1402 = vunpack.c.l.b16 %v1114
      %v1403 = vunpack.c.l.b16 %v1115
      %v1404 = vunpack.c.l.b16 %v1116
      %v1405 = vunpack.c.l.b16 %v1117
      %v1406 = vunpack.c.l.b16 %v1118
      %v1407 = vunpack.c.l.b16 %v1119
      %v1408 = vunpack.c.l.b16 %v1120
      %v1409 = vunpack.c.l.b16 %v1121
      %v1410 = vunpack.c.l.b16 %v1122
      %v1411 = vunpack.c.l.b16 %v1123
      %v1412 = vunpack.c.l.b16 %v1124
      %v1413 = vunpack.c.l.b16 %v1125
      %v1414 = vunpack.c.l.b16 %v1126
      %v1415 = vunpack.c.l.b16 %v1127
      %v1416 = vunpack.c.l.b16 %v1128
      %v1417 = vunpack.c.l.b16 %v1129
      %v1418 = vunpack.c.l.b16 %v1130
      %v1419 = vunpack.c.l.b16 %v1131
      %v1420 = vunpack.c.l.b16 %v1132
      %v1421 = vunpack.c.l.b16 %v1133
      %v1422 = vunpack.c.l.b16 %v1134
      %v1423 = vunpack.c.l.b16 %v1135
      %v1424 = vunpack.c.l.b16 %v1136
      %v1425 = vunpack.c.l.b16 %v1137
      %v1426 = vunpack.c.l.b16 %v1138
      %v1427 = vunpack.c.l.b16 %v1139
      %v1428 = vunpack.c.l.b16 %v1140
      %v1429 = vunpack.c.l.b16 %v1141
      %v1430 = vunpack.c.l.b16 %v1142
      %v1431 = vunpack.c.l.b16 %v1143
      %v1432 = vunpack.c.l.b16 %v1144
      %v1433 = vunpack.c.l.b16 %v1145
      %v1434 = vunpack.c.l.b16 %v1146
      %v1435 = vunpack.c.l.b16 %v1147
      %v1436 = vunpack.c.l.b16 %v1148
      %v1437 = vunpack.c.l.b16 %v1149
      %v1438 = vunpack.c.l.b16 %v1150
      %v1439 = vunpack.c.l.b16 %v1151
      %v1440 = vunpack.c.l.b16 %v1152
      %v1441 = vunpack.c.l.b16 %v1153
      %v1442 = vunpack.c.l.b16 %v1154
      %v1443 = vunpack.c.l.b16 %v1155
      %v1444 = vunpack.c.l.b16 %v1156
      %v1445 = vunpack.c.l.b16 %v1157
      %v1446 = vunpack.c.l.b16 %v1158
      %v1447 = vunpack.c.l.b16 %v1159
      %v1448 = vunpack.c.l.b16 %v1160
      %v1449 = vunpack.c.l.b16 %v1161
      %v1450 = vunpack.c.l.b16 %v1162
      %v1451 = vunpack.c.l.b16 %v1163
      %v1452 = vunpack.c.l.b16 %v1164
      %v1453 = vunpack.c.l.b16 %v1165
      %v1454 = vunpack.c.l.b16 %v1166
      %v1455 = vunpack.c.l.b16 %v1167
      %v1456 = vunpack.c.l.b16 %v1168
      %v1457 = vunpack.c.l.b16 %v1169
      %v1458 = vunpack.c.l.b16 %v1170
      %v1459 = vunpack.c.l.b16 %v1171
      %v1460 = vunpack.c.l.b16 %v1172
      %v1461 = vunpack.c.l.b16 %v1173
      %v1462 = vunpack.c.l.b16 %v1174
      %v1463 = vunpack.c.l.b16 %v1175
      %v1464 = vunpack.c.l.b16 %v1176
      %v1465 = vunpack.c.l.b16 %v1177
      %v1466 = vunpack.c.l.b16 %v1178
      %v1467 = vunpack.c.l.b16 %v1179
      %v1468 = vunpack.c.l.b16 %v1180
      %v1469 = vunpack.c.l.b16 %v1181
      %v1470 = vunpack.c.l.b16 %v1182
      %v1471 = vunpack.c.l.b16 %v1183
      %v1472 = vunpack.c.l.b16 %v1184
      %v1473 = vunpack.c.l.b16 %v1185
      %v1474 = vunpack.c.l.b16 %v1186
      %v1475 = vunpack.c.l.b16 %v1187
      %v1476 = vunpack.c.l.b16 %v1188
      %v1477 = vunpack.c.l.b16 %v1189
      %v1478 = vunpack.c.l.b16 %v1190
      %v1479 = vunpack.c.l.b16 %v1191
      %v1480 = vunpack.c.l.b16 %v1192
      %v1481 = vunpack.c.l.b16 %v1193
      %v1482 = vunpack.c.l.b16 %v1194
      %v1483 = vunpack.c.l.b16 %v1195
      %v1484 = vunpack.c.l.b16 %v1196
      %v1485 = vunpack.c.l.b16 %v1197
      %v1486 = vunpack.c.l.b16 %v1198
      %v1487 = vunpack.c.l.b16 %v1199
      %v1488 = vunpack.c.l.b16 %v1200
      %v1489 = vunpack.c.l.b16 %v1201
      %v1490 = vunpack.c.l.b16 %v1202
      %v1491 = vunpack.c.l.b16 %v1203
      %v1492 = vunpack.c.l.b16 %v1204
      %v1493 = vunpack.c.l.b16 %v1205
      %v1494 = vunpack.c.l.b16 %v1206
      %v1495 = vunpack.c.l.b16 %v1207
      %v1496 = vunpack.c.l.b16 %v1208
      %v1497 = vunpack.c.l.b16 %v1209
      %v1498 = vunpack.c.l.b16 %v1210
      %v1499 = vunpack.c.l.b16 %v1211
      %v1500 = vunpack.c.l.b16 %v1212
      %v1501 = vunpack.c.l.b16 %v1213
      %v1502 = vunpack.c.l.b16 %v1214
      %v1503 = vunpack.c.l.b16 %v1215
      %v1504 = vunpack.c.l.b16 %v1216
      %v1505 = vunpack.c.l.b16 %v1217
      %v1506 = vunpack.c.l.b16 %v1218
      %v1507 = vunpack.c.l.b16 %v1219
      %v1508 = vunpack.c.l.b16 %v1220
      %v1509 = vunpack.c.l.b16 %v1221
      %v1510 = vunpack.c.l.b16 %v1222
      %v1511 = vunpack.c.l.b16 %v1223
      %v1512 = vpack.c.b16 %v1369, %v1368
      %v1513 = vpack.c.b16 %v1371, %v1370
      %v1514 = vpack.c.b16 %v1373, %v1372
      %v1515 = vpack.c.b16 %v1375, %v1374
      %v1516 = vpack.c.b16 %v1377, %v1376
      %v1517 = vpack.c.b16 %v1379, %v1378
      %v1518 = vpack.c.b16 %v1381, %v1380
      %v1519 = vpack.c.b16 %v1383, %v1382
      %v1520 = vpack.c.b16 %v1385, %v1384
      %v1521 = vpack.c.b16 %v1387, %v1386
      %v1522 = vpack.c.b16 %v1389, %v1388
      %v1523 = vpack.c.b16 %v1391, %v1390
      %v1524 = vpack.c.b16 %v1393, %v1392
      %v1525 = vpack.c.b16 %v1395, %v1394
      %v1526 = vpack.c.b16 %v1397, %v1396
      %v1527 = vpack.c.b16 %v1399, %v1398
      %v1528 = vpack.c.b16 %v1401, %v1400
      %v1529 = vpack.c.b16 %v1403, %v1402
      %v1530 = vpack.c.b16 %v1405, %v1404
      %v1531 = vpack.c.b16 %v1407, %v1406
      %v1532 = vpack.c.b16 %v1409, %v1408
      %v1533 = vpack.c.b16 %v1411, %v1410
      %v1534 = vpack.c.b16 %v1413, %v1412
      %v1535 = vpack.c.b16 %v1415, %v1414
      %v1536 = vpack.c.b16 %v1417, %v1416
      %v1537 = vpack.c.b16 %v1419, %v1418
      %v1538 = vpack.c.b16 %v1421, %v1420
      %v1539 = vpack.c.b16 %v1423, %v1422
      %v1540 = vpack.c.b16 %v1425, %v1424
      %v1541 = vpack.c.b16 %v1427, %v1426
      %v1542 = vpack.c.b16 %v1429, %v1428
      %v1543 = vpack.c.b16 %v1431, %v1430
      %v1544 = vpack.c.b16 %v1433, %v1432
      %v1545 = vpack.c.b16 %v1435, %v1434
      %v1546 = vpack.c.b16 %v1437, %v1436
      %v1547 = vpack.c.b16 %v1439, %v1438
      %v1548 = vpack.c.b16 %v1441, %v1440
      %v1549 = vpack.c.b16 %v1443, %v1442
      %v1550 = vpack.c.b16 %v1445, %v1444
      %v1551 = vpack.c.b16 %v1447, %v1446
      %v1552 = vpack.c.b16 %v1449, %v1448
      %v1553 = vpack.c.b16 %v1451, %v1450
      %v1554 = vpack.c.b16 %v1453, %v1452
      %v1555 = vpack.c.b16 %v1455, %v1454
      %v1556 = vpack.c.b16 %v1457, %v1456
      %v1557 = vpack.c.b16 %v1459, %v1458
      %v1558 = vpack.c.b16 %v1461, %v1460
      %v1559 = vpack.c.b16 %v1463, %v1462
      %v1560 = vpack.c.b16 %v1465, %v1464
      %v1561 = vpack.c.b16 %v1467, %v1466
      %v1562 = vpack.c.b16 %v1469, %v1468
      %v1563 = vpack.c.b16 %v1471, %v1470
      %v1564 = vpack.c.b16 %v1473, %v1472
      %v1565 = vpack.c.b16 %v1475, %v1474
      %v1566 = vpack.c.b16 %v1477, %v1476
      %v1567 = vpack.c.b16 %v1479, %v1478
      %v1568 = vpack.c.b16 %v1481, %v1480
      %v1569 = vpack.c.b16 %v1483, %v1482
      %v1570 = vpack.c.b16 %v1485, %v1484
      %v1571 = vpack.c.b16 %v1487, %v1486
      %v1572 = vpack.c.b16 %v1489, %v1488
      %v1573 = vpack.c.b16 %v1491, %v1490
      %v1574 = vpack.c.b16 %v1493, %v1492
      %v1575 = vpack.c.b16 %v1495, %v1494
      %v1576 = vpack.c.b16 %v1497, %v1496
      %v1577 = vpack.c.b16 %v1499, %v1498
      %v1578 = vpack.c.b16 %v1501, %v1500
      %v1579 = vpack.c.b16 %v1503, %v1502
      %v1580 = vpack.c.b16 %v1505, %v1504
      %v1581 = vpack.c.b16 %v1507, %v1506
      %v1582 = vpack.c.b16 %v1509, %v1508
      %v1583 = vpack.c.b16 %v1511, %v1510
      %1656 = vmatprep.subr.bf16.mxu0 0
      %1657 = vmatpush1.bf16.msra.mxu0 %v1519
      %1658 = vmatprep.subr.bf16.mxu0 0
      %1659 = vmatpush1.bf16.msra.mxu0 %v1518
      %1660 = vmatprep.subr.bf16.mxu0 0
      %1661 = vmatpush1.bf16.msra.mxu0 %v1517
      %1662 = vmatprep.subr.bf16.mxu0 0
      %1663 = vmatpush1.bf16.msra.mxu0 %v1516
      %1664 = vmatprep.subr.bf16.mxu0 0
      %1665 = vmatpush1.bf16.msra.mxu0 %v1515
      %1666 = vmatprep.subr.bf16.mxu0 0
      %1667 = vmatpush1.bf16.msra.mxu0 %v1514
      %1668 = vmatprep.subr.bf16.mxu0 0
      %1669 = vmatpush1.bf16.msra.mxu0 %v1513
      %1670 = vmatprep.subr.bf16.mxu0 0
      %1671 = vmatpush1.bf16.msra.mxu0 %v1512
      %1672 = vmatprep.subr.bf16.mxu0 0
      %1673 = vmatpush2.bf16.msra.mxu0 %v1527
      %1674 = vmatprep.subr.bf16.mxu0 0
      %1675 = vmatpush2.bf16.msra.mxu0 %v1526
      %1676 = vmatprep.subr.bf16.mxu0 0
      %1677 = vmatpush2.bf16.msra.mxu0 %v1525
      %1678 = vmatprep.subr.bf16.mxu0 0
      %1679 = vmatpush2.bf16.msra.mxu0 %v1524
      %1680 = vmatprep.subr.bf16.mxu0 0
      %1681 = vmatpush2.bf16.msra.mxu0 %v1523
      %1682 = vmatprep.subr.bf16.mxu0 0
      %1683 = vmatpush2.bf16.msra.mxu0 %v1522
      %1684 = vmatprep.subr.bf16.mxu0 0
      %1685 = vmatpush2.bf16.msra.mxu0 %v1521
      %1686 = vmatprep.subr.bf16.mxu0 0
      %1687 = vmatpush2.bf16.msra.mxu0 %v1520
      %1688 = vmatprep.mubr.bf16.mxu0 %v484
      %1689 = vmatmul.mubr.bf16.gmra.mxu0 %v433
      %v1690 = vpop.f32.mrf.mxu0
      %v1691 = vadd.f32 0.0, %v1690
      %v1692 = vpop.f32.mrf.mxu0
      %v1693 = vpop.f32.mrf.mxu0
      %v1694 = vadd.f32 0.0, %v1693
      %v1695 = vpop.f32.mrf.mxu0
      %1696 = vmatprep.mubr.bf16.mxu0 %v492
      %1697 = vmatmul.mubr.bf16.gmra.mxu0 %v434
      %v1698 = vpop.f32.mrf.mxu0
      %v1699 = vadd.f32 0.0, %v1698
      %v1700 = vpop.f32.mrf.mxu0
      %v1701 = vpop.f32.mrf.mxu0
      %v1702 = vadd.f32 0.0, %v1701
      %v1703 = vpop.f32.mrf.mxu0
      %1704 = vmatprep.mubr.bf16.mxu0 %v500
      %1705 = vmatmul.mubr.bf16.gmra.mxu0 %v435
      %v1706 = vpop.f32.mrf.mxu0
      %v1707 = vadd.f32 0.0, %v1706
      %v1708 = vpop.f32.mrf.mxu0
      %v1709 = vpop.f32.mrf.mxu0
      %v1710 = vadd.f32 0.0, %v1709
      %v1711 = vpop.f32.mrf.mxu0
      %1712 = vmatprep.mubr.bf16.mxu0 %v508
      %1713 = vmatmul.mubr.bf16.gmra.mxu0 %v436
      %v1714 = vpop.f32.mrf.mxu0
      %v1715 = vadd.f32 0.0, %v1714
      %v1716 = vpop.f32.mrf.mxu0
      %v1717 = vpop.f32.mrf.mxu0
      %v1718 = vadd.f32 0.0, %v1717
      %v1719 = vpop.f32.mrf.mxu0
      %1720 = vmatprep.mubr.bf16.mxu0 %v516
      %1721 = vmatmul.mubr.bf16.gmra.mxu0 %v437
      %v1722 = vpop.f32.mrf.mxu0
      %v1723 = vadd.f32 0.0, %v1722
      %v1724 = vpop.f32.mrf.mxu0
      %v1725 = vpop.f32.mrf.mxu0
      %v1726 = vadd.f32 0.0, %v1725
      %v1727 = vpop.f32.mrf.mxu0
      %1728 = vmatprep.mubr.bf16.mxu0 %v524
      %1729 = vmatmul.mubr.bf16.gmra.mxu0 %v438
      %v1730 = vpop.f32.mrf.mxu0
      %v1731 = vadd.f32 0.0, %v1730
      %v1732 = vpop.f32.mrf.mxu0
      %v1733 = vpop.f32.mrf.mxu0
      %v1734 = vadd.f32 0.0, %v1733
      %v1735 = vpop.f32.mrf.mxu0
      %1736 = vmatprep.mubr.bf16.mxu0 %v532
      %1737 = vmatmul.mubr.bf16.gmra.mxu0 %v439
      %v1738 = vpop.f32.mrf.mxu0
      %v1739 = vadd.f32 0.0, %v1738
      %v1740 = vpop.f32.mrf.mxu0
      %v1741 = vpop.f32.mrf.mxu0
      %v1742 = vadd.f32 0.0, %v1741
      %v1743 = vpop.f32.mrf.mxu0
      %1744 = vmatprep.mubr.bf16.mxu0 %v540
      %1745 = vmatmul.mubr.bf16.gmra.mxu0 %v440
      %v1746 = vpop.f32.mrf.mxu0
      %v1747 = vadd.f32 0.0, %v1746
      %v1748 = vpop.f32.mrf.mxu0
      %v1749 = vpop.f32.mrf.mxu0
      %v1750 = vadd.f32 0.0, %v1749
      %v1751 = vpop.f32.mrf.mxu0
      %1752 = vmatprep.mubr.bf16.mxu0 %v548
      %1753 = vmatmul.mubr.bf16.gmra.mxu0 %v441
      %v1754 = vpop.f32.mrf.mxu0
      %v1755 = vadd.f32 0.0, %v1754
      %v1756 = vpop.f32.mrf.mxu0
      %v1757 = vpop.f32.mrf.mxu0
      %v1758 = vadd.f32 0.0, %v1757
      %v1759 = vpop.f32.mrf.mxu0
      %1760 = vmatprep.mubr.bf16.mxu0 %v556
      %1761 = vmatmul.mubr.bf16.gmra.mxu0 %v442
      %v1762 = vpop.f32.mrf.mxu0
      %v1763 = vadd.f32 0.0, %v1762
      %v1764 = vpop.f32.mrf.mxu0
      %v1765 = vpop.f32.mrf.mxu0
      %v1766 = vadd.f32 0.0, %v1765
      %v1767 = vpop.f32.mrf.mxu0
      %1768 = vmatprep.mubr.bf16.mxu0 %v564
      %1769 = vmatmul.mubr.bf16.gmra.mxu0 %v443
      %v1770 = vpop.f32.mrf.mxu0
      %v1771 = vadd.f32 0.0, %v1770
      %v1772 = vpop.f32.mrf.mxu0
      %v1773 = vpop.f32.mrf.mxu0
      %v1774 = vadd.f32 0.0, %v1773
      %v1775 = vpop.f32.mrf.mxu0
      %1776 = vmatprep.mubr.bf16.mxu0 %v572
      %1777 = vmatmul.mubr.bf16.gmra.mxu0 %v444
      %v1778 = vpop.f32.mrf.mxu0
      %v1779 = vadd.f32 0.0, %v1778
      %v1780 = vpop.f32.mrf.mxu0
      %v1781 = vpop.f32.mrf.mxu0
      %v1782 = vadd.f32 0.0, %v1781
      %v1783 = vpop.f32.mrf.mxu0
      %1784 = vmatprep.mubr.bf16.mxu0 %v580
      %1785 = vmatmul.mubr.bf16.gmra.mxu0 %v445
      %v1786 = vpop.f32.mrf.mxu0
      %v1787 = vadd.f32 0.0, %v1786
      %v1788 = vpop.f32.mrf.mxu0
      %v1789 = vpop.f32.mrf.mxu0
      %v1790 = vadd.f32 0.0, %v1789
      %v1791 = vpop.f32.mrf.mxu0
      %1792 = vmatprep.mubr.bf16.mxu0 %v588
      %1793 = vmatmul.mubr.bf16.gmra.mxu0 %v446
      %v1794 = vpop.f32.mrf.mxu0
      %v1795 = vadd.f32 0.0, %v1794
      %v1796 = vpop.f32.mrf.mxu0
      %v1797 = vpop.f32.mrf.mxu0
      %v1798 = vadd.f32 0.0, %v1797
      %v1799 = vpop.f32.mrf.mxu0
      %1800 = vmatprep.mubr.bf16.mxu0 %v596
      %1801 = vmatmul.mubr.bf16.gmra.mxu0 %v447
      %v1802 = vpop.f32.mrf.mxu0
      %v1803 = vadd.f32 0.0, %v1802
      %v1804 = vpop.f32.mrf.mxu0
      %v1805 = vpop.f32.mrf.mxu0
      %v1806 = vadd.f32 0.0, %v1805
      %v1807 = vpop.f32.mrf.mxu0
      %1808 = vmatprep.mubr.bf16.mxu0 %v604
      %1809 = vmatmul.mubr.bf16.gmra.mxu0 %v448
      %v1810 = vpop.f32.mrf.mxu0
      %v1811 = vadd.f32 0.0, %v1810
      %v1812 = vpop.f32.mrf.mxu0
      %v1813 = vpop.f32.mrf.mxu0
      %v1814 = vadd.f32 0.0, %v1813
      %v1815 = vpop.f32.mrf.mxu0
      %1816 = vmatprep.mubr.bf16.mxu0 %v612
      %1817 = vmatmul.mubr.bf16.gmra.mxu0 %v449
      %v1818 = vpop.f32.mrf.mxu0
      %v1819 = vadd.f32 0.0, %v1818
      %v1820 = vpop.f32.mrf.mxu0
      %v1821 = vpop.f32.mrf.mxu0
      %v1822 = vadd.f32 0.0, %v1821
      %v1823 = vpop.f32.mrf.mxu0
      %1824 = vmatprep.mubr.bf16.mxu0 %v620
      %1825 = vmatmul.mubr.bf16.gmra.mxu0 %v450
      %v1826 = vpop.f32.mrf.mxu0
      %v1827 = vadd.f32 0.0, %v1826
      %v1828 = vpop.f32.mrf.mxu0
      %v1829 = vpop.f32.mrf.mxu0
      %v1830 = vadd.f32 0.0, %v1829
      %v1831 = vpop.f32.mrf.mxu0
      %1832 = vdwg.mxu0
      %1833 = vmatprep.subr.bf16.mxu0 0
      %1834 = vmatpush1.bf16.msra.mxu0 %v1535
      %1835 = vmatprep.subr.bf16.mxu0 0
      %1836 = vmatpush1.bf16.msra.mxu0 %v1534
      %1837 = vmatprep.subr.bf16.mxu0 0
      %1838 = vmatpush1.bf16.msra.mxu0 %v1533
      %1839 = vmatprep.subr.bf16.mxu0 0
      %1840 = vmatpush1.bf16.msra.mxu0 %v1532
      %1841 = vmatprep.subr.bf16.mxu0 0
      %1842 = vmatpush1.bf16.msra.mxu0 %v1531
      %1843 = vmatprep.subr.bf16.mxu0 0
      %1844 = vmatpush1.bf16.msra.mxu0 %v1530
      %1845 = vmatprep.subr.bf16.mxu0 0
      %1846 = vmatpush1.bf16.msra.mxu0 %v1529
      %1847 = vmatprep.subr.bf16.mxu0 0
      %1848 = vmatpush1.bf16.msra.mxu0 %v1528
      %1849 = vmatprep.subr.bf16.mxu0 0
      %1850 = vmatpush2.bf16.msra.mxu0 %v1543
      %1851 = vmatprep.subr.bf16.mxu0 0
      %1852 = vmatpush2.bf16.msra.mxu0 %v1542
      %1853 = vmatprep.subr.bf16.mxu0 0
      %1854 = vmatpush2.bf16.msra.mxu0 %v1541
      %1855 = vmatprep.subr.bf16.mxu0 0
      %1856 = vmatpush2.bf16.msra.mxu0 %v1540
      %1857 = vmatprep.subr.bf16.mxu0 0
      %1858 = vmatpush2.bf16.msra.mxu0 %v1539
      %1859 = vmatprep.subr.bf16.mxu0 0
      %1860 = vmatpush2.bf16.msra.mxu0 %v1538
      %1861 = vmatprep.subr.bf16.mxu0 0
      %1862 = vmatpush2.bf16.msra.mxu0 %v1537
      %1863 = vmatprep.subr.bf16.mxu0 0
      %1864 = vmatpush2.bf16.msra.mxu0 %v1536
      %1865 = vmatprep.mubr.bf16.mxu0 %v710
      %1866 = vmatmul.mubr.bf16.gmra.mxu0 %v645
      %v1867 = vpop.f32.mrf.mxu0
      %v1868 = vadd.f32 %v1691, %v1867
      %v1869 = vpop.f32.mrf.mxu0
      %v1870 = vpop.f32.mrf.mxu0
      %v1871 = vadd.f32 %v1694, %v1870
      %v1872 = vpop.f32.mrf.mxu0
      %1873 = vmatprep.mubr.bf16.mxu0 %v649
      %1874 = vmatmul.mubr.bf16.gmra.mxu0 %v647
      %v1875 = vpop.f32.mrf.mxu0
      %v1876 = vadd.f32 %v1699, %v1875
      %v1877 = vpop.f32.mrf.mxu0
      %v1878 = vpop.f32.mrf.mxu0
      %v1879 = vadd.f32 %v1702, %v1878
      %v1880 = vpop.f32.mrf.mxu0
      %1881 = vmatprep.mubr.bf16.mxu0 %v651
      %1882 = vmatmul.mubr.bf16.gmra.mxu0 %v649
      %v1883 = vpop.f32.mrf.mxu0
      %v1884 = vadd.f32 %v1707, %v1883
      %v1885 = vpop.f32.mrf.mxu0
      %v1886 = vpop.f32.mrf.mxu0
      %v1887 = vadd.f32 %v1710, %v1886
      %v1888 = vpop.f32.mrf.mxu0
      %1889 = vmatprep.mubr.bf16.mxu0 %v653
      %1890 = vmatmul.mubr.bf16.gmra.mxu0 %v651
      %v1891 = vpop.f32.mrf.mxu0
      %v1892 = vadd.f32 %v1715, %v1891
      %v1893 = vpop.f32.mrf.mxu0
      %v1894 = vpop.f32.mrf.mxu0
      %v1895 = vadd.f32 %v1718, %v1894
      %v1896 = vpop.f32.mrf.mxu0
      %1897 = vmatprep.mubr.bf16.mxu0 %v655
      %1898 = vmatmul.mubr.bf16.gmra.mxu0 %v653
      %v1899 = vpop.f32.mrf.mxu0
      %v1900 = vadd.f32 %v1723, %v1899
      %v1901 = vpop.f32.mrf.mxu0
      %v1902 = vpop.f32.mrf.mxu0
      %v1903 = vadd.f32 %v1726, %v1902
      %v1904 = vpop.f32.mrf.mxu0
      %1905 = vmatprep.mubr.bf16.mxu0 %v657
      %1906 = vmatmul.mubr.bf16.gmra.mxu0 %v655
      %v1907 = vpop.f32.mrf.mxu0
      %v1908 = vadd.f32 %v1731, %v1907
      %v1909 = vpop.f32.mrf.mxu0
      %v1910 = vpop.f32.mrf.mxu0
      %v1911 = vadd.f32 %v1734, %v1910
      %v1912 = vpop.f32.mrf.mxu0
      %1913 = vmatprep.mubr.bf16.mxu0 %v659
      %1914 = vmatmul.mubr.bf16.gmra.mxu0 %v657
      %v1915 = vpop.f32.mrf.mxu0
      %v1916 = vadd.f32 %v1739, %v1915
      %v1917 = vpop.f32.mrf.mxu0
      %v1918 = vpop.f32.mrf.mxu0
      %v1919 = vadd.f32 %v1742, %v1918
      %v1920 = vpop.f32.mrf.mxu0
      %1921 = vmatprep.mubr.bf16.mxu0 %v661
      %1922 = vmatmul.mubr.bf16.gmra.mxu0 %v659
      %v1923 = vpop.f32.mrf.mxu0
      %v1924 = vadd.f32 %v1747, %v1923
      %v1925 = vpop.f32.mrf.mxu0
      %v1926 = vpop.f32.mrf.mxu0
      %v1927 = vadd.f32 %v1750, %v1926
      %v1928 = vpop.f32.mrf.mxu0
      %1929 = vmatprep.mubr.bf16.mxu0 %v663
      %1930 = vmatmul.mubr.bf16.gmra.mxu0 %v661
      %v1931 = vpop.f32.mrf.mxu0
      %v1932 = vadd.f32 %v1755, %v1931
      %v1933 = vpop.f32.mrf.mxu0
      %v1934 = vpop.f32.mrf.mxu0
      %v1935 = vadd.f32 %v1758, %v1934
      %v1936 = vpop.f32.mrf.mxu0
      %1937 = vmatprep.mubr.bf16.mxu0 %v665
      %1938 = vmatmul.mubr.bf16.gmra.mxu0 %v663
      %v1939 = vpop.f32.mrf.mxu0
      %v1940 = vadd.f32 %v1763, %v1939
      %v1941 = vpop.f32.mrf.mxu0
      %v1942 = vpop.f32.mrf.mxu0
      %v1943 = vadd.f32 %v1766, %v1942
      %v1944 = vpop.f32.mrf.mxu0
      %1945 = vmatprep.mubr.bf16.mxu0 %v667
      %1946 = vmatmul.mubr.bf16.gmra.mxu0 %v665
      %v1947 = vpop.f32.mrf.mxu0
      %v1948 = vadd.f32 %v1771, %v1947
      %v1949 = vpop.f32.mrf.mxu0
      %v1950 = vpop.f32.mrf.mxu0
      %v1951 = vadd.f32 %v1774, %v1950
      %v1952 = vpop.f32.mrf.mxu0
      %1953 = vmatprep.mubr.bf16.mxu0 %v669
      %1954 = vmatmul.mubr.bf16.gmra.mxu0 %v667
      %v1955 = vpop.f32.mrf.mxu0
      %v1956 = vadd.f32 %v1779, %v1955
      %v1957 = vpop.f32.mrf.mxu0
      %v1958 = vpop.f32.mrf.mxu0
      %v1959 = vadd.f32 %v1782, %v1958
      %v1960 = vpop.f32.mrf.mxu0
      %1961 = vmatprep.mubr.bf16.mxu0 %v671
      %1962 = vmatmul.mubr.bf16.gmra.mxu0 %v669
      %v1963 = vpop.f32.mrf.mxu0
      %v1964 = vadd.f32 %v1787, %v1963
      %v1965 = vpop.f32.mrf.mxu0
      %v1966 = vpop.f32.mrf.mxu0
      %v1967 = vadd.f32 %v1790, %v1966
      %v1968 = vpop.f32.mrf.mxu0
      %1969 = vmatprep.mubr.bf16.mxu0 %v673
      %1970 = vmatmul.mubr.bf16.gmra.mxu0 %v671
      %v1971 = vpop.f32.mrf.mxu0
      %v1972 = vadd.f32 %v1795, %v1971
      %v1973 = vpop.f32.mrf.mxu0
      %v1974 = vpop.f32.mrf.mxu0
      %v1975 = vadd.f32 %v1798, %v1974
      %v1976 = vpop.f32.mrf.mxu0
      %1977 = vmatprep.mubr.bf16.mxu0 %v675
      %1978 = vmatmul.mubr.bf16.gmra.mxu0 %v673
      %v1979 = vpop.f32.mrf.mxu0
      %v1980 = vadd.f32 %v1803, %v1979
      %v1981 = vpop.f32.mrf.mxu0
      %v1982 = vpop.f32.mrf.mxu0
      %v1983 = vadd.f32 %v1806, %v1982
      %v1984 = vpop.f32.mrf.mxu0
      %1985 = vmatprep.mubr.bf16.mxu0 %v677
      %1986 = vmatmul.mubr.bf16.gmra.mxu0 %v675
      %v1987 = vpop.f32.mrf.mxu0
      %v1988 = vadd.f32 %v1811, %v1987
      %v1989 = vpop.f32.mrf.mxu0
      %v1990 = vpop.f32.mrf.mxu0
      %v1991 = vadd.f32 %v1814, %v1990
      %v1992 = vpop.f32.mrf.mxu0
      %1993 = vmatprep.mubr.bf16.mxu0 %v712
      %1994 = vmatmul.mubr.bf16.gmra.mxu0 %v677
      %v1995 = vpop.f32.mrf.mxu0
      %v1996 = vadd.f32 %v1819, %v1995
      %v1997 = vpop.f32.mrf.mxu0
      %v1998 = vpop.f32.mrf.mxu0
      %v1999 = vadd.f32 %v1822, %v1998
      %v2000 = vpop.f32.mrf.mxu0
      %2001 = vmatprep.mubr.bf16.mxu0 %v714
      %2002 = vmatmul.mubr.bf16.gmra.mxu0 %v679
      %v2003 = vpop.f32.mrf.mxu0
      %v2004 = vadd.f32 %v1827, %v2003
      %v2005 = vpop.f32.mrf.mxu0
      %v2006 = vpop.f32.mrf.mxu0
      %v2007 = vadd.f32 %v1830, %v2006
      %v2008 = vpop.f32.mrf.mxu0
      %2009 = vdwg.mxu0
      %2010 = vmatprep.subr.bf16.mxu0 0
      %2011 = vmatpush1.bf16.msra.mxu0 %v1551
      %2012 = vmatprep.subr.bf16.mxu0 0
      %2013 = vmatpush1.bf16.msra.mxu0 %v1550
      %2014 = vmatprep.subr.bf16.mxu0 0
      %2015 = vmatpush1.bf16.msra.mxu0 %v1549
      %2016 = vmatprep.subr.bf16.mxu0 0
      %2017 = vmatpush1.bf16.msra.mxu0 %v1548
      %2018 = vmatprep.subr.bf16.mxu0 0
      %2019 = vmatpush1.bf16.msra.mxu0 %v1547
      %2020 = vmatprep.subr.bf16.mxu0 0
      %2021 = vmatpush1.bf16.msra.mxu0 %v1546
      %2022 = vmatprep.subr.bf16.mxu0 0
      %2023 = vmatpush1.bf16.msra.mxu0 %v1545
      %2024 = vmatprep.subr.bf16.mxu0 0
      %2025 = vmatpush1.bf16.msra.mxu0 %v1544
      %2026 = vmatprep.subr.bf16.mxu0 0
      %2027 = vmatpush2.bf16.msra.mxu0 %v1559
      %2028 = vmatprep.subr.bf16.mxu0 0
      %2029 = vmatpush2.bf16.msra.mxu0 %v1558
      %2030 = vmatprep.subr.bf16.mxu0 0
      %2031 = vmatpush2.bf16.msra.mxu0 %v1557
      %2032 = vmatprep.subr.bf16.mxu0 0
      %2033 = vmatpush2.bf16.msra.mxu0 %v1556
      %2034 = vmatprep.subr.bf16.mxu0 0
      %2035 = vmatpush2.bf16.msra.mxu0 %v1555
      %2036 = vmatprep.subr.bf16.mxu0 0
      %2037 = vmatpush2.bf16.msra.mxu0 %v1554
      %2038 = vmatprep.subr.bf16.mxu0 0
      %2039 = vmatpush2.bf16.msra.mxu0 %v1553
      %2040 = vmatprep.subr.bf16.mxu0 0
      %2041 = vmatpush2.bf16.msra.mxu0 %v1552
      %2042 = vmatprep.mubr.bf16.mxu0 %v836
      %2043 = vmatmul.mubr.bf16.gmra.mxu0 %v733
      %v2044 = vpop.f32.mrf.mxu0
      %v2045 = vadd.f32 %v1868, %v2044
      %v2046 = vpop.f32.mrf.mxu0
      %v2047 = vpop.f32.mrf.mxu0
      %v2048 = vadd.f32 %v1871, %v2047
      %v2049 = vpop.f32.mrf.mxu0
      %2050 = vmatprep.mubr.bf16.mxu0 %v838
      %2051 = vmatmul.mubr.bf16.gmra.mxu0 %v737
      %v2052 = vpop.f32.mrf.mxu0
      %v2053 = vadd.f32 %v1876, %v2052
      %v2054 = vpop.f32.mrf.mxu0
      %v2055 = vpop.f32.mrf.mxu0
      %v2056 = vadd.f32 %v1879, %v2055
      %v2057 = vpop.f32.mrf.mxu0
      %2058 = vmatprep.mubr.bf16.mxu0 %v840
      %2059 = vmatmul.mubr.bf16.gmra.mxu0 %v741
      %v2060 = vpop.f32.mrf.mxu0
      %v2061 = vadd.f32 %v1884, %v2060
      %v2062 = vpop.f32.mrf.mxu0
      %v2063 = vpop.f32.mrf.mxu0
      %v2064 = vadd.f32 %v1887, %v2063
      %v2065 = vpop.f32.mrf.mxu0
      %2066 = vmatprep.mubr.bf16.mxu0 %v842
      %2067 = vmatmul.mubr.bf16.gmra.mxu0 %v745
      %v2068 = vpop.f32.mrf.mxu0
      %v2069 = vadd.f32 %v1892, %v2068
      %v2070 = vpop.f32.mrf.mxu0
      %v2071 = vpop.f32.mrf.mxu0
      %v2072 = vadd.f32 %v1895, %v2071
      %v2073 = vpop.f32.mrf.mxu0
      %2074 = vmatprep.mubr.bf16.mxu0 %v844
      %2075 = vmatmul.mubr.bf16.gmra.mxu0 %v749
      %v2076 = vpop.f32.mrf.mxu0
      %v2077 = vadd.f32 %v1900, %v2076
      %v2078 = vpop.f32.mrf.mxu0
      %v2079 = vpop.f32.mrf.mxu0
      %v2080 = vadd.f32 %v1903, %v2079
      %v2081 = vpop.f32.mrf.mxu0
      %2082 = vmatprep.mubr.bf16.mxu0 %v846
      %2083 = vmatmul.mubr.bf16.gmra.mxu0 %v753
      %v2084 = vpop.f32.mrf.mxu0
      %v2085 = vadd.f32 %v1908, %v2084
      %v2086 = vpop.f32.mrf.mxu0
      %v2087 = vpop.f32.mrf.mxu0
      %v2088 = vadd.f32 %v1911, %v2087
      %v2089 = vpop.f32.mrf.mxu0
      %2090 = vmatprep.mubr.bf16.mxu0 %v848
      %2091 = vmatmul.mubr.bf16.gmra.mxu0 %v757
      %v2092 = vpop.f32.mrf.mxu0
      %v2093 = vadd.f32 %v1916, %v2092
      %v2094 = vpop.f32.mrf.mxu0
      %v2095 = vpop.f32.mrf.mxu0
      %v2096 = vadd.f32 %v1919, %v2095
      %v2097 = vpop.f32.mrf.mxu0
      %2098 = vmatprep.mubr.bf16.mxu0 %v850
      %2099 = vmatmul.mubr.bf16.gmra.mxu0 %v761
      %v2100 = vpop.f32.mrf.mxu0
      %v2101 = vadd.f32 %v1924, %v2100
      %v2102 = vpop.f32.mrf.mxu0
      %v2103 = vpop.f32.mrf.mxu0
      %v2104 = vadd.f32 %v1927, %v2103
      %v2105 = vpop.f32.mrf.mxu0
      %2106 = vmatprep.mubr.bf16.mxu0 %v852
      %2107 = vmatmul.mubr.bf16.gmra.mxu0 %v765
      %v2108 = vpop.f32.mrf.mxu0
      %v2109 = vadd.f32 %v1932, %v2108
      %v2110 = vpop.f32.mrf.mxu0
      %v2111 = vpop.f32.mrf.mxu0
      %v2112 = vadd.f32 %v1935, %v2111
      %v2113 = vpop.f32.mrf.mxu0
      %2114 = vmatprep.mubr.bf16.mxu0 %v854
      %2115 = vmatmul.mubr.bf16.gmra.mxu0 %v769
      %v2116 = vpop.f32.mrf.mxu0
      %v2117 = vadd.f32 %v1940, %v2116
      %v2118 = vpop.f32.mrf.mxu0
      %v2119 = vpop.f32.mrf.mxu0
      %v2120 = vadd.f32 %v1943, %v2119
      %v2121 = vpop.f32.mrf.mxu0
      %2122 = vmatprep.mubr.bf16.mxu0 %v856
      %2123 = vmatmul.mubr.bf16.gmra.mxu0 %v773
      %v2124 = vpop.f32.mrf.mxu0
      %v2125 = vadd.f32 %v1948, %v2124
      %v2126 = vpop.f32.mrf.mxu0
      %v2127 = vpop.f32.mrf.mxu0
      %v2128 = vadd.f32 %v1951, %v2127
      %v2129 = vpop.f32.mrf.mxu0
      %2130 = vmatprep.mubr.bf16.mxu0 %v858
      %2131 = vmatmul.mubr.bf16.gmra.mxu0 %v777
      %v2132 = vpop.f32.mrf.mxu0
      %v2133 = vadd.f32 %v1956, %v2132
      %v2134 = vpop.f32.mrf.mxu0
      %v2135 = vpop.f32.mrf.mxu0
      %v2136 = vadd.f32 %v1959, %v2135
      %v2137 = vpop.f32.mrf.mxu0
      %2138 = vmatprep.mubr.bf16.mxu0 %v860
      %2139 = vmatmul.mubr.bf16.gmra.mxu0 %v781
      %v2140 = vpop.f32.mrf.mxu0
      %v2141 = vadd.f32 %v1964, %v2140
      %v2142 = vpop.f32.mrf.mxu0
      %v2143 = vpop.f32.mrf.mxu0
      %v2144 = vadd.f32 %v1967, %v2143
      %v2145 = vpop.f32.mrf.mxu0
      %2146 = vmatprep.mubr.bf16.mxu0 %v862
      %2147 = vmatmul.mubr.bf16.gmra.mxu0 %v785
      %v2148 = vpop.f32.mrf.mxu0
      %v2149 = vadd.f32 %v1972, %v2148
      %v2150 = vpop.f32.mrf.mxu0
      %v2151 = vpop.f32.mrf.mxu0
      %v2152 = vadd.f32 %v1975, %v2151
      %v2153 = vpop.f32.mrf.mxu0
      %2154 = vmatprep.mubr.bf16.mxu0 %v864
      %2155 = vmatmul.mubr.bf16.gmra.mxu0 %v789
      %v2156 = vpop.f32.mrf.mxu0
      %v2157 = vadd.f32 %v1980, %v2156
      %v2158 = vpop.f32.mrf.mxu0
      %v2159 = vpop.f32.mrf.mxu0
      %v2160 = vadd.f32 %v1983, %v2159
      %v2161 = vpop.f32.mrf.mxu0
      %2162 = vmatprep.mubr.bf16.mxu0 %v866
      %2163 = vmatmul.mubr.bf16.gmra.mxu0 %v793
      %v2164 = vpop.f32.mrf.mxu0
      %v2165 = vadd.f32 %v1988, %v2164
      %v2166 = vpop.f32.mrf.mxu0
      %v2167 = vpop.f32.mrf.mxu0
      %v2168 = vadd.f32 %v1991, %v2167
      %v2169 = vpop.f32.mrf.mxu0
      %2170 = vmatprep.mubr.bf16.mxu0 %v868
      %2171 = vmatmul.mubr.bf16.gmra.mxu0 %v802
      %v2172 = vpop.f32.mrf.mxu0
      %v2173 = vadd.f32 %v1996, %v2172
      %v2174 = vpop.f32.mrf.mxu0
      %v2175 = vpop.f32.mrf.mxu0
      %v2176 = vadd.f32 %v1999, %v2175
      %v2177 = vpop.f32.mrf.mxu0
      %2178 = vmatprep.mubr.bf16.mxu0 %v870
      %2179 = vmatmul.mubr.bf16.gmra.mxu0 %v811
      %v2180 = vpop.f32.mrf.mxu0
      %v2181 = vadd.f32 %v2004, %v2180
      %v2182 = vpop.f32.mrf.mxu0
      %v2183 = vpop.f32.mrf.mxu0
      %v2184 = vadd.f32 %v2007, %v2183
      %v2185 = vpop.f32.mrf.mxu0
      %2186 = vdwg.mxu0
      %2187 = vmatprep.subr.bf16.mxu0 0
      %2188 = vmatpush1.bf16.msra.mxu0 %v1567
      %2189 = vmatprep.subr.bf16.mxu0 0
      %2190 = vmatpush1.bf16.msra.mxu0 %v1566
      %2191 = vmatprep.subr.bf16.mxu0 0
      %2192 = vmatpush1.bf16.msra.mxu0 %v1565
      %2193 = vmatprep.subr.bf16.mxu0 0
      %2194 = vmatpush1.bf16.msra.mxu0 %v1564
      %2195 = vmatprep.subr.bf16.mxu0 0
      %2196 = vmatpush1.bf16.msra.mxu0 %v1563
      %2197 = vmatprep.subr.bf16.mxu0 0
      %2198 = vmatpush1.bf16.msra.mxu0 %v1562
      %2199 = vmatprep.subr.bf16.mxu0 0
      %2200 = vmatpush1.bf16.msra.mxu0 %v1561
      %2201 = vmatprep.subr.bf16.mxu0 0
      %2202 = vmatpush1.bf16.msra.mxu0 %v1560
      %2203 = vmatprep.subr.bf16.mxu0 0
      %2204 = vmatpush2.bf16.msra.mxu0 %v1575
      %2205 = vmatprep.subr.bf16.mxu0 0
      %2206 = vmatpush2.bf16.msra.mxu0 %v1574
      %2207 = vmatprep.subr.bf16.mxu0 0
      %2208 = vmatpush2.bf16.msra.mxu0 %v1573
      %2209 = vmatprep.subr.bf16.mxu0 0
      %2210 = vmatpush2.bf16.msra.mxu0 %v1572
      %2211 = vmatprep.subr.bf16.mxu0 0
      %2212 = vmatpush2.bf16.msra.mxu0 %v1571
      %2213 = vmatprep.subr.bf16.mxu0 0
      %2214 = vmatpush2.bf16.msra.mxu0 %v1570
      %2215 = vmatprep.subr.bf16.mxu0 0
      %2216 = vmatpush2.bf16.msra.mxu0 %v1569
      %2217 = vmatprep.subr.bf16.mxu0 0
      %2218 = vmatpush2.bf16.msra.mxu0 %v1568
      %2219 = vmatprep.mubr.bf16.mxu0 %v924
      %2220 = vmatmul.mubr.bf16.gmra.mxu0 %v901
      %v2221 = vpop.f32.mrf.mxu0
      %v2222 = vadd.f32 %v2045, %v2221
      %v2223 = vpop.f32.mrf.mxu0
      %v2224 = vpop.f32.mrf.mxu0
      %v2225 = vadd.f32 %v2048, %v2224
      %v2226 = vpop.f32.mrf.mxu0
      %2227 = vmatprep.mubr.bf16.mxu0 %v928
      %2228 = vmatmul.mubr.bf16.gmra.mxu0 %v840
      %v2229 = vpop.f32.mrf.mxu0
      %v2230 = vadd.f32 %v2053, %v2229
      %v2231 = vpop.f32.mrf.mxu0
      %v2232 = vpop.f32.mrf.mxu0
      %v2233 = vadd.f32 %v2056, %v2232
      %v2234 = vpop.f32.mrf.mxu0
      %2235 = vmatprep.mubr.bf16.mxu0 %v932
      %2236 = vmatmul.mubr.bf16.gmra.mxu0 %v842
      %v2237 = vpop.f32.mrf.mxu0
      %v2238 = vadd.f32 %v2061, %v2237
      %v2239 = vpop.f32.mrf.mxu0
      %v2240 = vpop.f32.mrf.mxu0
      %v2241 = vadd.f32 %v2064, %v2240
      %v2242 = vpop.f32.mrf.mxu0
      %2243 = vmatprep.mubr.bf16.mxu0 %v936
      %2244 = vmatmul.mubr.bf16.gmra.mxu0 %v844
      %v2245 = vpop.f32.mrf.mxu0
      %v2246 = vadd.f32 %v2069, %v2245
      %v2247 = vpop.f32.mrf.mxu0
      %v2248 = vpop.f32.mrf.mxu0
      %v2249 = vadd.f32 %v2072, %v2248
      %v2250 = vpop.f32.mrf.mxu0
      %2251 = vmatprep.mubr.bf16.mxu0 %v940
      %2252 = vmatmul.mubr.bf16.gmra.mxu0 %v846
      %v2253 = vpop.f32.mrf.mxu0
      %v2254 = vadd.f32 %v2077, %v2253
      %v2255 = vpop.f32.mrf.mxu0
      %v2256 = vpop.f32.mrf.mxu0
      %v2257 = vadd.f32 %v2080, %v2256
      %v2258 = vpop.f32.mrf.mxu0
      %2259 = vmatprep.mubr.bf16.mxu0 %v944
      %2260 = vmatmul.mubr.bf16.gmra.mxu0 %v848
      %v2261 = vpop.f32.mrf.mxu0
      %v2262 = vadd.f32 %v2085, %v2261
      %v2263 = vpop.f32.mrf.mxu0
      %v2264 = vpop.f32.mrf.mxu0
      %v2265 = vadd.f32 %v2088, %v2264
      %v2266 = vpop.f32.mrf.mxu0
      %2267 = vmatprep.mubr.bf16.mxu0 %v948
      %2268 = vmatmul.mubr.bf16.gmra.mxu0 %v850
      %v2269 = vpop.f32.mrf.mxu0
      %v2270 = vadd.f32 %v2093, %v2269
      %v2271 = vpop.f32.mrf.mxu0
      %v2272 = vpop.f32.mrf.mxu0
      %v2273 = vadd.f32 %v2096, %v2272
      %v2274 = vpop.f32.mrf.mxu0
      %2275 = vmatprep.mubr.bf16.mxu0 %v952
      %2276 = vmatmul.mubr.bf16.gmra.mxu0 %v852
      %v2277 = vpop.f32.mrf.mxu0
      %v2278 = vadd.f32 %v2101, %v2277
      %v2279 = vpop.f32.mrf.mxu0
      %v2280 = vpop.f32.mrf.mxu0
      %v2281 = vadd.f32 %v2104, %v2280
      %v2282 = vpop.f32.mrf.mxu0
      %2283 = vmatprep.mubr.bf16.mxu0 %v956
      %2284 = vmatmul.mubr.bf16.gmra.mxu0 %v854
      %v2285 = vpop.f32.mrf.mxu0
      %v2286 = vadd.f32 %v2109, %v2285
      %v2287 = vpop.f32.mrf.mxu0
      %v2288 = vpop.f32.mrf.mxu0
      %v2289 = vadd.f32 %v2112, %v2288
      %v2290 = vpop.f32.mrf.mxu0
      %2291 = vmatprep.mubr.bf16.mxu0 %v960
      %2292 = vmatmul.mubr.bf16.gmra.mxu0 %v856
      %v2293 = vpop.f32.mrf.mxu0
      %v2294 = vadd.f32 %v2117, %v2293
      %v2295 = vpop.f32.mrf.mxu0
      %v2296 = vpop.f32.mrf.mxu0
      %v2297 = vadd.f32 %v2120, %v2296
      %v2298 = vpop.f32.mrf.mxu0
      %2299 = vmatprep.mubr.bf16.mxu0 %v964
      %2300 = vmatmul.mubr.bf16.gmra.mxu0 %v858
      %v2301 = vpop.f32.mrf.mxu0
      %v2302 = vadd.f32 %v2125, %v2301
      %v2303 = vpop.f32.mrf.mxu0
      %v2304 = vpop.f32.mrf.mxu0
      %v2305 = vadd.f32 %v2128, %v2304
      %v2306 = vpop.f32.mrf.mxu0
      %2307 = vmatprep.mubr.bf16.mxu0 %v968
      %2308 = vmatmul.mubr.bf16.gmra.mxu0 %v860
      %v2309 = vpop.f32.mrf.mxu0
      %v2310 = vadd.f32 %v2133, %v2309
      %v2311 = vpop.f32.mrf.mxu0
      %v2312 = vpop.f32.mrf.mxu0
      %v2313 = vadd.f32 %v2136, %v2312
      %v2314 = vpop.f32.mrf.mxu0
      %2315 = vmatprep.mubr.bf16.mxu0 %v972
      %2316 = vmatmul.mubr.bf16.gmra.mxu0 %v862
      %v2317 = vpop.f32.mrf.mxu0
      %v2318 = vadd.f32 %v2141, %v2317
      %v2319 = vpop.f32.mrf.mxu0
      %v2320 = vpop.f32.mrf.mxu0
      %v2321 = vadd.f32 %v2144, %v2320
      %v2322 = vpop.f32.mrf.mxu0
      %2323 = vmatprep.mubr.bf16.mxu0 %v976
      %2324 = vmatmul.mubr.bf16.gmra.mxu0 %v864
      %v2325 = vpop.f32.mrf.mxu0
      %v2326 = vadd.f32 %v2149, %v2325
      %v2327 = vpop.f32.mrf.mxu0
      %v2328 = vpop.f32.mrf.mxu0
      %v2329 = vadd.f32 %v2152, %v2328
      %v2330 = vpop.f32.mrf.mxu0
      %2331 = vmatprep.mubr.bf16.mxu0 %v980
      %2332 = vmatmul.mubr.bf16.gmra.mxu0 %v866
      %v2333 = vpop.f32.mrf.mxu0
      %v2334 = vadd.f32 %v2157, %v2333
      %v2335 = vpop.f32.mrf.mxu0
      %v2336 = vpop.f32.mrf.mxu0
      %v2337 = vadd.f32 %v2160, %v2336
      %v2338 = vpop.f32.mrf.mxu0
      %2339 = vmatprep.mubr.bf16.mxu0 %v984
      %2340 = vmatmul.mubr.bf16.gmra.mxu0 %v868
      %v2341 = vpop.f32.mrf.mxu0
      %v2342 = vadd.f32 %v2165, %v2341
      %v2343 = vpop.f32.mrf.mxu0
      %v2344 = vpop.f32.mrf.mxu0
      %v2345 = vadd.f32 %v2168, %v2344
      %v2346 = vpop.f32.mrf.mxu0
      %2347 = vmatprep.mubr.bf16.mxu0 %v993
      %2348 = vmatmul.mubr.bf16.gmra.mxu0 %v903
      %v2349 = vpop.f32.mrf.mxu0
      %v2350 = vadd.f32 %v2173, %v2349
      %v2351 = vpop.f32.mrf.mxu0
      %v2352 = vpop.f32.mrf.mxu0
      %v2353 = vadd.f32 %v2176, %v2352
      %v2354 = vpop.f32.mrf.mxu0
      %2355 = vmatprep.mubr.bf16.mxu0 %v1002
      %2356 = vmatmul.mubr.bf16.gmra.mxu0 %v905
      %v2357 = vpop.f32.mrf.mxu0
      %v2358 = vadd.f32 %v2181, %v2357
      %v2359 = vpop.f32.mrf.mxu0
      %v2360 = vpop.f32.mrf.mxu0
      %v2361 = vadd.f32 %v2184, %v2360
      %v2362 = vpop.f32.mrf.mxu0
      %2363 = vdwg.mxu0
      %2364 = vmatprep.subr.bf16.mxu0 0
      %2365 = vmatpush1.bf16.msra.mxu0 %v1583
      %2366 = vmatprep.subr.bf16.mxu0 0
      %2367 = vmatpush1.bf16.msra.mxu0 %v1582
      %2368 = vmatprep.subr.bf16.mxu0 0
      %2369 = vmatpush1.bf16.msra.mxu0 %v1581
      %2370 = vmatprep.subr.bf16.mxu0 0
      %2371 = vmatpush1.bf16.msra.mxu0 %v1580
      %2372 = vmatprep.subr.bf16.mxu0 0
      %2373 = vmatpush1.bf16.msra.mxu0 %v1579
      %2374 = vmatprep.subr.bf16.mxu0 0
      %2375 = vmatpush1.bf16.msra.mxu0 %v1578
      %2376 = vmatprep.subr.bf16.mxu0 0
      %2377 = vmatpush1.bf16.msra.mxu0 %v1577
      %2378 = vmatprep.subr.bf16.mxu0 0
      %2379 = vmatpush1.bf16.msra.mxu0 %v1576
      %2380 = vmatprep.subr.bf16.mxu0 0
      %2381 = vmatpush2.bf16.msra.mxu0 0
      %2382 = vmatprep.subr.bf16.mxu0 0
      %2383 = vmatpush2.bf16.msra.mxu0 0
      %2384 = vmatprep.subr.bf16.mxu0 0
      %2385 = vmatpush2.bf16.msra.mxu0 0
      %2386 = vmatprep.subr.bf16.mxu0 0
      %2387 = vmatpush2.bf16.msra.mxu0 0
      %2388 = vmatprep.subr.bf16.mxu0 0
      %2389 = vmatpush2.bf16.msra.mxu0 0
      %2390 = vmatprep.subr.bf16.mxu0 0
      %2391 = vmatpush2.bf16.msra.mxu0 0
      %2392 = vmatprep.subr.bf16.mxu0 0
      %2393 = vmatpush2.bf16.msra.mxu0 0
      %2394 = vmatprep.subr.bf16.mxu0 0
      %2395 = vmatpush2.bf16.msra.mxu0 0
      %2396 = vmatprep.mubr.bf16.mxu0 0
      %2397 = vmatmul.mubr.bf16.gmra.mxu0 %v1027
      %v2398 = vpop.f32.mrf.mxu0
      %v2399 = vadd.f32 %v2222, %v2398
      %v2400 = vpop.f32.mrf.mxu0
      %v2401 = vpop.f32.mrf.mxu0
      %v2402 = vadd.f32 %v2225, %v2401
      %v2403 = vpop.f32.mrf.mxu0
      %2404 = vmatprep.mubr.bf16.mxu0 0
      %2405 = vmatmul.mubr.bf16.gmra.mxu0 %v1029
      %v2406 = vpop.f32.mrf.mxu0
      %v2407 = vadd.f32 %v2230, %v2406
      %v2408 = vpop.f32.mrf.mxu0
      %v2409 = vpop.f32.mrf.mxu0
      %v2410 = vadd.f32 %v2233, %v2409
      %v2411 = vpop.f32.mrf.mxu0
      %2412 = vmatprep.mubr.bf16.mxu0 0
      %2413 = vmatmul.mubr.bf16.gmra.mxu0 %v1031
      %v2414 = vpop.f32.mrf.mxu0
      %v2415 = vadd.f32 %v2238, %v2414
      %v2416 = vpop.f32.mrf.mxu0
      %v2417 = vpop.f32.mrf.mxu0
      %v2418 = vadd.f32 %v2241, %v2417
      %v2419 = vpop.f32.mrf.mxu0
      %2420 = vmatprep.mubr.bf16.mxu0 0
      %2421 = vmatmul.mubr.bf16.gmra.mxu0 %v1033
      %v2422 = vpop.f32.mrf.mxu0
      %v2423 = vadd.f32 %v2246, %v2422
      %v2424 = vpop.f32.mrf.mxu0
      %v2425 = vpop.f32.mrf.mxu0
      %v2426 = vadd.f32 %v2249, %v2425
      %v2427 = vpop.f32.mrf.mxu0
      %2428 = vmatprep.mubr.bf16.mxu0 0
      %2429 = vmatmul.mubr.bf16.gmra.mxu0 %v1035
      %v2430 = vpop.f32.mrf.mxu0
      %v2431 = vadd.f32 %v2254, %v2430
      %v2432 = vpop.f32.mrf.mxu0
      %v2433 = vpop.f32.mrf.mxu0
      %v2434 = vadd.f32 %v2257, %v2433
      %v2435 = vpop.f32.mrf.mxu0
      %2436 = vmatprep.mubr.bf16.mxu0 0
      %2437 = vmatmul.mubr.bf16.gmra.mxu0 %v1037
      %v2438 = vpop.f32.mrf.mxu0
      %v2439 = vadd.f32 %v2262, %v2438
      %v2440 = vpop.f32.mrf.mxu0
      %v2441 = vpop.f32.mrf.mxu0
      %v2442 = vadd.f32 %v2265, %v2441
      %v2443 = vpop.f32.mrf.mxu0
      %2444 = vmatprep.mubr.bf16.mxu0 0
      %2445 = vmatmul.mubr.bf16.gmra.mxu0 %v1039
      %v2446 = vpop.f32.mrf.mxu0
      %v2447 = vadd.f32 %v2270, %v2446
      %v2448 = vpop.f32.mrf.mxu0
      %v2449 = vpop.f32.mrf.mxu0
      %v2450 = vadd.f32 %v2273, %v2449
      %v2451 = vpop.f32.mrf.mxu0
      %2452 = vmatprep.mubr.bf16.mxu0 0
      %2453 = vmatmul.mubr.bf16.gmra.mxu0 %v1041
      %v2454 = vpop.f32.mrf.mxu0
      %v2455 = vadd.f32 %v2278, %v2454
      %v2456 = vpop.f32.mrf.mxu0
      %v2457 = vpop.f32.mrf.mxu0
      %v2458 = vadd.f32 %v2281, %v2457
      %v2459 = vpop.f32.mrf.mxu0
      %2460 = vmatprep.mubr.bf16.mxu0 0
      %2461 = vmatmul.mubr.bf16.gmra.mxu0 %v1043
      %v2462 = vpop.f32.mrf.mxu0
      %v2463 = vadd.f32 %v2286, %v2462
      %v2464 = vpop.f32.mrf.mxu0
      %v2465 = vpop.f32.mrf.mxu0
      %v2466 = vadd.f32 %v2289, %v2465
      %v2467 = vpop.f32.mrf.mxu0
      %2468 = vmatprep.mubr.bf16.mxu0 0
      %2469 = vmatmul.mubr.bf16.gmra.mxu0 %v1045
      %v2470 = vpop.f32.mrf.mxu0
      %v2471 = vadd.f32 %v2294, %v2470
      %v2472 = vpop.f32.mrf.mxu0
      %v2473 = vpop.f32.mrf.mxu0
      %v2474 = vadd.f32 %v2297, %v2473
      %v2475 = vpop.f32.mrf.mxu0
      %2476 = vmatprep.mubr.bf16.mxu0 0
      %2477 = vmatmul.mubr.bf16.gmra.mxu0 %v1047
      %v2478 = vpop.f32.mrf.mxu0
      %v2479 = vadd.f32 %v2302, %v2478
      %v2480 = vpop.f32.mrf.mxu0
      %v2481 = vpop.f32.mrf.mxu0
      %v2482 = vadd.f32 %v2305, %v2481
      %v2483 = vpop.f32.mrf.mxu0
      %2484 = vmatprep.mubr.bf16.mxu0 0
      %2485 = vmatmul.mubr.bf16.gmra.mxu0 %v1049
      %v2486 = vpop.f32.mrf.mxu0
      %v2487 = vadd.f32 %v2310, %v2486
      %v2488 = vpop.f32.mrf.mxu0
      %v2489 = vpop.f32.mrf.mxu0
      %v2490 = vadd.f32 %v2313, %v2489
      %v2491 = vpop.f32.mrf.mxu0
      %2492 = vmatprep.mubr.bf16.mxu0 0
      %2493 = vmatmul.mubr.bf16.gmra.mxu0 %v1051
      %v2494 = vpop.f32.mrf.mxu0
      %v2495 = vadd.f32 %v2318, %v2494
      %v2496 = vpop.f32.mrf.mxu0
      %v2497 = vpop.f32.mrf.mxu0
      %v2498 = vadd.f32 %v2321, %v2497
      %v2499 = vpop.f32.mrf.mxu0
      %2500 = vmatprep.mubr.bf16.mxu0 0
      %2501 = vmatmul.mubr.bf16.gmra.mxu0 %v1053
      %v2502 = vpop.f32.mrf.mxu0
      %v2503 = vadd.f32 %v2326, %v2502
      %v2504 = vpop.f32.mrf.mxu0
      %v2505 = vpop.f32.mrf.mxu0
      %v2506 = vadd.f32 %v2329, %v2505
      %v2507 = vpop.f32.mrf.mxu0
      %2508 = vmatprep.mubr.bf16.mxu0 0
      %2509 = vmatmul.mubr.bf16.gmra.mxu0 %v1055
      %v2510 = vpop.f32.mrf.mxu0
      %v2511 = vadd.f32 %v2334, %v2510
      %v2512 = vpop.f32.mrf.mxu0
      %v2513 = vpop.f32.mrf.mxu0
      %v2514 = vadd.f32 %v2337, %v2513
      %v2515 = vpop.f32.mrf.mxu0
      %2516 = vmatprep.mubr.bf16.mxu0 0
      %2517 = vmatmul.mubr.bf16.gmra.mxu0 %v1057
      %v2518 = vpop.f32.mrf.mxu0
      %v2519 = vadd.f32 %v2342, %v2518
      %v2520 = vpop.f32.mrf.mxu0
      %v2521 = vpop.f32.mrf.mxu0
      %v2522 = vadd.f32 %v2345, %v2521
      %v2523 = vpop.f32.mrf.mxu0
      %2524 = vmatprep.mubr.bf16.mxu0 0
      %2525 = vmatmul.mubr.bf16.gmra.mxu0 %v1059
      %v2526 = vpop.f32.mrf.mxu0
      %v2527 = vadd.f32 %v2350, %v2526
      %v2528 = vpop.f32.mrf.mxu0
      %v2529 = vpop.f32.mrf.mxu0
      %v2530 = vadd.f32 %v2353, %v2529
      %v2531 = vpop.f32.mrf.mxu0
      %2532 = vmatprep.mubr.bf16.mxu0 0
      %2533 = vmatmul.mubr.bf16.gmra.mxu0 %v1061
      %v2534 = vpop.f32.mrf.mxu0
      %v2535 = vadd.f32 %v2358, %v2534
      %v2536 = vpop.f32.mrf.mxu0
      %v2537 = vpop.f32.mrf.mxu0
      %v2538 = vadd.f32 %v2361, %v2537
      %v2539 = vpop.f32.mrf.mxu0
      %2540 = vdwg.mxu0
      %v2541 = vpack.c.bf16 %v2402, %v2399
      %v2542 = vpack.c.bf16 %v2410, %v2407
      %v2543 = vpack.c.bf16 %v2418, %v2415
      %v2544 = vpack.c.bf16 %v2426, %v2423
      %v2545 = vpack.c.bf16 %v2434, %v2431
      %v2546 = vpack.c.bf16 %v2442, %v2439
      %v2547 = vpack.c.bf16 %v2450, %v2447
      %v2548 = vpack.c.bf16 %v2458, %v2455
      %v2549 = vpack.c.bf16 %v2466, %v2463
      %v2550 = vpack.c.bf16 %v2474, %v2471
      %v2551 = vpack.c.bf16 %v2482, %v2479
      %v2552 = vpack.c.bf16 %v2490, %v2487
      %v2553 = vpack.c.bf16 %v2498, %v2495
      %v2554 = vpack.c.bf16 %v2506, %v2503
      %v2555 = vpack.c.bf16 %v2514, %v2511
      %v2556 = vpack.c.bf16 %v2522, %v2519
      %v2557 = vpack.c.bf16 %v2530, %v2527
      %v2558 = vpack.c.bf16 %v2538, %v2535
      %v2577 = vunpack.c.l.b16 %v2541
      %v2578 = vunpack.c.h.b16 %v2541
      %v2579 = vunpack.c.l.b16 %v2542
      %v2580 = vunpack.c.h.b16 %v2542
      %v2581 = vunpack.c.l.b16 %v2543
      %v2582 = vunpack.c.h.b16 %v2543
      %v2583 = vunpack.c.l.b16 %v2544
      %v2584 = vunpack.c.h.b16 %v2544
      %v2585 = vunpack.c.l.b16 %v2545
      %v2586 = vunpack.c.h.b16 %v2545
      %v2587 = vunpack.c.l.b16 %v2546
      %v2588 = vunpack.c.h.b16 %v2546
      %v2589 = vunpack.c.l.b16 %v2547
      %v2590 = vunpack.c.h.b16 %v2547
      %v2591 = vunpack.c.l.b16 %v2548
      %v2592 = vunpack.c.h.b16 %v2548
      %v2593 = vunpack.c.l.b16 %v2549
      %v2594 = vunpack.c.h.b16 %v2549
      %v2595 = vunpack.c.l.b16 %v2550
      %v2596 = vunpack.c.h.b16 %v2550
      %v2597 = vunpack.c.l.b16 %v2551
      %v2598 = vunpack.c.h.b16 %v2551
      %v2599 = vunpack.c.l.b16 %v2552
      %v2600 = vunpack.c.h.b16 %v2552
      %v2601 = vunpack.c.l.b16 %v2553
      %v2602 = vunpack.c.h.b16 %v2553
      %v2603 = vunpack.c.l.b16 %v2554
      %v2604 = vunpack.c.h.b16 %v2554
      %v2605 = vunpack.c.l.b16 %v2555
      %v2606 = vunpack.c.h.b16 %v2555
      %v2607 = vunpack.c.l.b16 %v2556
      %v2608 = vunpack.c.h.b16 %v2556
      %v2609 = vunpack.c.l.b16 %v2557
      %v2610 = vunpack.c.h.b16 %v2557
      %v2611 = vunpack.c.l.b16 %v2558
      %v2612 = vunpack.c.h.b16 %v2558
      %v2613 = vpack.c.b16 %v2577, %v2577
      %v2614 = vpack.c.b16 %v2578, %v2578
      %v2615 = vpack.c.b16 %v2579, %v2579
      %v2616 = vpack.c.b16 %v2580, %v2580
      %v2617 = vpack.c.b16 %v2581, %v2581
      %v2618 = vpack.c.b16 %v2582, %v2582
      %v2619 = vpack.c.b16 %v2583, %v2583
      %v2620 = vpack.c.b16 %v2584, %v2584
      %v2621 = vpack.c.b16 %v2585, %v2585
      %v2622 = vpack.c.b16 %v2586, %v2586
      %v2623 = vpack.c.b16 %v2587, %v2587
      %v2624 = vpack.c.b16 %v2588, %v2588
      %v2625 = vpack.c.b16 %v2589, %v2589
      %v2626 = vpack.c.b16 %v2590, %v2590
      %v2627 = vpack.c.b16 %v2591, %v2591
      %v2628 = vpack.c.b16 %v2592, %v2592
      %v2629 = vpack.c.b16 %v2593, %v2593
      %v2630 = vpack.c.b16 %v2594, %v2594
      %v2631 = vpack.c.b16 %v2595, %v2595
      %v2632 = vpack.c.b16 %v2596, %v2596
      %v2633 = vpack.c.b16 %v2597, %v2597
      %v2634 = vpack.c.b16 %v2598, %v2598
      %v2635 = vpack.c.b16 %v2599, %v2599
      %v2636 = vpack.c.b16 %v2600, %v2600
      %v2637 = vpack.c.b16 %v2601, %v2601
      %v2638 = vpack.c.b16 %v2602, %v2602
      %v2639 = vpack.c.b16 %v2603, %v2603
      %v2640 = vpack.c.b16 %v2604, %v2604
      %v2641 = vpack.c.b16 %v2605, %v2605
      %v2642 = vpack.c.b16 %v2606, %v2606
      %v2643 = vpack.c.b16 %v2607, %v2607
      %v2644 = vpack.c.b16 %v2608, %v2608
      %v2645 = vpack.c.b16 %v2609, %v2609
      %v2646 = vpack.c.b16 %v2610, %v2610
      %v2647 = vpack.c.b16 %v2611, %v2611
      %v2648 = vpack.c.b16 %v2612, %v2612
      %2685 = vst [vmem:[%s296] sm:$0xf] %v2613
      %2686 = vst [vmem:[%s296 + $0x4] sm:$0xf] %v2614
      %2687 = vst [vmem:[%s296 + $0x8] sm:$0xf] %v2615
      %2688 = vst [vmem:[%s296 + $0xc] sm:$0xf] %v2616
      %2689 = vst [vmem:[%s296 + $0x10] sm:$0xf] %v2617
      %2690 = vst [vmem:[%s296 + $0x14] sm:$0xf] %v2618
      %2691 = vst [vmem:[%s296 + $0x18] sm:$0xf] %v2619
      %2692 = vst [vmem:[%s296 + $0x1c] sm:$0xf] %v2620
      %2693 = vst [vmem:[%s296 + $0x20] sm:$0xf] %v2621
      %2694 = vst [vmem:[%s296 + $0x24] sm:$0xf] %v2622
      %2695 = vst [vmem:[%s296 + $0x28] sm:$0xf] %v2623
      %2696 = vst [vmem:[%s296 + $0x2c] sm:$0xf] %v2624
      %2697 = vst [vmem:[%s296 + $0x30] sm:$0xf] %v2625
      %2698 = vst [vmem:[%s296 + $0x34] sm:$0xf] %v2626
      %2699 = vst [vmem:[%s296 + $0x38] sm:$0xf] %v2627
      %2700 = vst [vmem:[%s296 + $0x3c] sm:$0xf] %v2628
      %2701 = vst [vmem:[%s296 + $0x40] sm:$0xf] %v2629
      %2702 = vst [vmem:[%s296 + $0x44] sm:$0xf] %v2630
      %2703 = vst [vmem:[%s296 + $0x48] sm:$0xf] %v2631
      %2704 = vst [vmem:[%s296 + $0x4c] sm:$0xf] %v2632
      %2705 = vst [vmem:[%s296 + $0x50] sm:$0xf] %v2633
      %2706 = vst [vmem:[%s296 + $0x54] sm:$0xf] %v2634
      %2707 = vst [vmem:[%s296 + $0x58] sm:$0xf] %v2635
      %2708 = vst [vmem:[%s296 + $0x5c] sm:$0xf] %v2636
      %2709 = vst [vmem:[%s296 + $0x60] sm:$0xf] %v2637
      %2710 = vst [vmem:[%s296 + $0x64] sm:$0xf] %v2638
      %2711 = vst [vmem:[%s296 + $0x68] sm:$0xf] %v2639
      %2712 = vst [vmem:[%s296 + $0x6c] sm:$0xf] %v2640
      %2713 = vst [vmem:[%s296 + $0x70] sm:$0xf] %v2641
      %2714 = vst [vmem:[%s296 + $0x74] sm:$0xf] %v2642
      %2715 = vst [vmem:[%s296 + $0x78] sm:$0xf] %v2643
      %2716 = vst [vmem:[%s296 + $0x7c] sm:$0xf] %v2644
      %2717 = vst [vmem:[%s296 + $0x80] sm:$0xf] %v2645
      %2718 = vst [vmem:[%s296 + $0x84] sm:$0xf] %v2646
      %2719 = vst [vmem:[%s296 + $0x88] sm:$0xf] %v2647
      %2720 = vst [vmem:[%s296 + $0x8c] sm:$0xf] %v2648
      %v2721 = vld [vmem:[%s286] sm:$0xff]
      %v2722 = vld [vmem:[%s286 + $0x8] sm:$0xff]
      %v2723 = vld [vmem:[%s286 + $0x10] sm:$0xff]
      %v2724 = vld [vmem:[%s286 + $0x18] sm:$0xff]
      %v2725 = vld [vmem:[%s286 + $0x20] sm:$0xff]
      %v2726 = vld [vmem:[%s286 + $0x28] sm:$0xff]
      %v2727 = vld [vmem:[%s286 + $0x30] sm:$0xff]
      %v2728 = vld [vmem:[%s286 + $0x38] sm:$0xff]
      %v2729 = vld [vmem:[%s286 + $0x40] sm:$0xff]
      %v2730 = vld [vmem:[%s286 + $0x48] sm:$0xff]
      %v2731 = vld [vmem:[%s286 + $0x50] sm:$0xff]
      %v2732 = vld [vmem:[%s286 + $0x58] sm:$0xff]
      %v2733 = vld [vmem:[%s286 + $0x60] sm:$0xff]
      %v2734 = vld [vmem:[%s286 + $0x68] sm:$0xff]
      %v2735 = vld [vmem:[%s286 + $0x70] sm:$0xff]
      %v2736 = vld [vmem:[%s286 + $0x78] sm:$0xff]
      %v2737 = vld [vmem:[%s286 + $0x80] sm:$0xff]
      %v2738 = vld [vmem:[%s286 + $0x88] sm:$0xff]
      %v2739 = vld [vmem:[%s286 + $0x90] sm:$0xff]
      %v2740 = vld [vmem:[%s286 + $0x98] sm:$0xff]
      %v2741 = vld [vmem:[%s286 + $0xa0] sm:$0xff]
      %v2742 = vld [vmem:[%s286 + $0xa8] sm:$0xff]
      %v2743 = vld [vmem:[%s286 + $0xb0] sm:$0xff]
      %v2744 = vld [vmem:[%s286 + $0xb8] sm:$0xff]
      %v2745 = vld [vmem:[%s286 + $0xc0] sm:$0xff]
      %v2746 = vld [vmem:[%s286 + $0xc8] sm:$0xff]
      %v2747 = vld [vmem:[%s286 + $0xd0] sm:$0xff]
      %v2748 = vld [vmem:[%s286 + $0xd8] sm:$0xff]
      %v2749 = vld [vmem:[%s286 + $0xe0] sm:$0xff]
      %v2750 = vld [vmem:[%s286 + $0xe8] sm:$0xff]
      %v2751 = vld [vmem:[%s286 + $0xf0] sm:$0xff]
      %v2752 = vld [vmem:[%s286 + $0xf8] sm:$0xff]
      %v2753 = vld [vmem:[%s286 + $0x100] sm:$0xff]
      %v2754 = vld [vmem:[%s286 + $0x108] sm:$0xff]
      %v2755 = vld [vmem:[%s286 + $0x110] sm:$0xff]
      %v2756 = vld [vmem:[%s286 + $0x118] sm:$0xff]
      %2758 = vset.pattern.permute.xlu0 0
      %2759 = vperm.xlu0 %2758, %v2721
      %v2760 = vpop.permute.xlu0 %2759
      %2763 = vset.pattern.permute.xlu0 0
      %2764 = vperm.xlu0 %2763, %v2722
      %v2765 = vpop.permute.xlu0 %2764
      %2768 = vset.pattern.permute.xlu0 0
      %2769 = vperm.xlu0 %2768, %v2723
      %v2770 = vpop.permute.xlu0 %2769
      %2773 = vset.pattern.permute.xlu0 0
      %2774 = vperm.xlu0 %2773, %v2724
      %v2775 = vpop.permute.xlu0 %2774
      %2778 = vset.pattern.permute.xlu0 0
      %2779 = vperm.xlu0 %2778, %v2725
      %v2780 = vpop.permute.xlu0 %2779
      %2783 = vset.pattern.permute.xlu0 0
      %2784 = vperm.xlu0 %2783, %v2726
      %v2785 = vpop.permute.xlu0 %2784
      %2788 = vset.pattern.permute.xlu0 0
      %2789 = vperm.xlu0 %2788, %v2727
      %v2790 = vpop.permute.xlu0 %2789
      %2793 = vset.pattern.permute.xlu0 0
      %2794 = vperm.xlu0 %2793, %v2728
      %v2795 = vpop.permute.xlu0 %2794
      %2798 = vset.pattern.permute.xlu0 0
      %2799 = vperm.xlu0 %2798, %v2729
      %v2800 = vpop.permute.xlu0 %2799
      %2803 = vset.pattern.permute.xlu0 0
      %2804 = vperm.xlu0 %2803, %v2730
      %v2805 = vpop.permute.xlu0 %2804
      %2808 = vset.pattern.permute.xlu0 0
      %2809 = vperm.xlu0 %2808, %v2731
      %v2810 = vpop.permute.xlu0 %2809
      %2813 = vset.pattern.permute.xlu0 0
      %2814 = vperm.xlu0 %2813, %v2732
      %v2815 = vpop.permute.xlu0 %2814
      %2818 = vset.pattern.permute.xlu0 0
      %2819 = vperm.xlu0 %2818, %v2733
      %v2820 = vpop.permute.xlu0 %2819
      %2823 = vset.pattern.permute.xlu0 0
      %2824 = vperm.xlu0 %2823, %v2734
      %v2825 = vpop.permute.xlu0 %2824
      %2828 = vset.pattern.permute.xlu0 0
      %2829 = vperm.xlu0 %2828, %v2735
      %v2830 = vpop.permute.xlu0 %2829
      %2833 = vset.pattern.permute.xlu0 0
      %2834 = vperm.xlu0 %2833, %v2736
      %v2835 = vpop.permute.xlu0 %2834
      %2838 = vset.pattern.permute.xlu0 0
      %2839 = vperm.xlu0 %2838, %v2737
      %v2840 = vpop.permute.xlu0 %2839
      %2843 = vset.pattern.permute.xlu0 0
      %2844 = vperm.xlu0 %2843, %v2738
      %v2845 = vpop.permute.xlu0 %2844
      %2848 = vset.pattern.permute.xlu0 0
      %2849 = vperm.xlu0 %2848, %v2739
      %v2850 = vpop.permute.xlu0 %2849
      %2853 = vset.pattern.permute.xlu0 0
      %2854 = vperm.xlu0 %2853, %v2740
      %v2855 = vpop.permute.xlu0 %2854
      %2858 = vset.pattern.permute.xlu0 0
      %2859 = vperm.xlu0 %2858, %v2741
      %v2860 = vpop.permute.xlu0 %2859
      %2863 = vset.pattern.permute.xlu0 0
      %2864 = vperm.xlu0 %2863, %v2742
      %v2865 = vpop.permute.xlu0 %2864
      %2868 = vset.pattern.permute.xlu0 0
      %2869 = vperm.xlu0 %2868, %v2743
      %v2870 = vpop.permute.xlu0 %2869
      %2873 = vset.pattern.permute.xlu0 0
      %2874 = vperm.xlu0 %2873, %v2744
      %v2875 = vpop.permute.xlu0 %2874
      %2878 = vset.pattern.permute.xlu0 0
      %2879 = vperm.xlu0 %2878, %v2745
      %v2880 = vpop.permute.xlu0 %2879
      %2883 = vset.pattern.permute.xlu0 0
      %2884 = vperm.xlu0 %2883, %v2746
      %v2885 = vpop.permute.xlu0 %2884
      %2888 = vset.pattern.permute.xlu0 0
      %2889 = vperm.xlu0 %2888, %v2747
      %v2890 = vpop.permute.xlu0 %2889
      %2893 = vset.pattern.permute.xlu0 0
      %2894 = vperm.xlu0 %2893, %v2748
      %v2895 = vpop.permute.xlu0 %2894
      %2898 = vset.pattern.permute.xlu0 0
      %2899 = vperm.xlu0 %2898, %v2749
      %v2900 = vpop.permute.xlu0 %2899
      %2903 = vset.pattern.permute.xlu0 0
      %2904 = vperm.xlu0 %2903, %v2750
      %v2905 = vpop.permute.xlu0 %2904
      %2908 = vset.pattern.permute.xlu0 0
      %2909 = vperm.xlu0 %2908, %v2751
      %v2910 = vpop.permute.xlu0 %2909
      %2913 = vset.pattern.permute.xlu0 0
      %2914 = vperm.xlu0 %2913, %v2752
      %v2915 = vpop.permute.xlu0 %2914
      %2918 = vset.pattern.permute.xlu0 0
      %2919 = vperm.xlu0 %2918, %v2753
      %v2920 = vpop.permute.xlu0 %2919
      %2923 = vset.pattern.permute.xlu0 0
      %2924 = vperm.xlu0 %2923, %v2754
      %v2925 = vpop.permute.xlu0 %2924
      %2928 = vset.pattern.permute.xlu0 0
      %2929 = vperm.xlu0 %2928, %v2755
      %v2930 = vpop.permute.xlu0 %2929
      %2933 = vset.pattern.permute.xlu0 0
      %2934 = vperm.xlu0 %2933, %v2756
      %v2935 = vpop.permute.xlu0 %2934
      %v2937 = vmul.f32 %v2399, %v2760
      %v2938 = vmul.f32 %v2402, %v2765
      %v2939 = vmul.f32 %v2407, %v2770
      %v2940 = vmul.f32 %v2410, %v2775
      %v2941 = vmul.f32 %v2415, %v2780
      %v2942 = vmul.f32 %v2418, %v2785
      %v2943 = vmul.f32 %v2423, %v2790
      %v2944 = vmul.f32 %v2426, %v2795
      %v2945 = vmul.f32 %v2431, %v2800
      %v2946 = vmul.f32 %v2434, %v2805
      %v2947 = vmul.f32 %v2439, %v2810
      %v2948 = vmul.f32 %v2442, %v2815
      %v2949 = vmul.f32 %v2447, %v2820
      %v2950 = vmul.f32 %v2450, %v2825
      %v2951 = vmul.f32 %v2455, %v2830
      %v2952 = vmul.f32 %v2458, %v2835
      %v2953 = vmul.f32 %v2463, %v2840
      %v2954 = vmul.f32 %v2466, %v2845
      %v2955 = vmul.f32 %v2471, %v2850
      %v2956 = vmul.f32 %v2474, %v2855
      %v2957 = vmul.f32 %v2479, %v2860
      %v2958 = vmul.f32 %v2482, %v2865
      %v2959 = vmul.f32 %v2487, %v2870
      %v2960 = vmul.f32 %v2490, %v2875
      %v2961 = vmul.f32 %v2495, %v2880
      %v2962 = vmul.f32 %v2498, %v2885
      %v2963 = vmul.f32 %v2503, %v2890
      %v2964 = vmul.f32 %v2506, %v2895
      %v2965 = vmul.f32 %v2511, %v2900
      %v2966 = vmul.f32 %v2514, %v2905
      %v2967 = vmul.f32 %v2519, %v2910
      %v2968 = vmul.f32 %v2522, %v2915
      %v2969 = vmul.f32 %v2527, %v2920
      %v2970 = vmul.f32 %v2530, %v2925
      %v2971 = vmul.f32 %v2535, %v2930
      %v2972 = vmul.f32 %v2538, %v2935
      %v2973 = vadd.f32 %v2937, %v2938
      %v2974 = vadd.f32 %v2973, %v2939
      %v2975 = vadd.f32 %v2974, %v2940
      %v2976 = vadd.f32 %v2975, %v2941
      %v2977 = vadd.f32 %v2976, %v2942
      %v2978 = vadd.f32 %v2977, %v2943
      %v2979 = vadd.f32 %v2978, %v2944
      %v2980 = vadd.f32 %v2979, %v2945
      %v2981 = vadd.f32 %v2980, %v2946
      %v2982 = vadd.f32 %v2981, %v2947
      %v2983 = vadd.f32 %v2982, %v2948
      %v2984 = vadd.f32 %v2983, %v2949
      %v2985 = vadd.f32 %v2984, %v2950
      %v2986 = vadd.f32 %v2985, %v2951
      %v2987 = vadd.f32 %v2986, %v2952
      %v2988 = vadd.f32 %v2987, %v2953
      %v2989 = vadd.f32 %v2988, %v2954
      %v2990 = vadd.f32 %v2989, %v2955
      %v2991 = vadd.f32 %v2990, %v2956
      %v2992 = vadd.f32 %v2991, %v2957
      %v2993 = vadd.f32 %v2992, %v2958
      %v2994 = vadd.f32 %v2993, %v2959
      %v2995 = vadd.f32 %v2994, %v2960
      %v2996 = vadd.f32 %v2995, %v2961
      %v2997 = vadd.f32 %v2996, %v2962
      %v2998 = vadd.f32 %v2997, %v2963
      %v2999 = vadd.f32 %v2998, %v2964
      %v3000 = vadd.f32 %v2999, %v2965
      %v3001 = vadd.f32 %v3000, %v2966
      %v3002 = vadd.f32 %v3001, %v2967
      %v3003 = vadd.f32 %v3002, %v2968
      %v3004 = vadd.f32 %v3003, %v2969
      %v3005 = vadd.f32 %v3004, %v2970
      %v3006 = vadd.f32 %v3005, %v2971
      %v3007 = vadd.f32 %v3006, %v2972
      %v3008 = vrot.slane %v3007, 4
      %v3009 = vadd.f32 %v3007, %v3008
      %v3010 = vrot.slane %v3009, 2
      %v3011 = vadd.f32 %v3009, %v3010
      %v3012 = vrot.slane %v3011, 1
      %v3013 = vadd.f32 %v3011, %v3012
      %3014 = vst [vmem:[%s302] sm:$0xff] %v3013
      %v3015 = vmul.f32 %v2937, %v2399
      %v3016 = vmul.f32 %v2938, %v2402
      %v3017 = vmul.f32 %v2939, %v2407
      %v3018 = vmul.f32 %v2940, %v2410
      %v3019 = vmul.f32 %v2941, %v2415
      %v3020 = vmul.f32 %v2942, %v2418
      %v3021 = vmul.f32 %v2943, %v2423
      %v3022 = vmul.f32 %v2944, %v2426
      %v3023 = vmul.f32 %v2945, %v2431
      %v3024 = vmul.f32 %v2946, %v2434
      %v3025 = vmul.f32 %v2947, %v2439
      %v3026 = vmul.f32 %v2948, %v2442
      %v3027 = vmul.f32 %v2949, %v2447
      %v3028 = vmul.f32 %v2950, %v2450
      %v3029 = vmul.f32 %v2951, %v2455
      %v3030 = vmul.f32 %v2952, %v2458
      %v3031 = vmul.f32 %v2953, %v2463
      %v3032 = vmul.f32 %v2954, %v2466
      %v3033 = vmul.f32 %v2955, %v2471
      %v3034 = vmul.f32 %v2956, %v2474
      %v3035 = vmul.f32 %v2957, %v2479
      %v3036 = vmul.f32 %v2958, %v2482
      %v3037 = vmul.f32 %v2959, %v2487
      %v3038 = vmul.f32 %v2960, %v2490
      %v3039 = vmul.f32 %v2961, %v2495
      %v3040 = vmul.f32 %v2962, %v2498
      %v3041 = vmul.f32 %v2963, %v2503
      %v3042 = vmul.f32 %v2964, %v2506
      %v3043 = vmul.f32 %v2965, %v2511
      %v3044 = vmul.f32 %v2966, %v2514
      %v3045 = vmul.f32 %v2967, %v2519
      %v3046 = vmul.f32 %v2968, %v2522
      %v3047 = vmul.f32 %v2969, %v2527
      %v3048 = vmul.f32 %v2970, %v2530
      %v3049 = vmul.f32 %v2971, %v2535
      %v3050 = vmul.f32 %v2972, %v2538
      %v3051 = vadd.f32 %v3015, %v3016
      %v3052 = vadd.f32 %v3051, %v3017
      %v3053 = vadd.f32 %v3052, %v3018
      %v3054 = vadd.f32 %v3053, %v3019
      %v3055 = vadd.f32 %v3054, %v3020
      %v3056 = vadd.f32 %v3055, %v3021
      %v3057 = vadd.f32 %v3056, %v3022
      %v3058 = vadd.f32 %v3057, %v3023
      %v3059 = vadd.f32 %v3058, %v3024
      %v3060 = vadd.f32 %v3059, %v3025
      %v3061 = vadd.f32 %v3060, %v3026
      %v3062 = vadd.f32 %v3061, %v3027
      %v3063 = vadd.f32 %v3062, %v3028
      %v3064 = vadd.f32 %v3063, %v3029
      %v3065 = vadd.f32 %v3064, %v3030
      %v3066 = vadd.f32 %v3065, %v3031
      %v3067 = vadd.f32 %v3066, %v3032
      %v3068 = vadd.f32 %v3067, %v3033
      %v3069 = vadd.f32 %v3068, %v3034
      %v3070 = vadd.f32 %v3069, %v3035
      %v3071 = vadd.f32 %v3070, %v3036
      %v3072 = vadd.f32 %v3071, %v3037
      %v3073 = vadd.f32 %v3072, %v3038
      %v3074 = vadd.f32 %v3073, %v3039
      %v3075 = vadd.f32 %v3074, %v3040
      %v3076 = vadd.f32 %v3075, %v3041
      %v3077 = vadd.f32 %v3076, %v3042
      %v3078 = vadd.f32 %v3077, %v3043
      %v3079 = vadd.f32 %v3078, %v3044
      %v3080 = vadd.f32 %v3079, %v3045
      %v3081 = vadd.f32 %v3080, %v3046
      %v3082 = vadd.f32 %v3081, %v3047
      %v3083 = vadd.f32 %v3082, %v3048
      %v3084 = vadd.f32 %v3083, %v3049
      %v3085 = vadd.f32 %v3084, %v3050
      %v3086 = vrot.slane %v3085, 4
      %v3087 = vadd.f32 %v3085, %v3086
      %v3088 = vrot.slane %v3087, 2
      %v3089 = vadd.f32 %v3087, %v3088
      %v3090 = vrot.slane %v3089, 1
      %v3091 = vadd.f32 %v3089, %v3090
      %3092 = vst [vmem:[%s308] sm:$0xff] %v3091
      %s3093 = smul.u32 36, %s22
      %p3094 = scmp.lt.s32.totalorder %s21, 1
      %s3095 = scalar_select %p3094, %s21, 1
      %p3096 = scmp.lt.s32.totalorder %s3093, 35
      %s3097 = scalar_select %p3096, %s3093, 35
      %s3098 = smul.addr %s3095, 36
      %s3099 = sadd.s32 %s3097, %s3098
      %s3100 = smul.addr %s3099, 4
      %s3101 = scalar_lea.vmem %s3, %s3100
      %s3102 = sadd.s32 %s21, %s22
      %p3103 = scmp.lt.s32.totalorder %s3102, 1
      %s3104 = scalar_select %p3103, %s3102, 1
      %s3105 = smul.addr %s3104, 8
      %s3106 = scalar_lea.vmem %s4, %s3105
      %s3107 = sadd.s32 %s21, %s22
      %p3108 = scmp.lt.s32.totalorder %s3107, 1
      %s3109 = scalar_select %p3108, %s3107, 1
      %s3110 = smul.addr %s3109, 8
      %s3111 = scalar_lea.vmem %s5, %s3110
      // Predicated region
      $region33: #{basic_block_forward.5} parent=31 // pred_check
        %p3112 = pneg %p124
      $region34: #{basic_block_forward.5} parent=31 // pred_check_branch
        %3114 = sbr.rel (%p3112) target = $region36
      $region35: #{basic_block_forward.5} parent=31 // pred_region
        %s3115 = smul.u32 36, %s22
      $region36: #{basic_block_forward.5} parent=31 // pred_fallthru
        _
      // Predicated region
      $region37: #{basic_block_forward.5} parent=31 // pred_check
        %p3116 = pneg %p152
      $region38: #{basic_block_forward.5} parent=31 // pred_check_branch
        %3118 = sbr.rel (%p3116) target = $region40
      $region39: #{basic_block_forward.5} parent=31 // pred_region
        %s3119 = sadd.s32 %s21, %s22
      $region40: #{basic_block_forward.5} parent=31 // pred_fallthru
        _
      // Predicated region
      $region41: #{basic_block_forward.5} parent=31 // pred_check
        %p3120 = pneg %p180
      $region42: #{basic_block_forward.5} parent=31 // pred_check_branch
        %3122 = sbr.rel (%p3120) target = $region44
      $region43: #{basic_block_forward.5} parent=31 // pred_region
        %s3123 = sadd.s32 %s21, %s22
      $region44: #{basic_block_forward.5} parent=31 // pred_fallthru
        _
    $region32: #{basic_block_forward.5} parent=5 // pred_fallthru
      _
    %p3124 = scmp.le.s32.totalorder 2, %s12
    // Predicated region
    $region45: #{basic_block_forward.5} parent=5 // pred_check
      %p3125 = pneg %p3124
    $region46: #{basic_block_forward.5} parent=5 // pred_check_branch
      %3127 = sbr.rel (%p3125) target = $region48
    $region47: #{basic_block_forward.5} parent=5 // pred_region
      %s3128 = ssub.s32 %s12, 2
      // Predicated region
      $region49: #{basic_block_forward.5} parent=47 // pred_check
        %p3129 = pneg %p130
      $region50: #{basic_block_forward.5} parent=47 // pred_check_branch
        %3131 = sbr.rel (%p3129) target = $region52
      $region51: #{basic_block_forward.5} parent=47 // pred_region
        %s3132 = smul.u32 36, %s24
        %p3133 = scmp.lt.s32.totalorder %s23, 1
        %s3134 = scalar_select %p3133, %s23, 1
        %p3135 = scmp.lt.s32.totalorder %s3132, 35
        %s3136 = scalar_select %p3135, %s3132, 35
        %s3137 = smul.addr %s3134, 36
        %s3138 = sadd.s32 %s3136, %s3137
        %s3139 = smul.addr %s3138, 4
        %s3140 = scalar_lea.vmem %s3, %s3139
      $region52: #{basic_block_forward.5} parent=47 // pred_fallthru
        _
      // Predicated region
      $region53: #{basic_block_forward.5} parent=47 // pred_check
        %p3141 = pneg %p158
      $region54: #{basic_block_forward.5} parent=47 // pred_check_branch
        %3143 = sbr.rel (%p3141) target = $region56
      $region55: #{basic_block_forward.5} parent=47 // pred_region
        %s3144 = sadd.s32 %s23, %s24
        %p3145 = scmp.lt.s32.totalorder %s3144, 1
        %s3146 = scalar_select %p3145, %s3144, 1
        %s3147 = smul.addr %s3146, 8
        %s3148 = scalar_lea.vmem %s4, %s3147
      $region56: #{basic_block_forward.5} parent=47 // pred_fallthru
        _
      // Predicated region
      $region57: #{basic_block_forward.5} parent=47 // pred_check
        %p3149 = pneg %p186
      $region58: #{basic_block_forward.5} parent=47 // pred_check_branch
        %3151 = sbr.rel (%p3149) target = $region60
      $region59: #{basic_block_forward.5} parent=47 // pred_region
        %s3152 = sadd.s32 %s23, %s24
        %p3153 = scmp.lt.s32.totalorder %s3152, 1
        %s3154 = scalar_select %p3153, %s3152, 1
        %s3155 = smul.addr %s3154, 8
        %s3156 = scalar_lea.vmem %s5, %s3155
      $region60: #{basic_block_forward.5} parent=47 // pred_fallthru
        _
    $region48: #{basic_block_forward.5} parent=5 // pred_fallthru
      _
  $region6: #{basic_block_forward.5} parent=0 // loop_footer
    %s16 = sadd.s32 1, %s12
  $region7: #{basic_block_forward.5} parent=0 // loop_footer_branch
    %11 = sbr.rel target = $region3
  $region8: #{basic_block_forward.5} parent=0 // loop_exit
    _

// kernel: basic_block_forward.8
$region0: #{basic_block_forward.8}
  #allocation0 [shape = 'u32[]', space=smem, size = 0x4, offset = 0x4, fixed_abs, tag = 'smem constant byte address 0x4 - core index']
  #allocation1 [shape = 'u32[144,128]{1,0:T(1,128)}', space=vmem, size = 0x12000, scoped, tag = 'internal scratch']
  %s0 = inlined_call_operand.vmem [shape: bf16[1,576,128], index: 0, kind: input, shape index: {}]
  %s1 = inlined_call_operand.vmem [shape: bf16[128,128], index: 1, kind: input, shape index: {}]
  %s2 = inlined_call_operand.vmem [shape: f32[288,1], index: 2, kind: input, shape index: {}]
  %s3 = inlined_call_operand.vmem [shape: bf16[2,288,128], index: 3, kind: output, shape index: {0}]
  %s4 = inlined_call_operand.vmem [shape: f32[16,128], index: 4, kind: output, shape index: {1}]
  %s5 = inlined_call_operand.vmem [shape: f32[16,128], index: 5, kind: output, shape index: {2}]
  %6 = xla_tuple %s3, %s4, %s5
  %s7 = sld [smem:[#allocation0]]
  $region61: #{basic_block_forward.8} parent=0
    _
  %s9 = ssub.s32 1, %s7
  %s10 = scalar_select 0, %s9, %s7
  loop: start=0, step=1, limit=4
  $region2: #{basic_block_forward.8} parent=0 // loop_pre_header
    _
  $region3: #{basic_block_forward.8} parent=0 // loop_header
    %s12 = sphi 0, %s16
    %p13 = scmp.ge.s32.totalorder %s12, 4
    %s19 = sphi 0, %s31
    %s20 = sphi 0, %s27
    %s21 = sphi 0, %s19
    %s22 = sphi 0, %s20
    %s23 = sphi 0, %s21
    %s24 = sphi 0, %s22
    %s36 = sphi 0, %s38
    %s39 = sphi 0, %s36
    %s40 = sphi 0, %s39
    %s56 = sphi 0, %s40
    %s60 = sphi 0, %s60
    %s62 = sphi 0, %s60
    %s63 = sphi 0, %s62
    %s77 = sphi 0, %s63
    %s83 = sphi 0, %s85
    %s86 = sphi 0, %s83
    %s87 = sphi 0, %s86
    %s103 = sphi 0, %s87
    %s111 = sphi 0, %s113
    %s114 = sphi 0, %s111
    %s115 = sphi 0, %s114
    %s131 = sphi 0, %s115
    %s139 = sphi 0, %s141
    %s142 = sphi 0, %s139
    %s143 = sphi 0, %s142
    %s159 = sphi 0, %s143
    %s167 = sphi 0, %s169
    %s170 = sphi 0, %s167
    %s171 = sphi 0, %s170
    %s187 = sphi 0, %s171
  $region4: #{basic_block_forward.8} parent=0 // loop_header_branch
    %15 = sbr.rel (%p13) target = $region8
  $region5: #{basic_block_forward.8} parent=0 // loop_body
    %s17 = ssub.s32 %s12, 1
    %s18 = ssub.s32 %s12, 2
    %s25 = sadd.s32 1, %s20
    %p26 = scmp.ge.s32.totalorder %s25, 1
    %s27 = scalar_select %p26, 0, %s25
    %s28 = sadd.s32 1, %s19
    %s29 = scalar_select %p26, %s28, %s19
    %p30 = scmp.ge.s32.totalorder %s29, 2
    %s31 = scalar_select %p30, 0, %s29
    %s32 = sadd.s32 %s19, %s20
    %s33 = sadd.s32 %s31, %s27
    %s34 = ssub.s32 %s32, %s33
    %p35 = scmp.eq.s32.totalorder %s34, 0
    %s37 = sadd.s32 %s36, 1
    %s38 = scalar_select %p35, %s36, %s37
    %p41 = pneg %p35
    %p42 = scmp.eq.s32.totalorder %s12, 1
    %p43 = por %p41, %p42
    %p44 = scmp.ne.s32.totalorder %s36, %s39
    %p45 = scmp.eq.s32.totalorder %s12, 0
    %p46 = por %p44, %p45
    %p47 = scmp.ne.s32.totalorder %s36, %s39
    %p48 = scmp.eq.s32.totalorder %s17, 1
    %p49 = por %p47, %p48
    %p50 = scmp.ne.s32.totalorder %s39, %s40
    %p51 = scmp.eq.s32.totalorder %s17, 0
    %p52 = por %p50, %p51
    %p53 = scmp.ne.s32.totalorder %s39, %s40
    %p54 = scmp.eq.s32.totalorder %s18, 1
    %p55 = por %p53, %p54
    %p57 = scmp.ne.s32.totalorder %s40, %s56
    %p58 = scmp.eq.s32.totalorder %s18, 0
    %p59 = por %p57, %p58
    %s61 = sadd.s32 %s60, 1
    %p64 = scmp.eq.s32.totalorder %s12, 1
    %p65 = scmp.ne.s32.totalorder %s60, %s62
    %p66 = scmp.eq.s32.totalorder %s12, 0
    %p67 = por %p65, %p66
    %p68 = scmp.ne.s32.totalorder %s60, %s62
    %p69 = scmp.eq.s32.totalorder %s17, 1
    %p70 = por %p68, %p69
    %p71 = scmp.ne.s32.totalorder %s62, %s63
    %p72 = scmp.eq.s32.totalorder %s17, 0
    %p73 = por %p71, %p72
    %p74 = scmp.ne.s32.totalorder %s62, %s63
    %p75 = scmp.eq.s32.totalorder %s18, 1
    %p76 = por %p74, %p75
    %p78 = scmp.ne.s32.totalorder %s63, %s77
    %p79 = scmp.eq.s32.totalorder %s18, 0
    %p80 = por %p78, %p79
    %s81 = ssub.s32 %s20, %s27
    %p82 = scmp.eq.s32.totalorder %s81, 0
    %s84 = sadd.s32 %s83, 1
    %s85 = scalar_select %p82, %s83, %s84
    %p88 = pneg %p82
    %p89 = scmp.eq.s32.totalorder %s12, 1
    %p90 = por %p88, %p89
    %p91 = scmp.ne.s32.totalorder %s83, %s86
    %p92 = scmp.eq.s32.totalorder %s12, 0
    %p93 = por %p91, %p92
    %p94 = scmp.ne.s32.totalorder %s83, %s86
    %p95 = scmp.eq.s32.totalorder %s17, 1
    %p96 = por %p94, %p95
    %p97 = scmp.ne.s32.totalorder %s86, %s87
    %p98 = scmp.eq.s32.totalorder %s17, 0
    %p99 = por %p97, %p98
    %p100 = scmp.ne.s32.totalorder %s86, %s87
    %p101 = scmp.eq.s32.totalorder %s18, 1
    %p102 = por %p100, %p101
    %p104 = scmp.ne.s32.totalorder %s87, %s103
    %p105 = scmp.eq.s32.totalorder %s18, 0
    %p106 = por %p104, %p105
    %s107 = ssub.s32 %s19, %s31
    %s108 = ssub.s32 %s20, %s27
    %s109 = sor.u32 %s107, %s108
    %p110 = scmp.eq.s32.totalorder %s109, 0
    %s112 = sadd.s32 %s111, 1
    %s113 = scalar_select %p110, %s111, %s112
    %p116 = pneg %p110
    %p117 = scmp.eq.s32.totalorder %s12, 1
    %p118 = por %p116, %p117
    %p119 = scmp.ne.s32.totalorder %s111, %s114
    %p120 = scmp.eq.s32.totalorder %s12, 0
    %p121 = por %p119, %p120
    %p122 = scmp.ne.s32.totalorder %s111, %s114
    %p123 = scmp.eq.s32.totalorder %s17, 1
    %p124 = por %p122, %p123
    %p125 = scmp.ne.s32.totalorder %s114, %s115
    %p126 = scmp.eq.s32.totalorder %s17, 0
    %p127 = por %p125, %p126
    %p128 = scmp.ne.s32.totalorder %s114, %s115
    %p129 = scmp.eq.s32.totalorder %s18, 1
    %p130 = por %p128, %p129
    %p132 = scmp.ne.s32.totalorder %s115, %s131
    %p133 = scmp.eq.s32.totalorder %s18, 0
    %p134 = por %p132, %p133
    %s135 = sadd.s32 %s19, %s20
    %s136 = sadd.s32 %s31, %s27
    %s137 = ssub.s32 %s135, %s136
    %p138 = scmp.eq.s32.totalorder %s137, 0
    %s140 = sadd.s32 %s139, 1
    %s141 = scalar_select %p138, %s139, %s140
    %p144 = pneg %p138
    %p145 = scmp.eq.s32.totalorder %s12, 1
    %p146 = por %p144, %p145
    %p147 = scmp.ne.s32.totalorder %s139, %s142
    %p148 = scmp.eq.s32.totalorder %s12, 0
    %p149 = por %p147, %p148
    %p150 = scmp.ne.s32.totalorder %s139, %s142
    %p151 = scmp.eq.s32.totalorder %s17, 1
    %p152 = por %p150, %p151
    %p153 = scmp.ne.s32.totalorder %s142, %s143
    %p154 = scmp.eq.s32.totalorder %s17, 0
    %p155 = por %p153, %p154
    %p156 = scmp.ne.s32.totalorder %s142, %s143
    %p157 = scmp.eq.s32.totalorder %s18, 1
    %p158 = por %p156, %p157
    %p160 = scmp.ne.s32.totalorder %s143, %s159
    %p161 = scmp.eq.s32.totalorder %s18, 0
    %p162 = por %p160, %p161
    %s163 = sadd.s32 %s19, %s20
    %s164 = sadd.s32 %s31, %s27
    %s165 = ssub.s32 %s163, %s164
    %p166 = scmp.eq.s32.totalorder %s165, 0
    %s168 = sadd.s32 %s167, 1
    %s169 = scalar_select %p166, %s167, %s168
    %p172 = pneg %p166
    %p173 = scmp.eq.s32.totalorder %s12, 1
    %p174 = por %p172, %p173
    %p175 = scmp.ne.s32.totalorder %s167, %s170
    %p176 = scmp.eq.s32.totalorder %s12, 0
    %p177 = por %p175, %p176
    %p178 = scmp.ne.s32.totalorder %s167, %s170
    %p179 = scmp.eq.s32.totalorder %s17, 1
    %p180 = por %p178, %p179
    %p181 = scmp.ne.s32.totalorder %s170, %s171
    %p182 = scmp.eq.s32.totalorder %s17, 0
    %p183 = por %p181, %p182
    %p184 = scmp.ne.s32.totalorder %s170, %s171
    %p185 = scmp.eq.s32.totalorder %s18, 1
    %p186 = por %p184, %p185
    %p188 = scmp.ne.s32.totalorder %s171, %s187
    %p189 = scmp.eq.s32.totalorder %s18, 0
    %p190 = por %p188, %p189
    %p191 = scmp.le.s32.totalorder 1, %s12
    %p192 = scmp.lt.s32.totalorder %s12, 3
    %p193 = pnand %p191, %p192
    %p194 = pneg %p193
    // Predicated region
    $region9: #{basic_block_forward.8} parent=5 // pred_check
      _
    $region10: #{basic_block_forward.8} parent=5 // pred_check_branch
      %196 = sbr.rel (%p193) target = $region12
    $region11: #{basic_block_forward.8} parent=5 // pred_region
      %s197 = ssub.s32 %s12, 1
      // Predicated region
      $region13: #{basic_block_forward.8} parent=11 // pred_check
        %p198 = pneg %p73
      $region14: #{basic_block_forward.8} parent=11 // pred_check_branch
        %200 = sbr.rel (%p198) target = $region16
      $region15: #{basic_block_forward.8} parent=11 // pred_region
        _
      $region16: #{basic_block_forward.8} parent=11 // pred_fallthru
        _
      // Predicated region
      $region17: #{basic_block_forward.8} parent=11 // pred_check
        %p201 = pneg %p99
      $region18: #{basic_block_forward.8} parent=11 // pred_check_branch
        %203 = sbr.rel (%p201) target = $region20
      $region19: #{basic_block_forward.8} parent=11 // pred_region
        %s204 = smul.u32 36, %s22
        %p205 = scmp.lt.s32.totalorder %s204, 35
        %s206 = scalar_select %p205, %s204, 35
        %s207 = smul.addr %s206, 8
        %s208 = scalar_lea.vmem %s2, %s207
        %s209 = smul.u32 36, %s22
      $region20: #{basic_block_forward.8} parent=11 // pred_fallthru
        _
    $region12: #{basic_block_forward.8} parent=5 // pred_fallthru
      _
    %p210 = scmp.lt.s32.totalorder %s12, 2
    // Predicated region
    $region21: #{basic_block_forward.8} parent=5 // pred_check
      %p211 = pneg %p210
    $region22: #{basic_block_forward.8} parent=5 // pred_check_branch
      %213 = sbr.rel (%p211) target = $region24
    $region23: #{basic_block_forward.8} parent=5 // pred_region
      // Predicated region
      $region25: #{basic_block_forward.8} parent=23 // pred_check
        %p214 = pneg %p46
      $region26: #{basic_block_forward.8} parent=23 // pred_check_branch
        %216 = sbr.rel (%p214) target = $region28
      $region27: #{basic_block_forward.8} parent=23 // pred_region
        %s217 = sadd.s32 %s19, %s20
        %s218 = smul.u32 36, %s217
        %p219 = scmp.lt.s32.totalorder %s218, 71
        %s220 = scalar_select %p219, %s218, 71
        %s221 = smul.addr %s220, 4
        %s222 = scalar_lea.vmem %s0, %s221
        %s223 = sadd.s32 %s19, %s20
        %s224 = smul.u32 36, %s223
      $region28: #{basic_block_forward.8} parent=23 // pred_fallthru
        _
    $region24: #{basic_block_forward.8} parent=5 // pred_fallthru
      _
    %p225 = scmp.le.s32.totalorder 1, %s12
    %p226 = scmp.lt.s32.totalorder %s12, 3
    %p227 = pnand %p225, %p226
    %p228 = pneg %p227
    // Predicated region
    $region29: #{basic_block_forward.8} parent=5 // pred_check
      _
    $region30: #{basic_block_forward.8} parent=5 // pred_check_branch
      %230 = sbr.rel (%p227) target = $region32
    $region31: #{basic_block_forward.8} parent=5 // pred_region
      %s231 = ssub.s32 %s12, 1
      %s232 = sadd.s32 %s21, %s22
      %s233 = smul.u32 36, %s232
      %p234 = scmp.lt.s32.totalorder %s233, 71
      %s235 = scalar_select %p234, %s233, 71
      %s236 = smul.addr %s235, 4
      %s237 = scalar_lea.vmem %s0, %s236
      %p238 = pneg %p52
      %p239 = pneg %p49
      %p240 = pneg %p73
      %p241 = pneg %p70
      %s242 = smul.u32 36, %s22
      %p243 = scmp.lt.s32.totalorder %s242, 35
      %s244 = scalar_select %p243, %s242, 35
      %s245 = smul.addr %s244, 8
      %s246 = scalar_lea.vmem %s2, %s245
      %p247 = pneg %p99
      %p248 = pneg %p96
      %p249 = pneg %p127
      %p250 = pneg %p124
      %s251 = smul.u32 36, %s22
      %p252 = scmp.lt.s32.totalorder %s21, 1
      %s253 = scalar_select %p252, %s21, 1
      %p254 = scmp.lt.s32.totalorder %s251, 35
      %s255 = scalar_select %p254, %s251, 35
      %s256 = smul.addr %s253, 36
      %s257 = sadd.s32 %s255, %s256
      %s258 = smul.addr %s257, 4
      %s259 = scalar_lea.vmem %s3, %s258
      %p260 = pneg %p155
      %p261 = pneg %p152
      %s262 = sadd.s32 %s21, %s22
      %p263 = scmp.lt.s32.totalorder %s262, 1
      %s264 = scalar_select %p263, %s262, 1
      %s265 = smul.addr %s264, 8
      %s266 = scalar_lea.vmem %s4, %s265
      %p267 = pneg %p183
      %p268 = pneg %p180
      %s269 = sadd.s32 %s21, %s22
      %p270 = scmp.lt.s32.totalorder %s269, 1
      %s271 = scalar_select %p270, %s269, 1
      %s272 = smul.addr %s271, 8
      %s273 = scalar_lea.vmem %s5, %s272
      %s274 = sadd.s32 %s21, %s22
      %s275 = smul.u32 36, %s274
      %p276 = scmp.lt.s32.totalorder %s275, 71
      %s277 = scalar_select %p276, %s275, 71
      %s278 = smul.addr %s277, 4
      %s279 = scalar_lea.vmem %s0, %s278
      %s280 = sadd.s32 %s21, %s22
      %s281 = smul.u32 36, %s280
      %s282 = smul.u32 36, %s22
      %p283 = scmp.lt.s32.totalorder %s282, 35
      %s284 = scalar_select %p283, %s282, 35
      %s285 = smul.addr %s284, 8
      %s286 = scalar_lea.vmem %s2, %s285
      %s287 = smul.u32 36, %s22
      %s288 = smul.u32 36, %s22
      %p289 = scmp.lt.s32.totalorder %s21, 1
      %s290 = scalar_select %p289, %s21, 1
      %p291 = scmp.lt.s32.totalorder %s288, 35
      %s292 = scalar_select %p291, %s288, 35
      %s293 = smul.addr %s290, 36
      %s294 = sadd.s32 %s292, %s293
      %s295 = smul.addr %s294, 4
      %s296 = scalar_lea.vmem %s3, %s295
      %s297 = smul.u32 36, %s22
      %s298 = sadd.s32 %s21, %s22
      %p299 = scmp.lt.s32.totalorder %s298, 1
      %s300 = scalar_select %p299, %s298, 1
      %s301 = smul.addr %s300, 8
      %s302 = scalar_lea.vmem %s4, %s301
      %s303 = sadd.s32 %s21, %s22
      %s304 = sadd.s32 %s21, %s22
      %p305 = scmp.lt.s32.totalorder %s304, 1
      %s306 = scalar_select %p305, %s304, 1
      %s307 = smul.addr %s306, 8
      %s308 = scalar_lea.vmem %s5, %s307
      %s309 = sadd.s32 %s21, %s22
      %v311 = vld [vmem:[%s279] sm:$0xf]
      %v312 = vld [vmem:[%s279 + $0x4] sm:$0xf]
      %v313 = vld [vmem:[%s279 + $0x8] sm:$0xf]
      %v314 = vld [vmem:[%s279 + $0xc] sm:$0xf]
      %v315 = vld [vmem:[%s279 + $0x10] sm:$0xf]
      %v316 = vld [vmem:[%s279 + $0x14] sm:$0xf]
      %v317 = vld [vmem:[%s279 + $0x18] sm:$0xf]
      %v318 = vld [vmem:[%s279 + $0x1c] sm:$0xf]
      %v319 = vld [vmem:[%s279 + $0x20] sm:$0xf]
      %v320 = vld [vmem:[%s279 + $0x24] sm:$0xf]
      %v321 = vld [vmem:[%s279 + $0x28] sm:$0xf]
      %v322 = vld [vmem:[%s279 + $0x2c] sm:$0xf]
      %v323 = vld [vmem:[%s279 + $0x30] sm:$0xf]
      %v324 = vld [vmem:[%s279 + $0x34] sm:$0xf]
      %v325 = vld [vmem:[%s279 + $0x38] sm:$0xf]
      %v326 = vld [vmem:[%s279 + $0x3c] sm:$0xf]
      %v327 = vld [vmem:[%s279 + $0x40] sm:$0xf]
      %v328 = vld [vmem:[%s279 + $0x44] sm:$0xf]
      %v329 = vld [vmem:[%s279 + $0x48] sm:$0xf]
      %v330 = vld [vmem:[%s279 + $0x4c] sm:$0xf]
      %v331 = vld [vmem:[%s279 + $0x50] sm:$0xf]
      %v332 = vld [vmem:[%s279 + $0x54] sm:$0xf]
      %v333 = vld [vmem:[%s279 + $0x58] sm:$0xf]
      %v334 = vld [vmem:[%s279 + $0x5c] sm:$0xf]
      %v335 = vld [vmem:[%s279 + $0x60] sm:$0xf]
      %v336 = vld [vmem:[%s279 + $0x64] sm:$0xf]
      %v337 = vld [vmem:[%s279 + $0x68] sm:$0xf]
      %v338 = vld [vmem:[%s279 + $0x6c] sm:$0xf]
      %v339 = vld [vmem:[%s279 + $0x70] sm:$0xf]
      %v340 = vld [vmem:[%s279 + $0x74] sm:$0xf]
      %v341 = vld [vmem:[%s279 + $0x78] sm:$0xf]
      %v342 = vld [vmem:[%s279 + $0x7c] sm:$0xf]
      %v343 = vld [vmem:[%s279 + $0x80] sm:$0xf]
      %v344 = vld [vmem:[%s279 + $0x84] sm:$0xf]
      %v345 = vld [vmem:[%s279 + $0x88] sm:$0xf]
      %v346 = vld [vmem:[%s279 + $0x8c] sm:$0xf]
      %v347 = vld [vmem:[%s1] sm:$0xf]
      %v348 = vld [vmem:[%s1 + $0x4] sm:$0xf]
      %v349 = vld [vmem:[%s1 + $0x8] sm:$0xf]
      %v350 = vld [vmem:[%s1 + $0xc] sm:$0xf]
      %v351 = vld [vmem:[%s1 + $0x10] sm:$0xf]
      %v352 = vld [vmem:[%s1 + $0x14] sm:$0xf]
      %v353 = vld [vmem:[%s1 + $0x18] sm:$0xf]
      %v354 = vld [vmem:[%s1 + $0x1c] sm:$0xf]
      %v355 = vld [vmem:[%s1 + $0x20] sm:$0xf]
      %v356 = vld [vmem:[%s1 + $0x24] sm:$0xf]
      %v357 = vld [vmem:[%s1 + $0x28] sm:$0xf]
      %v358 = vld [vmem:[%s1 + $0x2c] sm:$0xf]
      %v359 = vld [vmem:[%s1 + $0x30] sm:$0xf]
      %v360 = vld [vmem:[%s1 + $0x34] sm:$0xf]
      %v361 = vld [vmem:[%s1 + $0x38] sm:$0xf]
      %v362 = vld [vmem:[%s1 + $0x3c] sm:$0xf]
      %v399 = vunpack.c.l.b16 %v311
      %v400 = vunpack.c.l.b16 %v312
      %v401 = vunpack.c.l.b16 %v313
      %v402 = vunpack.c.l.b16 %v314
      %v403 = vunpack.c.l.b16 %v315
      %v404 = vunpack.c.l.b16 %v316
      %v405 = vunpack.c.l.b16 %v317
      %v406 = vunpack.c.l.b16 %v318
      %v407 = vunpack.c.l.b16 %v319
      %v408 = vunpack.c.l.b16 %v320
      %v409 = vunpack.c.l.b16 %v321
      %v410 = vunpack.c.l.b16 %v322
      %v411 = vunpack.c.l.b16 %v323
      %v412 = vunpack.c.l.b16 %v324
      %v413 = vunpack.c.l.b16 %v325
      %v414 = vunpack.c.l.b16 %v326
      %v415 = vunpack.c.l.b16 %v327
      %v416 = vunpack.c.l.b16 %v328
      %v417 = vunpack.c.l.b16 %v329
      %v418 = vunpack.c.l.b16 %v330
      %v419 = vunpack.c.l.b16 %v331
      %v420 = vunpack.c.l.b16 %v332
      %v421 = vunpack.c.l.b16 %v333
      %v422 = vunpack.c.l.b16 %v334
      %v423 = vunpack.c.l.b16 %v335
      %v424 = vunpack.c.l.b16 %v336
      %v425 = vunpack.c.l.b16 %v337
      %v426 = vunpack.c.l.b16 %v338
      %v427 = vunpack.c.l.b16 %v339
      %v428 = vunpack.c.l.b16 %v340
      %v429 = vunpack.c.l.b16 %v341
      %v430 = vunpack.c.l.b16 %v342
      %v431 = vunpack.c.l.b16 %v343
      %v432 = vunpack.c.l.b16 %v344
      %v433 = vunpack.c.l.b16 %v345
      %v434 = vunpack.c.l.b16 %v346
      %v435 = vpack.c.b16 %v400, %v399
      %v436 = vpack.c.b16 %v402, %v401
      %v437 = vpack.c.b16 %v404, %v403
      %v438 = vpack.c.b16 %v406, %v405
      %v439 = vpack.c.b16 %v408, %v407
      %v440 = vpack.c.b16 %v410, %v409
      %v441 = vpack.c.b16 %v412, %v411
      %v442 = vpack.c.b16 %v414, %v413
      %v443 = vpack.c.b16 %v416, %v415
      %v444 = vpack.c.b16 %v418, %v417
      %v445 = vpack.c.b16 %v420, %v419
      %v446 = vpack.c.b16 %v422, %v421
      %v447 = vpack.c.b16 %v424, %v423
      %v448 = vpack.c.b16 %v426, %v425
      %v449 = vpack.c.b16 %v428, %v427
      %v450 = vpack.c.b16 %v430, %v429
      %v451 = vpack.c.b16 %v432, %v431
      %v452 = vpack.c.b16 %v434, %v433
      %v487 = vunpack.c.l.b16 %v347
      %v488 = vunpack.c.l.b16 %v348
      %v489 = vunpack.c.l.b16 %v349
      %v490 = vunpack.c.l.b16 %v350
      %v491 = vunpack.c.l.b16 %v351
      %v492 = vunpack.c.l.b16 %v352
      %v493 = vunpack.c.l.b16 %v353
      %v494 = vunpack.c.l.b16 %v354
      %v495 = vunpack.c.l.b16 %v355
      %v496 = vunpack.c.l.b16 %v356
      %v497 = vunpack.c.l.b16 %v357
      %v498 = vunpack.c.l.b16 %v358
      %v499 = vunpack.c.l.b16 %v359
      %v500 = vunpack.c.l.b16 %v360
      %v501 = vunpack.c.l.b16 %v361
      %v502 = vunpack.c.l.b16 %v362
      %v503 = vpack.c.b16 %v488, %v487
      %v504 = vpack.c.b16 %v490, %v489
      %v505 = vpack.c.b16 %v492, %v491
      %v506 = vpack.c.b16 %v494, %v493
      %v507 = vpack.c.b16 %v496, %v495
      %v508 = vpack.c.b16 %v498, %v497
      %v509 = vpack.c.b16 %v500, %v499
      %v510 = vpack.c.b16 %v502, %v501
      %519 = vmatprep.subr.bf16.mxu0 0
      %520 = vmatpush1.bf16.msra.mxu0 %v510
      %521 = vmatprep.subr.bf16.mxu0 0
      %522 = vmatpush1.bf16.msra.mxu0 %v509
      %523 = vmatprep.subr.bf16.mxu0 0
      %524 = vmatpush1.bf16.msra.mxu0 %v508
      %525 = vmatprep.subr.bf16.mxu0 0
      %526 = vmatpush1.bf16.msra.mxu0 %v507
      %527 = vmatprep.subr.bf16.mxu0 0
      %528 = vmatpush1.bf16.msra.mxu0 %v506
      %529 = vmatprep.subr.bf16.mxu0 0
      %530 = vmatpush1.bf16.msra.mxu0 %v505
      %531 = vmatprep.subr.bf16.mxu0 0
      %532 = vmatpush1.bf16.msra.mxu0 %v504
      %533 = vmatprep.subr.bf16.mxu0 0
      %534 = vmatpush1.bf16.msra.mxu0 %v503
      %535 = vmatprep.subr.bf16.mxu0 0
      %536 = vmatpush2.bf16.msra.mxu0 0
      %537 = vmatprep.subr.bf16.mxu0 0
      %538 = vmatpush2.bf16.msra.mxu0 0
      %539 = vmatprep.subr.bf16.mxu0 0
      %540 = vmatpush2.bf16.msra.mxu0 0
      %541 = vmatprep.subr.bf16.mxu0 0
      %542 = vmatpush2.bf16.msra.mxu0 0
      %543 = vmatprep.subr.bf16.mxu0 0
      %544 = vmatpush2.bf16.msra.mxu0 0
      %545 = vmatprep.subr.bf16.mxu0 0
      %546 = vmatpush2.bf16.msra.mxu0 0
      %547 = vmatprep.subr.bf16.mxu0 0
      %548 = vmatpush2.bf16.msra.mxu0 0
      %549 = vmatprep.subr.bf16.mxu0 0
      %550 = vmatpush2.bf16.msra.mxu0 0
      %551 = vmatprep.mubr.bf16.mxu0 0
      %552 = vmatmul.mubr.bf16.gmra.mxu0 %v435
      %v553 = vpop.f32.mrf.mxu0
      %v554 = vadd.f32 0.0, %v553
      %v555 = vpop.f32.mrf.mxu0
      %v556 = vpop.f32.mrf.mxu0
      %v557 = vadd.f32 0.0, %v556
      %v558 = vpop.f32.mrf.mxu0
      %559 = vmatprep.mubr.bf16.mxu0 0
      %560 = vmatmul.mubr.bf16.gmra.mxu0 %v436
      %v561 = vpop.f32.mrf.mxu0
      %v562 = vadd.f32 0.0, %v561
      %v563 = vpop.f32.mrf.mxu0
      %v564 = vpop.f32.mrf.mxu0
      %v565 = vadd.f32 0.0, %v564
      %v566 = vpop.f32.mrf.mxu0
      %567 = vmatprep.mubr.bf16.mxu0 0
      %568 = vmatmul.mubr.bf16.gmra.mxu0 %v437
      %v569 = vpop.f32.mrf.mxu0
      %v570 = vadd.f32 0.0, %v569
      %v571 = vpop.f32.mrf.mxu0
      %v572 = vpop.f32.mrf.mxu0
      %v573 = vadd.f32 0.0, %v572
      %v574 = vpop.f32.mrf.mxu0
      %575 = vmatprep.mubr.bf16.mxu0 0
      %576 = vmatmul.mubr.bf16.gmra.mxu0 %v438
      %v577 = vpop.f32.mrf.mxu0
      %v578 = vadd.f32 0.0, %v577
      %v579 = vpop.f32.mrf.mxu0
      %v580 = vpop.f32.mrf.mxu0
      %v581 = vadd.f32 0.0, %v580
      %v582 = vpop.f32.mrf.mxu0
      %583 = vmatprep.mubr.bf16.mxu0 0
      %584 = vmatmul.mubr.bf16.gmra.mxu0 %v439
      %v585 = vpop.f32.mrf.mxu0
      %v586 = vadd.f32 0.0, %v585
      %v587 = vpop.f32.mrf.mxu0
      %v588 = vpop.f32.mrf.mxu0
      %v589 = vadd.f32 0.0, %v588
      %v590 = vpop.f32.mrf.mxu0
      %591 = vmatprep.mubr.bf16.mxu0 0
      %592 = vmatmul.mubr.bf16.gmra.mxu0 %v440
      %v593 = vpop.f32.mrf.mxu0
      %v594 = vadd.f32 0.0, %v593
      %v595 = vpop.f32.mrf.mxu0
      %v596 = vpop.f32.mrf.mxu0
      %v597 = vadd.f32 0.0, %v596
      %v598 = vpop.f32.mrf.mxu0
      %599 = vmatprep.mubr.bf16.mxu0 0
      %600 = vmatmul.mubr.bf16.gmra.mxu0 %v441
      %v601 = vpop.f32.mrf.mxu0
      %v602 = vadd.f32 0.0, %v601
      %v603 = vpop.f32.mrf.mxu0
      %v604 = vpop.f32.mrf.mxu0
      %v605 = vadd.f32 0.0, %v604
      %v606 = vpop.f32.mrf.mxu0
      %607 = vmatprep.mubr.bf16.mxu0 0
      %608 = vmatmul.mubr.bf16.gmra.mxu0 %v442
      %v609 = vpop.f32.mrf.mxu0
      %v610 = vadd.f32 0.0, %v609
      %v611 = vpop.f32.mrf.mxu0
      %v612 = vpop.f32.mrf.mxu0
      %v613 = vadd.f32 0.0, %v612
      %v614 = vpop.f32.mrf.mxu0
      %615 = vmatprep.mubr.bf16.mxu0 0
      %616 = vmatmul.mubr.bf16.gmra.mxu0 %v443
      %v617 = vpop.f32.mrf.mxu0
      %v618 = vadd.f32 0.0, %v617
      %v619 = vpop.f32.mrf.mxu0
      %v620 = vpop.f32.mrf.mxu0
      %v621 = vadd.f32 0.0, %v620
      %v622 = vpop.f32.mrf.mxu0
      %623 = vmatprep.mubr.bf16.mxu0 0
      %624 = vmatmul.mubr.bf16.gmra.mxu0 %v444
      %v625 = vpop.f32.mrf.mxu0
      %v626 = vadd.f32 0.0, %v625
      %v627 = vpop.f32.mrf.mxu0
      %v628 = vpop.f32.mrf.mxu0
      %v629 = vadd.f32 0.0, %v628
      %v630 = vpop.f32.mrf.mxu0
      %631 = vmatprep.mubr.bf16.mxu0 0
      %632 = vmatmul.mubr.bf16.gmra.mxu0 %v445
      %v633 = vpop.f32.mrf.mxu0
      %v634 = vadd.f32 0.0, %v633
      %v635 = vpop.f32.mrf.mxu0
      %v636 = vpop.f32.mrf.mxu0
      %v637 = vadd.f32 0.0, %v636
      %v638 = vpop.f32.mrf.mxu0
      %639 = vmatprep.mubr.bf16.mxu0 0
      %640 = vmatmul.mubr.bf16.gmra.mxu0 %v446
      %v641 = vpop.f32.mrf.mxu0
      %v642 = vadd.f32 0.0, %v641
      %v643 = vpop.f32.mrf.mxu0
      %v644 = vpop.f32.mrf.mxu0
      %v645 = vadd.f32 0.0, %v644
      %v646 = vpop.f32.mrf.mxu0
      %647 = vmatprep.mubr.bf16.mxu0 0
      %648 = vmatmul.mubr.bf16.gmra.mxu0 %v447
      %v649 = vpop.f32.mrf.mxu0
      %v650 = vadd.f32 0.0, %v649
      %v651 = vpop.f32.mrf.mxu0
      %v652 = vpop.f32.mrf.mxu0
      %v653 = vadd.f32 0.0, %v652
      %v654 = vpop.f32.mrf.mxu0
      %655 = vmatprep.mubr.bf16.mxu0 0
      %656 = vmatmul.mubr.bf16.gmra.mxu0 %v448
      %v657 = vpop.f32.mrf.mxu0
      %v658 = vadd.f32 0.0, %v657
      %v659 = vpop.f32.mrf.mxu0
      %v660 = vpop.f32.mrf.mxu0
      %v661 = vadd.f32 0.0, %v660
      %v662 = vpop.f32.mrf.mxu0
      %663 = vmatprep.mubr.bf16.mxu0 0
      %664 = vmatmul.mubr.bf16.gmra.mxu0 %v449
      %v665 = vpop.f32.mrf.mxu0
      %v666 = vadd.f32 0.0, %v665
      %v667 = vpop.f32.mrf.mxu0
      %v668 = vpop.f32.mrf.mxu0
      %v669 = vadd.f32 0.0, %v668
      %v670 = vpop.f32.mrf.mxu0
      %671 = vmatprep.mubr.bf16.mxu0 0
      %672 = vmatmul.mubr.bf16.gmra.mxu0 %v450
      %v673 = vpop.f32.mrf.mxu0
      %v674 = vadd.f32 0.0, %v673
      %v675 = vpop.f32.mrf.mxu0
      %v676 = vpop.f32.mrf.mxu0
      %v677 = vadd.f32 0.0, %v676
      %v678 = vpop.f32.mrf.mxu0
      %679 = vmatprep.mubr.bf16.mxu0 0
      %680 = vmatmul.mubr.bf16.gmra.mxu0 %v451
      %v681 = vpop.f32.mrf.mxu0
      %v682 = vadd.f32 0.0, %v681
      %v683 = vpop.f32.mrf.mxu0
      %v684 = vpop.f32.mrf.mxu0
      %v685 = vadd.f32 0.0, %v684
      %v686 = vpop.f32.mrf.mxu0
      %687 = vmatprep.mubr.bf16.mxu0 0
      %688 = vmatmul.mubr.bf16.gmra.mxu0 %v452
      %v689 = vpop.f32.mrf.mxu0
      %v690 = vadd.f32 0.0, %v689
      %v691 = vpop.f32.mrf.mxu0
      %v692 = vpop.f32.mrf.mxu0
      %v693 = vadd.f32 0.0, %v692
      %v694 = vpop.f32.mrf.mxu0
      %695 = vdwg.mxu0
      %v696 = vpack.c.bf16 %v557, %v554
      %v697 = vpack.c.bf16 %v565, %v562
      %v698 = vpack.c.bf16 %v573, %v570
      %v699 = vpack.c.bf16 %v581, %v578
      %v700 = vpack.c.bf16 %v589, %v586
      %v701 = vpack.c.bf16 %v597, %v594
      %v702 = vpack.c.bf16 %v605, %v602
      %v703 = vpack.c.bf16 %v613, %v610
      %v704 = vpack.c.bf16 %v621, %v618
      %v705 = vpack.c.bf16 %v629, %v626
      %v706 = vpack.c.bf16 %v637, %v634
      %v707 = vpack.c.bf16 %v645, %v642
      %v708 = vpack.c.bf16 %v653, %v650
      %v709 = vpack.c.bf16 %v661, %v658
      %v710 = vpack.c.bf16 %v669, %v666
      %v711 = vpack.c.bf16 %v677, %v674
      %v712 = vpack.c.bf16 %v685, %v682
      %v713 = vpack.c.bf16 %v693, %v690
      %v732 = vunpack.c.l.b16 %v696
      %v733 = vunpack.c.h.b16 %v696
      %v734 = vunpack.c.l.b16 %v697
      %v735 = vunpack.c.h.b16 %v697
      %v736 = vunpack.c.l.b16 %v698
      %v737 = vunpack.c.h.b16 %v698
      %v738 = vunpack.c.l.b16 %v699
      %v739 = vunpack.c.h.b16 %v699
      %v740 = vunpack.c.l.b16 %v700
      %v741 = vunpack.c.h.b16 %v700
      %v742 = vunpack.c.l.b16 %v701
      %v743 = vunpack.c.h.b16 %v701
      %v744 = vunpack.c.l.b16 %v702
      %v745 = vunpack.c.h.b16 %v702
      %v746 = vunpack.c.l.b16 %v703
      %v747 = vunpack.c.h.b16 %v703
      %v748 = vunpack.c.l.b16 %v704
      %v749 = vunpack.c.h.b16 %v704
      %v750 = vunpack.c.l.b16 %v705
      %v751 = vunpack.c.h.b16 %v705
      %v752 = vunpack.c.l.b16 %v706
      %v753 = vunpack.c.h.b16 %v706
      %v754 = vunpack.c.l.b16 %v707
      %v755 = vunpack.c.h.b16 %v707
      %v756 = vunpack.c.l.b16 %v708
      %v757 = vunpack.c.h.b16 %v708
      %v758 = vunpack.c.l.b16 %v709
      %v759 = vunpack.c.h.b16 %v709
      %v760 = vunpack.c.l.b16 %v710
      %v761 = vunpack.c.h.b16 %v710
      %v762 = vunpack.c.l.b16 %v711
      %v763 = vunpack.c.h.b16 %v711
      %v764 = vunpack.c.l.b16 %v712
      %v765 = vunpack.c.h.b16 %v712
      %v766 = vunpack.c.l.b16 %v713
      %v767 = vunpack.c.h.b16 %v713
      %v768 = vpack.c.b16 %v732, %v732
      %v769 = vpack.c.b16 %v733, %v733
      %v770 = vpack.c.b16 %v734, %v734
      %v771 = vpack.c.b16 %v735, %v735
      %v772 = vpack.c.b16 %v736, %v736
      %v773 = vpack.c.b16 %v737, %v737
      %v774 = vpack.c.b16 %v738, %v738
      %v775 = vpack.c.b16 %v739, %v739
      %v776 = vpack.c.b16 %v740, %v740
      %v777 = vpack.c.b16 %v741, %v741
      %v778 = vpack.c.b16 %v742, %v742
      %v779 = vpack.c.b16 %v743, %v743
      %v780 = vpack.c.b16 %v744, %v744
      %v781 = vpack.c.b16 %v745, %v745
      %v782 = vpack.c.b16 %v746, %v746
      %v783 = vpack.c.b16 %v747, %v747
      %v784 = vpack.c.b16 %v748, %v748
      %v785 = vpack.c.b16 %v749, %v749
      %v786 = vpack.c.b16 %v750, %v750
      %v787 = vpack.c.b16 %v751, %v751
      %v788 = vpack.c.b16 %v752, %v752
      %v789 = vpack.c.b16 %v753, %v753
      %v790 = vpack.c.b16 %v754, %v754
      %v791 = vpack.c.b16 %v755, %v755
      %v792 = vpack.c.b16 %v756, %v756
      %v793 = vpack.c.b16 %v757, %v757
      %v794 = vpack.c.b16 %v758, %v758
      %v795 = vpack.c.b16 %v759, %v759
      %v796 = vpack.c.b16 %v760, %v760
      %v797 = vpack.c.b16 %v761, %v761
      %v798 = vpack.c.b16 %v762, %v762
      %v799 = vpack.c.b16 %v763, %v763
      %v800 = vpack.c.b16 %v764, %v764
      %v801 = vpack.c.b16 %v765, %v765
      %v802 = vpack.c.b16 %v766, %v766
      %v803 = vpack.c.b16 %v767, %v767
      %840 = vst [vmem:[%s296] sm:$0xf] %v768
      %841 = vst [vmem:[%s296 + $0x4] sm:$0xf] %v769
      %842 = vst [vmem:[%s296 + $0x8] sm:$0xf] %v770
      %843 = vst [vmem:[%s296 + $0xc] sm:$0xf] %v771
      %844 = vst [vmem:[%s296 + $0x10] sm:$0xf] %v772
      %845 = vst [vmem:[%s296 + $0x14] sm:$0xf] %v773
      %846 = vst [vmem:[%s296 + $0x18] sm:$0xf] %v774
      %847 = vst [vmem:[%s296 + $0x1c] sm:$0xf] %v775
      %848 = vst [vmem:[%s296 + $0x20] sm:$0xf] %v776
      %849 = vst [vmem:[%s296 + $0x24] sm:$0xf] %v777
      %850 = vst [vmem:[%s296 + $0x28] sm:$0xf] %v778
      %851 = vst [vmem:[%s296 + $0x2c] sm:$0xf] %v779
      %852 = vst [vmem:[%s296 + $0x30] sm:$0xf] %v780
      %853 = vst [vmem:[%s296 + $0x34] sm:$0xf] %v781
      %854 = vst [vmem:[%s296 + $0x38] sm:$0xf] %v782
      %855 = vst [vmem:[%s296 + $0x3c] sm:$0xf] %v783
      %856 = vst [vmem:[%s296 + $0x40] sm:$0xf] %v784
      %857 = vst [vmem:[%s296 + $0x44] sm:$0xf] %v785
      %858 = vst [vmem:[%s296 + $0x48] sm:$0xf] %v786
      %859 = vst [vmem:[%s296 + $0x4c] sm:$0xf] %v787
      %860 = vst [vmem:[%s296 + $0x50] sm:$0xf] %v788
      %861 = vst [vmem:[%s296 + $0x54] sm:$0xf] %v789
      %862 = vst [vmem:[%s296 + $0x58] sm:$0xf] %v790
      %863 = vst [vmem:[%s296 + $0x5c] sm:$0xf] %v791
      %864 = vst [vmem:[%s296 + $0x60] sm:$0xf] %v792
      %865 = vst [vmem:[%s296 + $0x64] sm:$0xf] %v793
      %866 = vst [vmem:[%s296 + $0x68] sm:$0xf] %v794
      %867 = vst [vmem:[%s296 + $0x6c] sm:$0xf] %v795
      %868 = vst [vmem:[%s296 + $0x70] sm:$0xf] %v796
      %869 = vst [vmem:[%s296 + $0x74] sm:$0xf] %v797
      %870 = vst [vmem:[%s296 + $0x78] sm:$0xf] %v798
      %871 = vst [vmem:[%s296 + $0x7c] sm:$0xf] %v799
      %872 = vst [vmem:[%s296 + $0x80] sm:$0xf] %v800
      %873 = vst [vmem:[%s296 + $0x84] sm:$0xf] %v801
      %874 = vst [vmem:[%s296 + $0x88] sm:$0xf] %v802
      %875 = vst [vmem:[%s296 + $0x8c] sm:$0xf] %v803
      %v876 = vld [vmem:[%s286] sm:$0xff]
      %v877 = vld [vmem:[%s286 + $0x8] sm:$0xff]
      %v878 = vld [vmem:[%s286 + $0x10] sm:$0xff]
      %v879 = vld [vmem:[%s286 + $0x18] sm:$0xff]
      %v880 = vld [vmem:[%s286 + $0x20] sm:$0xff]
      %v881 = vld [vmem:[%s286 + $0x28] sm:$0xff]
      %v882 = vld [vmem:[%s286 + $0x30] sm:$0xff]
      %v883 = vld [vmem:[%s286 + $0x38] sm:$0xff]
      %v884 = vld [vmem:[%s286 + $0x40] sm:$0xff]
      %v885 = vld [vmem:[%s286 + $0x48] sm:$0xff]
      %v886 = vld [vmem:[%s286 + $0x50] sm:$0xff]
      %v887 = vld [vmem:[%s286 + $0x58] sm:$0xff]
      %v888 = vld [vmem:[%s286 + $0x60] sm:$0xff]
      %v889 = vld [vmem:[%s286 + $0x68] sm:$0xff]
      %v890 = vld [vmem:[%s286 + $0x70] sm:$0xff]
      %v891 = vld [vmem:[%s286 + $0x78] sm:$0xff]
      %v892 = vld [vmem:[%s286 + $0x80] sm:$0xff]
      %v893 = vld [vmem:[%s286 + $0x88] sm:$0xff]
      %v894 = vld [vmem:[%s286 + $0x90] sm:$0xff]
      %v895 = vld [vmem:[%s286 + $0x98] sm:$0xff]
      %v896 = vld [vmem:[%s286 + $0xa0] sm:$0xff]
      %v897 = vld [vmem:[%s286 + $0xa8] sm:$0xff]
      %v898 = vld [vmem:[%s286 + $0xb0] sm:$0xff]
      %v899 = vld [vmem:[%s286 + $0xb8] sm:$0xff]
      %v900 = vld [vmem:[%s286 + $0xc0] sm:$0xff]
      %v901 = vld [vmem:[%s286 + $0xc8] sm:$0xff]
      %v902 = vld [vmem:[%s286 + $0xd0] sm:$0xff]
      %v903 = vld [vmem:[%s286 + $0xd8] sm:$0xff]
      %v904 = vld [vmem:[%s286 + $0xe0] sm:$0xff]
      %v905 = vld [vmem:[%s286 + $0xe8] sm:$0xff]
      %v906 = vld [vmem:[%s286 + $0xf0] sm:$0xff]
      %v907 = vld [vmem:[%s286 + $0xf8] sm:$0xff]
      %v908 = vld [vmem:[%s286 + $0x100] sm:$0xff]
      %v909 = vld [vmem:[%s286 + $0x108] sm:$0xff]
      %v910 = vld [vmem:[%s286 + $0x110] sm:$0xff]
      %v911 = vld [vmem:[%s286 + $0x118] sm:$0xff]
      %913 = vset.pattern.permute.xlu0 0
      %914 = vperm.xlu0 %913, %v876
      %v915 = vpop.permute.xlu0 %914
      %918 = vset.pattern.permute.xlu0 0
      %919 = vperm.xlu0 %918, %v877
      %v920 = vpop.permute.xlu0 %919
      %923 = vset.pattern.permute.xlu0 0
      %924 = vperm.xlu0 %923, %v878
      %v925 = vpop.permute.xlu0 %924
      %928 = vset.pattern.permute.xlu0 0
      %929 = vperm.xlu0 %928, %v879
      %v930 = vpop.permute.xlu0 %929
      %933 = vset.pattern.permute.xlu0 0
      %934 = vperm.xlu0 %933, %v880
      %v935 = vpop.permute.xlu0 %934
      %938 = vset.pattern.permute.xlu0 0
      %939 = vperm.xlu0 %938, %v881
      %v940 = vpop.permute.xlu0 %939
      %943 = vset.pattern.permute.xlu0 0
      %944 = vperm.xlu0 %943, %v882
      %v945 = vpop.permute.xlu0 %944
      %948 = vset.pattern.permute.xlu0 0
      %949 = vperm.xlu0 %948, %v883
      %v950 = vpop.permute.xlu0 %949
      %953 = vset.pattern.permute.xlu0 0
      %954 = vperm.xlu0 %953, %v884
      %v955 = vpop.permute.xlu0 %954
      %958 = vset.pattern.permute.xlu0 0
      %959 = vperm.xlu0 %958, %v885
      %v960 = vpop.permute.xlu0 %959
      %963 = vset.pattern.permute.xlu0 0
      %964 = vperm.xlu0 %963, %v886
      %v965 = vpop.permute.xlu0 %964
      %968 = vset.pattern.permute.xlu0 0
      %969 = vperm.xlu0 %968, %v887
      %v970 = vpop.permute.xlu0 %969
      %973 = vset.pattern.permute.xlu0 0
      %974 = vperm.xlu0 %973, %v888
      %v975 = vpop.permute.xlu0 %974
      %978 = vset.pattern.permute.xlu0 0
      %979 = vperm.xlu0 %978, %v889
      %v980 = vpop.permute.xlu0 %979
      %983 = vset.pattern.permute.xlu0 0
      %984 = vperm.xlu0 %983, %v890
      %v985 = vpop.permute.xlu0 %984
      %988 = vset.pattern.permute.xlu0 0
      %989 = vperm.xlu0 %988, %v891
      %v990 = vpop.permute.xlu0 %989
      %993 = vset.pattern.permute.xlu0 0
      %994 = vperm.xlu0 %993, %v892
      %v995 = vpop.permute.xlu0 %994
      %998 = vset.pattern.permute.xlu0 0
      %999 = vperm.xlu0 %998, %v893
      %v1000 = vpop.permute.xlu0 %999
      %1003 = vset.pattern.permute.xlu0 0
      %1004 = vperm.xlu0 %1003, %v894
      %v1005 = vpop.permute.xlu0 %1004
      %1008 = vset.pattern.permute.xlu0 0
      %1009 = vperm.xlu0 %1008, %v895
      %v1010 = vpop.permute.xlu0 %1009
      %1013 = vset.pattern.permute.xlu0 0
      %1014 = vperm.xlu0 %1013, %v896
      %v1015 = vpop.permute.xlu0 %1014
      %1018 = vset.pattern.permute.xlu0 0
      %1019 = vperm.xlu0 %1018, %v897
      %v1020 = vpop.permute.xlu0 %1019
      %1023 = vset.pattern.permute.xlu0 0
      %1024 = vperm.xlu0 %1023, %v898
      %v1025 = vpop.permute.xlu0 %1024
      %1028 = vset.pattern.permute.xlu0 0
      %1029 = vperm.xlu0 %1028, %v899
      %v1030 = vpop.permute.xlu0 %1029
      %1033 = vset.pattern.permute.xlu0 0
      %1034 = vperm.xlu0 %1033, %v900
      %v1035 = vpop.permute.xlu0 %1034
      %1038 = vset.pattern.permute.xlu0 0
      %1039 = vperm.xlu0 %1038, %v901
      %v1040 = vpop.permute.xlu0 %1039
      %1043 = vset.pattern.permute.xlu0 0
      %1044 = vperm.xlu0 %1043, %v902
      %v1045 = vpop.permute.xlu0 %1044
      %1048 = vset.pattern.permute.xlu0 0
      %1049 = vperm.xlu0 %1048, %v903
      %v1050 = vpop.permute.xlu0 %1049
      %1053 = vset.pattern.permute.xlu0 0
      %1054 = vperm.xlu0 %1053, %v904
      %v1055 = vpop.permute.xlu0 %1054
      %1058 = vset.pattern.permute.xlu0 0
      %1059 = vperm.xlu0 %1058, %v905
      %v1060 = vpop.permute.xlu0 %1059
      %1063 = vset.pattern.permute.xlu0 0
      %1064 = vperm.xlu0 %1063, %v906
      %v1065 = vpop.permute.xlu0 %1064
      %1068 = vset.pattern.permute.xlu0 0
      %1069 = vperm.xlu0 %1068, %v907
      %v1070 = vpop.permute.xlu0 %1069
      %1073 = vset.pattern.permute.xlu0 0
      %1074 = vperm.xlu0 %1073, %v908
      %v1075 = vpop.permute.xlu0 %1074
      %1078 = vset.pattern.permute.xlu0 0
      %1079 = vperm.xlu0 %1078, %v909
      %v1080 = vpop.permute.xlu0 %1079
      %1083 = vset.pattern.permute.xlu0 0
      %1084 = vperm.xlu0 %1083, %v910
      %v1085 = vpop.permute.xlu0 %1084
      %1088 = vset.pattern.permute.xlu0 0
      %1089 = vperm.xlu0 %1088, %v911
      %v1090 = vpop.permute.xlu0 %1089
      %v1092 = vmul.f32 %v554, %v915
      %v1093 = vmul.f32 %v557, %v920
      %v1094 = vmul.f32 %v562, %v925
      %v1095 = vmul.f32 %v565, %v930
      %v1096 = vmul.f32 %v570, %v935
      %v1097 = vmul.f32 %v573, %v940
      %v1098 = vmul.f32 %v578, %v945
      %v1099 = vmul.f32 %v581, %v950
      %v1100 = vmul.f32 %v586, %v955
      %v1101 = vmul.f32 %v589, %v960
      %v1102 = vmul.f32 %v594, %v965
      %v1103 = vmul.f32 %v597, %v970
      %v1104 = vmul.f32 %v602, %v975
      %v1105 = vmul.f32 %v605, %v980
      %v1106 = vmul.f32 %v610, %v985
      %v1107 = vmul.f32 %v613, %v990
      %v1108 = vmul.f32 %v618, %v995
      %v1109 = vmul.f32 %v621, %v1000
      %v1110 = vmul.f32 %v626, %v1005
      %v1111 = vmul.f32 %v629, %v1010
      %v1112 = vmul.f32 %v634, %v1015
      %v1113 = vmul.f32 %v637, %v1020
      %v1114 = vmul.f32 %v642, %v1025
      %v1115 = vmul.f32 %v645, %v1030
      %v1116 = vmul.f32 %v650, %v1035
      %v1117 = vmul.f32 %v653, %v1040
      %v1118 = vmul.f32 %v658, %v1045
      %v1119 = vmul.f32 %v661, %v1050
      %v1120 = vmul.f32 %v666, %v1055
      %v1121 = vmul.f32 %v669, %v1060
      %v1122 = vmul.f32 %v674, %v1065
      %v1123 = vmul.f32 %v677, %v1070
      %v1124 = vmul.f32 %v682, %v1075
      %v1125 = vmul.f32 %v685, %v1080
      %v1126 = vmul.f32 %v690, %v1085
      %v1127 = vmul.f32 %v693, %v1090
      %v1128 = vadd.f32 %v1092, %v1093
      %v1129 = vadd.f32 %v1128, %v1094
      %v1130 = vadd.f32 %v1129, %v1095
      %v1131 = vadd.f32 %v1130, %v1096
      %v1132 = vadd.f32 %v1131, %v1097
      %v1133 = vadd.f32 %v1132, %v1098
      %v1134 = vadd.f32 %v1133, %v1099
      %v1135 = vadd.f32 %v1134, %v1100
      %v1136 = vadd.f32 %v1135, %v1101
      %v1137 = vadd.f32 %v1136, %v1102
      %v1138 = vadd.f32 %v1137, %v1103
      %v1139 = vadd.f32 %v1138, %v1104
      %v1140 = vadd.f32 %v1139, %v1105
      %v1141 = vadd.f32 %v1140, %v1106
      %v1142 = vadd.f32 %v1141, %v1107
      %v1143 = vadd.f32 %v1142, %v1108
      %v1144 = vadd.f32 %v1143, %v1109
      %v1145 = vadd.f32 %v1144, %v1110
      %v1146 = vadd.f32 %v1145, %v1111
      %v1147 = vadd.f32 %v1146, %v1112
      %v1148 = vadd.f32 %v1147, %v1113
      %v1149 = vadd.f32 %v1148, %v1114
      %v1150 = vadd.f32 %v1149, %v1115
      %v1151 = vadd.f32 %v1150, %v1116
      %v1152 = vadd.f32 %v1151, %v1117
      %v1153 = vadd.f32 %v1152, %v1118
      %v1154 = vadd.f32 %v1153, %v1119
      %v1155 = vadd.f32 %v1154, %v1120
      %v1156 = vadd.f32 %v1155, %v1121
      %v1157 = vadd.f32 %v1156, %v1122
      %v1158 = vadd.f32 %v1157, %v1123
      %v1159 = vadd.f32 %v1158, %v1124
      %v1160 = vadd.f32 %v1159, %v1125
      %v1161 = vadd.f32 %v1160, %v1126
      %v1162 = vadd.f32 %v1161, %v1127
      %v1163 = vrot.slane %v1162, 4
      %v1164 = vadd.f32 %v1162, %v1163
      %v1165 = vrot.slane %v1164, 2
      %v1166 = vadd.f32 %v1164, %v1165
      %v1167 = vrot.slane %v1166, 1
      %v1168 = vadd.f32 %v1166, %v1167
      %1169 = vst [vmem:[%s302] sm:$0xff] %v1168
      %v1170 = vmul.f32 %v1092, %v554
      %v1171 = vmul.f32 %v1093, %v557
      %v1172 = vmul.f32 %v1094, %v562
      %v1173 = vmul.f32 %v1095, %v565
      %v1174 = vmul.f32 %v1096, %v570
      %v1175 = vmul.f32 %v1097, %v573
      %v1176 = vmul.f32 %v1098, %v578
      %v1177 = vmul.f32 %v1099, %v581
      %v1178 = vmul.f32 %v1100, %v586
      %v1179 = vmul.f32 %v1101, %v589
      %v1180 = vmul.f32 %v1102, %v594
      %v1181 = vmul.f32 %v1103, %v597
      %v1182 = vmul.f32 %v1104, %v602
      %v1183 = vmul.f32 %v1105, %v605
      %v1184 = vmul.f32 %v1106, %v610
      %v1185 = vmul.f32 %v1107, %v613
      %v1186 = vmul.f32 %v1108, %v618
      %v1187 = vmul.f32 %v1109, %v621
      %v1188 = vmul.f32 %v1110, %v626
      %v1189 = vmul.f32 %v1111, %v629
      %v1190 = vmul.f32 %v1112, %v634
      %v1191 = vmul.f32 %v1113, %v637
      %v1192 = vmul.f32 %v1114, %v642
      %v1193 = vmul.f32 %v1115, %v645
      %v1194 = vmul.f32 %v1116, %v650
      %v1195 = vmul.f32 %v1117, %v653
      %v1196 = vmul.f32 %v1118, %v658
      %v1197 = vmul.f32 %v1119, %v661
      %v1198 = vmul.f32 %v1120, %v666
      %v1199 = vmul.f32 %v1121, %v669
      %v1200 = vmul.f32 %v1122, %v674
      %v1201 = vmul.f32 %v1123, %v677
      %v1202 = vmul.f32 %v1124, %v682
      %v1203 = vmul.f32 %v1125, %v685
      %v1204 = vmul.f32 %v1126, %v690
      %v1205 = vmul.f32 %v1127, %v693
      %v1206 = vadd.f32 %v1170, %v1171
      %v1207 = vadd.f32 %v1206, %v1172
      %v1208 = vadd.f32 %v1207, %v1173
      %v1209 = vadd.f32 %v1208, %v1174
      %v1210 = vadd.f32 %v1209, %v1175
      %v1211 = vadd.f32 %v1210, %v1176
      %v1212 = vadd.f32 %v1211, %v1177
      %v1213 = vadd.f32 %v1212, %v1178
      %v1214 = vadd.f32 %v1213, %v1179
      %v1215 = vadd.f32 %v1214, %v1180
      %v1216 = vadd.f32 %v1215, %v1181
      %v1217 = vadd.f32 %v1216, %v1182
      %v1218 = vadd.f32 %v1217, %v1183
      %v1219 = vadd.f32 %v1218, %v1184
      %v1220 = vadd.f32 %v1219, %v1185
      %v1221 = vadd.f32 %v1220, %v1186
      %v1222 = vadd.f32 %v1221, %v1187
      %v1223 = vadd.f32 %v1222, %v1188
      %v1224 = vadd.f32 %v1223, %v1189
      %v1225 = vadd.f32 %v1224, %v1190
      %v1226 = vadd.f32 %v1225, %v1191
      %v1227 = vadd.f32 %v1226, %v1192
      %v1228 = vadd.f32 %v1227, %v1193
      %v1229 = vadd.f32 %v1228, %v1194
      %v1230 = vadd.f32 %v1229, %v1195
      %v1231 = vadd.f32 %v1230, %v1196
      %v1232 = vadd.f32 %v1231, %v1197
      %v1233 = vadd.f32 %v1232, %v1198
      %v1234 = vadd.f32 %v1233, %v1199
      %v1235 = vadd.f32 %v1234, %v1200
      %v1236 = vadd.f32 %v1235, %v1201
      %v1237 = vadd.f32 %v1236, %v1202
      %v1238 = vadd.f32 %v1237, %v1203
      %v1239 = vadd.f32 %v1238, %v1204
      %v1240 = vadd.f32 %v1239, %v1205
      %v1241 = vrot.slane %v1240, 4
      %v1242 = vadd.f32 %v1240, %v1241
      %v1243 = vrot.slane %v1242, 2
      %v1244 = vadd.f32 %v1242, %v1243
      %v1245 = vrot.slane %v1244, 1
      %v1246 = vadd.f32 %v1244, %v1245
      %1247 = vst [vmem:[%s308] sm:$0xff] %v1246
      %s1248 = smul.u32 36, %s22
      %p1249 = scmp.lt.s32.totalorder %s21, 1
      %s1250 = scalar_select %p1249, %s21, 1
      %p1251 = scmp.lt.s32.totalorder %s1248, 35
      %s1252 = scalar_select %p1251, %s1248, 35
      %s1253 = smul.addr %s1250, 36
      %s1254 = sadd.s32 %s1252, %s1253
      %s1255 = smul.addr %s1254, 4
      %s1256 = scalar_lea.vmem %s3, %s1255
      %s1257 = sadd.s32 %s21, %s22
      %p1258 = scmp.lt.s32.totalorder %s1257, 1
      %s1259 = scalar_select %p1258, %s1257, 1
      %s1260 = smul.addr %s1259, 8
      %s1261 = scalar_lea.vmem %s4, %s1260
      %s1262 = sadd.s32 %s21, %s22
      %p1263 = scmp.lt.s32.totalorder %s1262, 1
      %s1264 = scalar_select %p1263, %s1262, 1
      %s1265 = smul.addr %s1264, 8
      %s1266 = scalar_lea.vmem %s5, %s1265
      // Predicated region
      $region33: #{basic_block_forward.8} parent=31 // pred_check
        %p1267 = pneg %p124
      $region34: #{basic_block_forward.8} parent=31 // pred_check_branch
        %1269 = sbr.rel (%p1267) target = $region36
      $region35: #{basic_block_forward.8} parent=31 // pred_region
        %s1270 = smul.u32 36, %s22
      $region36: #{basic_block_forward.8} parent=31 // pred_fallthru
        _
      // Predicated region
      $region37: #{basic_block_forward.8} parent=31 // pred_check
        %p1271 = pneg %p152
      $region38: #{basic_block_forward.8} parent=31 // pred_check_branch
        %1273 = sbr.rel (%p1271) target = $region40
      $region39: #{basic_block_forward.8} parent=31 // pred_region
        %s1274 = sadd.s32 %s21, %s22
      $region40: #{basic_block_forward.8} parent=31 // pred_fallthru
        _
      // Predicated region
      $region41: #{basic_block_forward.8} parent=31 // pred_check
        %p1275 = pneg %p180
      $region42: #{basic_block_forward.8} parent=31 // pred_check_branch
        %1277 = sbr.rel (%p1275) target = $region44
      $region43: #{basic_block_forward.8} parent=31 // pred_region
        %s1278 = sadd.s32 %s21, %s22
      $region44: #{basic_block_forward.8} parent=31 // pred_fallthru
        _
    $region32: #{basic_block_forward.8} parent=5 // pred_fallthru
      _
    %p1279 = scmp.le.s32.totalorder 2, %s12
    // Predicated region
    $region45: #{basic_block_forward.8} parent=5 // pred_check
      %p1280 = pneg %p1279
    $region46: #{basic_block_forward.8} parent=5 // pred_check_branch
      %1282 = sbr.rel (%p1280) target = $region48
    $region47: #{basic_block_forward.8} parent=5 // pred_region
      %s1283 = ssub.s32 %s12, 2
      // Predicated region
      $region49: #{basic_block_forward.8} parent=47 // pred_check
        %p1284 = pneg %p130
      $region50: #{basic_block_forward.8} parent=47 // pred_check_branch
        %1286 = sbr.rel (%p1284) target = $region52
      $region51: #{basic_block_forward.8} parent=47 // pred_region
        %s1287 = smul.u32 36, %s24
        %p1288 = scmp.lt.s32.totalorder %s23, 1
        %s1289 = scalar_select %p1288, %s23, 1
        %p1290 = scmp.lt.s32.totalorder %s1287, 35
        %s1291 = scalar_select %p1290, %s1287, 35
        %s1292 = smul.addr %s1289, 36
        %s1293 = sadd.s32 %s1291, %s1292
        %s1294 = smul.addr %s1293, 4
        %s1295 = scalar_lea.vmem %s3, %s1294
      $region52: #{basic_block_forward.8} parent=47 // pred_fallthru
        _
      // Predicated region
      $region53: #{basic_block_forward.8} parent=47 // pred_check
        %p1296 = pneg %p158
      $region54: #{basic_block_forward.8} parent=47 // pred_check_branch
        %1298 = sbr.rel (%p1296) target = $region56
      $region55: #{basic_block_forward.8} parent=47 // pred_region
        %s1299 = sadd.s32 %s23, %s24
        %p1300 = scmp.lt.s32.totalorder %s1299, 1
        %s1301 = scalar_select %p1300, %s1299, 1
        %s1302 = smul.addr %s1301, 8
        %s1303 = scalar_lea.vmem %s4, %s1302
      $region56: #{basic_block_forward.8} parent=47 // pred_fallthru
        _
      // Predicated region
      $region57: #{basic_block_forward.8} parent=47 // pred_check
        %p1304 = pneg %p186
      $region58: #{basic_block_forward.8} parent=47 // pred_check_branch
        %1306 = sbr.rel (%p1304) target = $region60
      $region59: #{basic_block_forward.8} parent=47 // pred_region
        %s1307 = sadd.s32 %s23, %s24
        %p1308 = scmp.lt.s32.totalorder %s1307, 1
        %s1309 = scalar_select %p1308, %s1307, 1
        %s1310 = smul.addr %s1309, 8
        %s1311 = scalar_lea.vmem %s5, %s1310
      $region60: #{basic_block_forward.8} parent=47 // pred_fallthru
        _
    $region48: #{basic_block_forward.8} parent=5 // pred_fallthru
      _
  $region6: #{basic_block_forward.8} parent=0 // loop_footer
    %s16 = sadd.s32 1, %s12
  $region7: #{basic_block_forward.8} parent=0 // loop_footer_branch
    %11 = sbr.rel target = $region3
  $region8: #{basic_block_forward.8} parent=0 // loop_exit
    _

// kernel: basic_block_forward.9
$region0: #{basic_block_forward.9}
  #allocation0 [shape = 'u32[]', space=smem, size = 0x4, offset = 0x4, fixed_abs, tag = 'smem constant byte address 0x4 - core index']
  #allocation1 [shape = 'u32[144,128]{1,0:T(1,128)}', space=vmem, size = 0x12000, scoped, tag = 'internal scratch']
  %s0 = inlined_call_operand.vmem [shape: bf16[576,128], index: 0, kind: input, shape index: {}]
  %s1 = inlined_call_operand.vmem [shape: f32[1,128], index: 1, kind: input, shape index: {}]
  %s2 = inlined_call_operand.vmem [shape: f32[1,128], index: 2, kind: input, shape index: {}]
  %s3 = inlined_call_operand.vmem [shape: bf16[576,128], index: 3, kind: input, shape index: {}]
  %s4 = inlined_call_operand.vmem [shape: f32[1,128], index: 4, kind: input, shape index: {}]
  %s5 = inlined_call_operand.vmem [shape: f32[1,128], index: 5, kind: input, shape index: {}]
  %s6 = inlined_call_operand.vmem [shape: f32[576,128], index: 6, kind: output, shape index: {}]
  %s7 = sld [smem:[#allocation0]]
  $region34: #{basic_block_forward.9} parent=0
    _
  %s9 = ssub.s32 1, %s7
  %s10 = scalar_select 0, %s9, %s7
  // Predicated region
  $region2: #{basic_block_forward.9} parent=0 // pred_check
    _
  $region3: #{basic_block_forward.9} parent=0 // pred_check_branch
    %12 = sbr.rel (0) target = $region5
  $region4: #{basic_block_forward.9} parent=0 // pred_region
    _
  $region5: #{basic_block_forward.9} parent=0 // pred_fallthru
    _
  // Predicated region
  $region6: #{basic_block_forward.9} parent=0 // pred_check
    _
  $region7: #{basic_block_forward.9} parent=0 // pred_check_branch
    %14 = sbr.rel (0) target = $region9
  $region8: #{basic_block_forward.9} parent=0 // pred_region
    _
  $region9: #{basic_block_forward.9} parent=0 // pred_fallthru
    _
  // Predicated region
  $region10: #{basic_block_forward.9} parent=0 // pred_check
    _
  $region11: #{basic_block_forward.9} parent=0 // pred_check_branch
    %16 = sbr.rel (0) target = $region13
  $region12: #{basic_block_forward.9} parent=0 // pred_region
    _
  $region13: #{basic_block_forward.9} parent=0 // pred_fallthru
    _
  // Predicated region
  $region14: #{basic_block_forward.9} parent=0 // pred_check
    _
  $region15: #{basic_block_forward.9} parent=0 // pred_check_branch
    %18 = sbr.rel (0) target = $region17
  $region16: #{basic_block_forward.9} parent=0 // pred_region
    _
  $region17: #{basic_block_forward.9} parent=0 // pred_fallthru
    _
  // Predicated region
  $region18: #{basic_block_forward.9} parent=0 // pred_check
    _
  $region19: #{basic_block_forward.9} parent=0 // pred_check_branch
    %20 = sbr.rel (0) target = $region21
  $region20: #{basic_block_forward.9} parent=0 // pred_region
    _
  $region21: #{basic_block_forward.9} parent=0 // pred_fallthru
    _
  // Predicated region
  $region22: #{basic_block_forward.9} parent=0 // pred_check
    _
  $region23: #{basic_block_forward.9} parent=0 // pred_check_branch
    %22 = sbr.rel (0) target = $region25
  $region24: #{basic_block_forward.9} parent=0 // pred_region
    _
  $region25: #{basic_block_forward.9} parent=0 // pred_fallthru
    _
  %v23 = vld [vmem:[%s0] sm:$0xf]
  %v24 = vld [vmem:[%s0 + $0x4] sm:$0xf]
  %v25 = vld [vmem:[%s0 + $0x8] sm:$0xf]
  %v26 = vld [vmem:[%s0 + $0xc] sm:$0xf]
  %v27 = vld [vmem:[%s0 + $0x10] sm:$0xf]
  %v28 = vld [vmem:[%s0 + $0x14] sm:$0xf]
  %v29 = vld [vmem:[%s0 + $0x18] sm:$0xf]
  %v30 = vld [vmem:[%s0 + $0x1c] sm:$0xf]
  %v31 = vld [vmem:[%s0 + $0x20] sm:$0xf]
  %v32 = vld [vmem:[%s0 + $0x24] sm:$0xf]
  %v33 = vld [vmem:[%s0 + $0x28] sm:$0xf]
  %v34 = vld [vmem:[%s0 + $0x2c] sm:$0xf]
  %v35 = vld [vmem:[%s0 + $0x30] sm:$0xf]
  %v36 = vld [vmem:[%s0 + $0x34] sm:$0xf]
  %v37 = vld [vmem:[%s0 + $0x38] sm:$0xf]
  %v38 = vld [vmem:[%s0 + $0x3c] sm:$0xf]
  %v39 = vld [vmem:[%s0 + $0x40] sm:$0xf]
  %v40 = vld [vmem:[%s0 + $0x44] sm:$0xf]
  %v41 = vld [vmem:[%s0 + $0x48] sm:$0xf]
  %v42 = vld [vmem:[%s0 + $0x4c] sm:$0xf]
  %v43 = vld [vmem:[%s0 + $0x50] sm:$0xf]
  %v44 = vld [vmem:[%s0 + $0x54] sm:$0xf]
  %v45 = vld [vmem:[%s0 + $0x58] sm:$0xf]
  %v46 = vld [vmem:[%s0 + $0x5c] sm:$0xf]
  %v47 = vld [vmem:[%s0 + $0x60] sm:$0xf]
  %v48 = vld [vmem:[%s0 + $0x64] sm:$0xf]
  %v49 = vld [vmem:[%s0 + $0x68] sm:$0xf]
  %v50 = vld [vmem:[%s0 + $0x6c] sm:$0xf]
  %v51 = vld [vmem:[%s0 + $0x70] sm:$0xf]
  %v52 = vld [vmem:[%s0 + $0x74] sm:$0xf]
  %v53 = vld [vmem:[%s0 + $0x78] sm:$0xf]
  %v54 = vld [vmem:[%s0 + $0x7c] sm:$0xf]
  %v55 = vld [vmem:[%s0 + $0x80] sm:$0xf]
  %v56 = vld [vmem:[%s0 + $0x84] sm:$0xf]
  %v57 = vld [vmem:[%s0 + $0x88] sm:$0xf]
  %v58 = vld [vmem:[%s0 + $0x8c] sm:$0xf]
  %v59 = vld [vmem:[%s0 + $0x90] sm:$0xf]
  %v60 = vld [vmem:[%s0 + $0x94] sm:$0xf]
  %v61 = vld [vmem:[%s0 + $0x98] sm:$0xf]
  %v62 = vld [vmem:[%s0 + $0x9c] sm:$0xf]
  %v63 = vld [vmem:[%s0 + $0xa0] sm:$0xf]
  %v64 = vld [vmem:[%s0 + $0xa4] sm:$0xf]
  %v65 = vld [vmem:[%s0 + $0xa8] sm:$0xf]
  %v66 = vld [vmem:[%s0 + $0xac] sm:$0xf]
  %v67 = vld [vmem:[%s0 + $0xb0] sm:$0xf]
  %v68 = vld [vmem:[%s0 + $0xb4] sm:$0xf]
  %v69 = vld [vmem:[%s0 + $0xb8] sm:$0xf]
  %v70 = vld [vmem:[%s0 + $0xbc] sm:$0xf]
  %v71 = vld [vmem:[%s0 + $0xc0] sm:$0xf]
  %v72 = vld [vmem:[%s0 + $0xc4] sm:$0xf]
  %v73 = vld [vmem:[%s0 + $0xc8] sm:$0xf]
  %v74 = vld [vmem:[%s0 + $0xcc] sm:$0xf]
  %v75 = vld [vmem:[%s0 + $0xd0] sm:$0xf]
  %v76 = vld [vmem:[%s0 + $0xd4] sm:$0xf]
  %v77 = vld [vmem:[%s0 + $0xd8] sm:$0xf]
  %v78 = vld [vmem:[%s0 + $0xdc] sm:$0xf]
  %v79 = vld [vmem:[%s0 + $0xe0] sm:$0xf]
  %v80 = vld [vmem:[%s0 + $0xe4] sm:$0xf]
  %v81 = vld [vmem:[%s0 + $0xe8] sm:$0xf]
  %v82 = vld [vmem:[%s0 + $0xec] sm:$0xf]
  %v83 = vld [vmem:[%s0 + $0xf0] sm:$0xf]
  %v84 = vld [vmem:[%s0 + $0xf4] sm:$0xf]
  %v85 = vld [vmem:[%s0 + $0xf8] sm:$0xf]
  %v86 = vld [vmem:[%s0 + $0xfc] sm:$0xf]
  %v87 = vld [vmem:[%s0 + $0x100] sm:$0xf]
  %v88 = vld [vmem:[%s0 + $0x104] sm:$0xf]
  %v89 = vld [vmem:[%s0 + $0x108] sm:$0xf]
  %v90 = vld [vmem:[%s0 + $0x10c] sm:$0xf]
  %v91 = vld [vmem:[%s0 + $0x110] sm:$0xf]
  %v92 = vld [vmem:[%s0 + $0x114] sm:$0xf]
  %v93 = vld [vmem:[%s0 + $0x118] sm:$0xf]
  %v94 = vld [vmem:[%s0 + $0x11c] sm:$0xf]
  %v95 = vunpack.c.l.bf16 %v23
  %v96 = vunpack.c.l.bf16 %v24
  %v97 = vunpack.c.l.bf16 %v25
  %v98 = vunpack.c.l.bf16 %v26
  %v99 = vunpack.c.l.bf16 %v27
  %v100 = vunpack.c.l.bf16 %v28
  %v101 = vunpack.c.l.bf16 %v29
  %v102 = vunpack.c.l.bf16 %v30
  %v103 = vunpack.c.l.bf16 %v31
  %v104 = vunpack.c.l.bf16 %v32
  %v105 = vunpack.c.l.bf16 %v33
  %v106 = vunpack.c.l.bf16 %v34
  %v107 = vunpack.c.l.bf16 %v35
  %v108 = vunpack.c.l.bf16 %v36
  %v109 = vunpack.c.l.bf16 %v37
  %v110 = vunpack.c.l.bf16 %v38
  %v111 = vunpack.c.l.bf16 %v39
  %v112 = vunpack.c.l.bf16 %v40
  %v113 = vunpack.c.l.bf16 %v41
  %v114 = vunpack.c.l.bf16 %v42
  %v115 = vunpack.c.l.bf16 %v43
  %v116 = vunpack.c.l.bf16 %v44
  %v117 = vunpack.c.l.bf16 %v45
  %v118 = vunpack.c.l.bf16 %v46
  %v119 = vunpack.c.l.bf16 %v47
  %v120 = vunpack.c.l.bf16 %v48
  %v121 = vunpack.c.l.bf16 %v49
  %v122 = vunpack.c.l.bf16 %v50
  %v123 = vunpack.c.l.bf16 %v51
  %v124 = vunpack.c.l.bf16 %v52
  %v125 = vunpack.c.l.bf16 %v53
  %v126 = vunpack.c.l.bf16 %v54
  %v127 = vunpack.c.l.bf16 %v55
  %v128 = vunpack.c.l.bf16 %v56
  %v129 = vunpack.c.l.bf16 %v57
  %v130 = vunpack.c.l.bf16 %v58
  %v131 = vunpack.c.l.bf16 %v59
  %v132 = vunpack.c.l.bf16 %v60
  %v133 = vunpack.c.l.bf16 %v61
  %v134 = vunpack.c.l.bf16 %v62
  %v135 = vunpack.c.l.bf16 %v63
  %v136 = vunpack.c.l.bf16 %v64
  %v137 = vunpack.c.l.bf16 %v65
  %v138 = vunpack.c.l.bf16 %v66
  %v139 = vunpack.c.l.bf16 %v67
  %v140 = vunpack.c.l.bf16 %v68
  %v141 = vunpack.c.l.bf16 %v69
  %v142 = vunpack.c.l.bf16 %v70
  %v143 = vunpack.c.l.bf16 %v71
  %v144 = vunpack.c.l.bf16 %v72
  %v145 = vunpack.c.l.bf16 %v73
  %v146 = vunpack.c.l.bf16 %v74
  %v147 = vunpack.c.l.bf16 %v75
  %v148 = vunpack.c.l.bf16 %v76
  %v149 = vunpack.c.l.bf16 %v77
  %v150 = vunpack.c.l.bf16 %v78
  %v151 = vunpack.c.l.bf16 %v79
  %v152 = vunpack.c.l.bf16 %v80
  %v153 = vunpack.c.l.bf16 %v81
  %v154 = vunpack.c.l.bf16 %v82
  %v155 = vunpack.c.l.bf16 %v83
  %v156 = vunpack.c.l.bf16 %v84
  %v157 = vunpack.c.l.bf16 %v85
  %v158 = vunpack.c.l.bf16 %v86
  %v159 = vunpack.c.l.bf16 %v87
  %v160 = vunpack.c.l.bf16 %v88
  %v161 = vunpack.c.l.bf16 %v89
  %v162 = vunpack.c.l.bf16 %v90
  %v163 = vunpack.c.l.bf16 %v91
  %v164 = vunpack.c.l.bf16 %v92
  %v165 = vunpack.c.l.bf16 %v93
  %v166 = vunpack.c.l.bf16 %v94
  %v167 = vld [vmem:[%s1] sm:$0x1]
  %v169 = vlaneseq
  %v170 = vshrl.u32 %v169, 7
  %v171 = vsub.s32 0, %v170
  %v172 = vrot.slane %v167, %v171
  %v174 = vmul.f32 %v95, %v172
  %v175 = vmul.f32 %v96, %v172
  %v176 = vmul.f32 %v97, %v172
  %v177 = vmul.f32 %v98, %v172
  %v178 = vmul.f32 %v99, %v172
  %v179 = vmul.f32 %v100, %v172
  %v180 = vmul.f32 %v101, %v172
  %v181 = vmul.f32 %v102, %v172
  %v182 = vmul.f32 %v103, %v172
  %v183 = vmul.f32 %v104, %v172
  %v184 = vmul.f32 %v105, %v172
  %v185 = vmul.f32 %v106, %v172
  %v186 = vmul.f32 %v107, %v172
  %v187 = vmul.f32 %v108, %v172
  %v188 = vmul.f32 %v109, %v172
  %v189 = vmul.f32 %v110, %v172
  %v190 = vmul.f32 %v111, %v172
  %v191 = vmul.f32 %v112, %v172
  %v192 = vmul.f32 %v113, %v172
  %v193 = vmul.f32 %v114, %v172
  %v194 = vmul.f32 %v115, %v172
  %v195 = vmul.f32 %v116, %v172
  %v196 = vmul.f32 %v117, %v172
  %v197 = vmul.f32 %v118, %v172
  %v198 = vmul.f32 %v119, %v172
  %v199 = vmul.f32 %v120, %v172
  %v200 = vmul.f32 %v121, %v172
  %v201 = vmul.f32 %v122, %v172
  %v202 = vmul.f32 %v123, %v172
  %v203 = vmul.f32 %v124, %v172
  %v204 = vmul.f32 %v125, %v172
  %v205 = vmul.f32 %v126, %v172
  %v206 = vmul.f32 %v127, %v172
  %v207 = vmul.f32 %v128, %v172
  %v208 = vmul.f32 %v129, %v172
  %v209 = vmul.f32 %v130, %v172
  %v210 = vmul.f32 %v131, %v172
  %v211 = vmul.f32 %v132, %v172
  %v212 = vmul.f32 %v133, %v172
  %v213 = vmul.f32 %v134, %v172
  %v214 = vmul.f32 %v135, %v172
  %v215 = vmul.f32 %v136, %v172
  %v216 = vmul.f32 %v137, %v172
  %v217 = vmul.f32 %v138, %v172
  %v218 = vmul.f32 %v139, %v172
  %v219 = vmul.f32 %v140, %v172
  %v220 = vmul.f32 %v141, %v172
  %v221 = vmul.f32 %v142, %v172
  %v222 = vmul.f32 %v143, %v172
  %v223 = vmul.f32 %v144, %v172
  %v224 = vmul.f32 %v145, %v172
  %v225 = vmul.f32 %v146, %v172
  %v226 = vmul.f32 %v147, %v172
  %v227 = vmul.f32 %v148, %v172
  %v228 = vmul.f32 %v149, %v172
  %v229 = vmul.f32 %v150, %v172
  %v230 = vmul.f32 %v151, %v172
  %v231 = vmul.f32 %v152, %v172
  %v232 = vmul.f32 %v153, %v172
  %v233 = vmul.f32 %v154, %v172
  %v234 = vmul.f32 %v155, %v172
  %v235 = vmul.f32 %v156, %v172
  %v236 = vmul.f32 %v157, %v172
  %v237 = vmul.f32 %v158, %v172
  %v238 = vmul.f32 %v159, %v172
  %v239 = vmul.f32 %v160, %v172
  %v240 = vmul.f32 %v161, %v172
  %v241 = vmul.f32 %v162, %v172
  %v242 = vmul.f32 %v163, %v172
  %v243 = vmul.f32 %v164, %v172
  %v244 = vmul.f32 %v165, %v172
  %v245 = vmul.f32 %v166, %v172
  %v246 = vld [vmem:[%s2] sm:$0x1]
  %v248 = vlaneseq
  %v249 = vshrl.u32 %v248, 7
  %v250 = vsub.s32 0, %v249
  %v251 = vrot.slane %v246, %v250
  %v253 = vadd.f32 %v174, %v251
  %v254 = vadd.f32 %v175, %v251
  %v255 = vadd.f32 %v176, %v251
  %v256 = vadd.f32 %v177, %v251
  %v257 = vadd.f32 %v178, %v251
  %v258 = vadd.f32 %v179, %v251
  %v259 = vadd.f32 %v180, %v251
  %v260 = vadd.f32 %v181, %v251
  %v261 = vadd.f32 %v182, %v251
  %v262 = vadd.f32 %v183, %v251
  %v263 = vadd.f32 %v184, %v251
  %v264 = vadd.f32 %v185, %v251
  %v265 = vadd.f32 %v186, %v251
  %v266 = vadd.f32 %v187, %v251
  %v267 = vadd.f32 %v188, %v251
  %v268 = vadd.f32 %v189, %v251
  %v269 = vadd.f32 %v190, %v251
  %v270 = vadd.f32 %v191, %v251
  %v271 = vadd.f32 %v192, %v251
  %v272 = vadd.f32 %v193, %v251
  %v273 = vadd.f32 %v194, %v251
  %v274 = vadd.f32 %v195, %v251
  %v275 = vadd.f32 %v196, %v251
  %v276 = vadd.f32 %v197, %v251
  %v277 = vadd.f32 %v198, %v251
  %v278 = vadd.f32 %v199, %v251
  %v279 = vadd.f32 %v200, %v251
  %v280 = vadd.f32 %v201, %v251
  %v281 = vadd.f32 %v202, %v251
  %v282 = vadd.f32 %v203, %v251
  %v283 = vadd.f32 %v204, %v251
  %v284 = vadd.f32 %v205, %v251
  %v285 = vadd.f32 %v206, %v251
  %v286 = vadd.f32 %v207, %v251
  %v287 = vadd.f32 %v208, %v251
  %v288 = vadd.f32 %v209, %v251
  %v289 = vadd.f32 %v210, %v251
  %v290 = vadd.f32 %v211, %v251
  %v291 = vadd.f32 %v212, %v251
  %v292 = vadd.f32 %v213, %v251
  %v293 = vadd.f32 %v214, %v251
  %v294 = vadd.f32 %v215, %v251
  %v295 = vadd.f32 %v216, %v251
  %v296 = vadd.f32 %v217, %v251
  %v297 = vadd.f32 %v218, %v251
  %v298 = vadd.f32 %v219, %v251
  %v299 = vadd.f32 %v220, %v251
  %v300 = vadd.f32 %v221, %v251
  %v301 = vadd.f32 %v222, %v251
  %v302 = vadd.f32 %v223, %v251
  %v303 = vadd.f32 %v224, %v251
  %v304 = vadd.f32 %v225, %v251
  %v305 = vadd.f32 %v226, %v251
  %v306 = vadd.f32 %v227, %v251
  %v307 = vadd.f32 %v228, %v251
  %v308 = vadd.f32 %v229, %v251
  %v309 = vadd.f32 %v230, %v251
  %v310 = vadd.f32 %v231, %v251
  %v311 = vadd.f32 %v232, %v251
  %v312 = vadd.f32 %v233, %v251
  %v313 = vadd.f32 %v234, %v251
  %v314 = vadd.f32 %v235, %v251
  %v315 = vadd.f32 %v236, %v251
  %v316 = vadd.f32 %v237, %v251
  %v317 = vadd.f32 %v238, %v251
  %v318 = vadd.f32 %v239, %v251
  %v319 = vadd.f32 %v240, %v251
  %v320 = vadd.f32 %v241, %v251
  %v321 = vadd.f32 %v242, %v251
  %v322 = vadd.f32 %v243, %v251
  %v323 = vadd.f32 %v244, %v251
  %v324 = vadd.f32 %v245, %v251
  %v325 = vld [vmem:[%s3] sm:$0xf]
  %v326 = vld [vmem:[%s3 + $0x4] sm:$0xf]
  %v327 = vld [vmem:[%s3 + $0x8] sm:$0xf]
  %v328 = vld [vmem:[%s3 + $0xc] sm:$0xf]
  %v329 = vld [vmem:[%s3 + $0x10] sm:$0xf]
  %v330 = vld [vmem:[%s3 + $0x14] sm:$0xf]
  %v331 = vld [vmem:[%s3 + $0x18] sm:$0xf]
  %v332 = vld [vmem:[%s3 + $0x1c] sm:$0xf]
  %v333 = vld [vmem:[%s3 + $0x20] sm:$0xf]
  %v334 = vld [vmem:[%s3 + $0x24] sm:$0xf]
  %v335 = vld [vmem:[%s3 + $0x28] sm:$0xf]
  %v336 = vld [vmem:[%s3 + $0x2c] sm:$0xf]
  %v337 = vld [vmem:[%s3 + $0x30] sm:$0xf]
  %v338 = vld [vmem:[%s3 + $0x34] sm:$0xf]
  %v339 = vld [vmem:[%s3 + $0x38] sm:$0xf]
  %v340 = vld [vmem:[%s3 + $0x3c] sm:$0xf]
  %v341 = vld [vmem:[%s3 + $0x40] sm:$0xf]
  %v342 = vld [vmem:[%s3 + $0x44] sm:$0xf]
  %v343 = vld [vmem:[%s3 + $0x48] sm:$0xf]
  %v344 = vld [vmem:[%s3 + $0x4c] sm:$0xf]
  %v345 = vld [vmem:[%s3 + $0x50] sm:$0xf]
  %v346 = vld [vmem:[%s3 + $0x54] sm:$0xf]
  %v347 = vld [vmem:[%s3 + $0x58] sm:$0xf]
  %v348 = vld [vmem:[%s3 + $0x5c] sm:$0xf]
  %v349 = vld [vmem:[%s3 + $0x60] sm:$0xf]
  %v350 = vld [vmem:[%s3 + $0x64] sm:$0xf]
  %v351 = vld [vmem:[%s3 + $0x68] sm:$0xf]
  %v352 = vld [vmem:[%s3 + $0x6c] sm:$0xf]
  %v353 = vld [vmem:[%s3 + $0x70] sm:$0xf]
  %v354 = vld [vmem:[%s3 + $0x74] sm:$0xf]
  %v355 = vld [vmem:[%s3 + $0x78] sm:$0xf]
  %v356 = vld [vmem:[%s3 + $0x7c] sm:$0xf]
  %v357 = vld [vmem:[%s3 + $0x80] sm:$0xf]
  %v358 = vld [vmem:[%s3 + $0x84] sm:$0xf]
  %v359 = vld [vmem:[%s3 + $0x88] sm:$0xf]
  %v360 = vld [vmem:[%s3 + $0x8c] sm:$0xf]
  %v361 = vld [vmem:[%s3 + $0x90] sm:$0xf]
  %v362 = vld [vmem:[%s3 + $0x94] sm:$0xf]
  %v363 = vld [vmem:[%s3 + $0x98] sm:$0xf]
  %v364 = vld [vmem:[%s3 + $0x9c] sm:$0xf]
  %v365 = vld [vmem:[%s3 + $0xa0] sm:$0xf]
  %v366 = vld [vmem:[%s3 + $0xa4] sm:$0xf]
  %v367 = vld [vmem:[%s3 + $0xa8] sm:$0xf]
  %v368 = vld [vmem:[%s3 + $0xac] sm:$0xf]
  %v369 = vld [vmem:[%s3 + $0xb0] sm:$0xf]
  %v370 = vld [vmem:[%s3 + $0xb4] sm:$0xf]
  %v371 = vld [vmem:[%s3 + $0xb8] sm:$0xf]
  %v372 = vld [vmem:[%s3 + $0xbc] sm:$0xf]
  %v373 = vld [vmem:[%s3 + $0xc0] sm:$0xf]
  %v374 = vld [vmem:[%s3 + $0xc4] sm:$0xf]
  %v375 = vld [vmem:[%s3 + $0xc8] sm:$0xf]
  %v376 = vld [vmem:[%s3 + $0xcc] sm:$0xf]
  %v377 = vld [vmem:[%s3 + $0xd0] sm:$0xf]
  %v378 = vld [vmem:[%s3 + $0xd4] sm:$0xf]
  %v379 = vld [vmem:[%s3 + $0xd8] sm:$0xf]
  %v380 = vld [vmem:[%s3 + $0xdc] sm:$0xf]
  %v381 = vld [vmem:[%s3 + $0xe0] sm:$0xf]
  %v382 = vld [vmem:[%s3 + $0xe4] sm:$0xf]
  %v383 = vld [vmem:[%s3 + $0xe8] sm:$0xf]
  %v384 = vld [vmem:[%s3 + $0xec] sm:$0xf]
  %v385 = vld [vmem:[%s3 + $0xf0] sm:$0xf]
  %v386 = vld [vmem:[%s3 + $0xf4] sm:$0xf]
  %v387 = vld [vmem:[%s3 + $0xf8] sm:$0xf]
  %v388 = vld [vmem:[%s3 + $0xfc] sm:$0xf]
  %v389 = vld [vmem:[%s3 + $0x100] sm:$0xf]
  %v390 = vld [vmem:[%s3 + $0x104] sm:$0xf]
  %v391 = vld [vmem:[%s3 + $0x108] sm:$0xf]
  %v392 = vld [vmem:[%s3 + $0x10c] sm:$0xf]
  %v393 = vld [vmem:[%s3 + $0x110] sm:$0xf]
  %v394 = vld [vmem:[%s3 + $0x114] sm:$0xf]
  %v395 = vld [vmem:[%s3 + $0x118] sm:$0xf]
  %v396 = vld [vmem:[%s3 + $0x11c] sm:$0xf]
  %v397 = vunpack.c.l.bf16 %v325
  %v398 = vunpack.c.l.bf16 %v326
  %v399 = vunpack.c.l.bf16 %v327
  %v400 = vunpack.c.l.bf16 %v328
  %v401 = vunpack.c.l.bf16 %v329
  %v402 = vunpack.c.l.bf16 %v330
  %v403 = vunpack.c.l.bf16 %v331
  %v404 = vunpack.c.l.bf16 %v332
  %v405 = vunpack.c.l.bf16 %v333
  %v406 = vunpack.c.l.bf16 %v334
  %v407 = vunpack.c.l.bf16 %v335
  %v408 = vunpack.c.l.bf16 %v336
  %v409 = vunpack.c.l.bf16 %v337
  %v410 = vunpack.c.l.bf16 %v338
  %v411 = vunpack.c.l.bf16 %v339
  %v412 = vunpack.c.l.bf16 %v340
  %v413 = vunpack.c.l.bf16 %v341
  %v414 = vunpack.c.l.bf16 %v342
  %v415 = vunpack.c.l.bf16 %v343
  %v416 = vunpack.c.l.bf16 %v344
  %v417 = vunpack.c.l.bf16 %v345
  %v418 = vunpack.c.l.bf16 %v346
  %v419 = vunpack.c.l.bf16 %v347
  %v420 = vunpack.c.l.bf16 %v348
  %v421 = vunpack.c.l.bf16 %v349
  %v422 = vunpack.c.l.bf16 %v350
  %v423 = vunpack.c.l.bf16 %v351
  %v424 = vunpack.c.l.bf16 %v352
  %v425 = vunpack.c.l.bf16 %v353
  %v426 = vunpack.c.l.bf16 %v354
  %v427 = vunpack.c.l.bf16 %v355
  %v428 = vunpack.c.l.bf16 %v356
  %v429 = vunpack.c.l.bf16 %v357
  %v430 = vunpack.c.l.bf16 %v358
  %v431 = vunpack.c.l.bf16 %v359
  %v432 = vunpack.c.l.bf16 %v360
  %v433 = vunpack.c.l.bf16 %v361
  %v434 = vunpack.c.l.bf16 %v362
  %v435 = vunpack.c.l.bf16 %v363
  %v436 = vunpack.c.l.bf16 %v364
  %v437 = vunpack.c.l.bf16 %v365
  %v438 = vunpack.c.l.bf16 %v366
  %v439 = vunpack.c.l.bf16 %v367
  %v440 = vunpack.c.l.bf16 %v368
  %v441 = vunpack.c.l.bf16 %v369
  %v442 = vunpack.c.l.bf16 %v370
  %v443 = vunpack.c.l.bf16 %v371
  %v444 = vunpack.c.l.bf16 %v372
  %v445 = vunpack.c.l.bf16 %v373
  %v446 = vunpack.c.l.bf16 %v374
  %v447 = vunpack.c.l.bf16 %v375
  %v448 = vunpack.c.l.bf16 %v376
  %v449 = vunpack.c.l.bf16 %v377
  %v450 = vunpack.c.l.bf16 %v378
  %v451 = vunpack.c.l.bf16 %v379
  %v452 = vunpack.c.l.bf16 %v380
  %v453 = vunpack.c.l.bf16 %v381
  %v454 = vunpack.c.l.bf16 %v382
  %v455 = vunpack.c.l.bf16 %v383
  %v456 = vunpack.c.l.bf16 %v384
  %v457 = vunpack.c.l.bf16 %v385
  %v458 = vunpack.c.l.bf16 %v386
  %v459 = vunpack.c.l.bf16 %v387
  %v460 = vunpack.c.l.bf16 %v388
  %v461 = vunpack.c.l.bf16 %v389
  %v462 = vunpack.c.l.bf16 %v390
  %v463 = vunpack.c.l.bf16 %v391
  %v464 = vunpack.c.l.bf16 %v392
  %v465 = vunpack.c.l.bf16 %v393
  %v466 = vunpack.c.l.bf16 %v394
  %v467 = vunpack.c.l.bf16 %v395
  %v468 = vunpack.c.l.bf16 %v396
  %v469 = vld [vmem:[%s4] sm:$0x1]
  %v471 = vlaneseq
  %v472 = vshrl.u32 %v471, 7
  %v473 = vsub.s32 0, %v472
  %v474 = vrot.slane %v469, %v473
  %v476 = vmul.f32 %v397, %v474
  %v477 = vmul.f32 %v398, %v474
  %v478 = vmul.f32 %v399, %v474
  %v479 = vmul.f32 %v400, %v474
  %v480 = vmul.f32 %v401, %v474
  %v481 = vmul.f32 %v402, %v474
  %v482 = vmul.f32 %v403, %v474
  %v483 = vmul.f32 %v404, %v474
  %v484 = vmul.f32 %v405, %v474
  %v485 = vmul.f32 %v406, %v474
  %v486 = vmul.f32 %v407, %v474
  %v487 = vmul.f32 %v408, %v474
  %v488 = vmul.f32 %v409, %v474
  %v489 = vmul.f32 %v410, %v474
  %v490 = vmul.f32 %v411, %v474
  %v491 = vmul.f32 %v412, %v474
  %v492 = vmul.f32 %v413, %v474
  %v493 = vmul.f32 %v414, %v474
  %v494 = vmul.f32 %v415, %v474
  %v495 = vmul.f32 %v416, %v474
  %v496 = vmul.f32 %v417, %v474
  %v497 = vmul.f32 %v418, %v474
  %v498 = vmul.f32 %v419, %v474
  %v499 = vmul.f32 %v420, %v474
  %v500 = vmul.f32 %v421, %v474
  %v501 = vmul.f32 %v422, %v474
  %v502 = vmul.f32 %v423, %v474
  %v503 = vmul.f32 %v424, %v474
  %v504 = vmul.f32 %v425, %v474
  %v505 = vmul.f32 %v426, %v474
  %v506 = vmul.f32 %v427, %v474
  %v507 = vmul.f32 %v428, %v474
  %v508 = vmul.f32 %v429, %v474
  %v509 = vmul.f32 %v430, %v474
  %v510 = vmul.f32 %v431, %v474
  %v511 = vmul.f32 %v432, %v474
  %v512 = vmul.f32 %v433, %v474
  %v513 = vmul.f32 %v434, %v474
  %v514 = vmul.f32 %v435, %v474
  %v515 = vmul.f32 %v436, %v474
  %v516 = vmul.f32 %v437, %v474
  %v517 = vmul.f32 %v438, %v474
  %v518 = vmul.f32 %v439, %v474
  %v519 = vmul.f32 %v440, %v474
  %v520 = vmul.f32 %v441, %v474
  %v521 = vmul.f32 %v442, %v474
  %v522 = vmul.f32 %v443, %v474
  %v523 = vmul.f32 %v444, %v474
  %v524 = vmul.f32 %v445, %v474
  %v525 = vmul.f32 %v446, %v474
  %v526 = vmul.f32 %v447, %v474
  %v527 = vmul.f32 %v448, %v474
  %v528 = vmul.f32 %v449, %v474
  %v529 = vmul.f32 %v450, %v474
  %v530 = vmul.f32 %v451, %v474
  %v531 = vmul.f32 %v452, %v474
  %v532 = vmul.f32 %v453, %v474
  %v533 = vmul.f32 %v454, %v474
  %v534 = vmul.f32 %v455, %v474
  %v535 = vmul.f32 %v456, %v474
  %v536 = vmul.f32 %v457, %v474
  %v537 = vmul.f32 %v458, %v474
  %v538 = vmul.f32 %v459, %v474
  %v539 = vmul.f32 %v460, %v474
  %v540 = vmul.f32 %v461, %v474
  %v541 = vmul.f32 %v462, %v474
  %v542 = vmul.f32 %v463, %v474
  %v543 = vmul.f32 %v464, %v474
  %v544 = vmul.f32 %v465, %v474
  %v545 = vmul.f32 %v466, %v474
  %v546 = vmul.f32 %v467, %v474
  %v547 = vmul.f32 %v468, %v474
  %v548 = vld [vmem:[%s5] sm:$0x1]
  %v550 = vlaneseq
  %v551 = vshrl.u32 %v550, 7
  %v552 = vsub.s32 0, %v551
  %v553 = vrot.slane %v548, %v552
  %v555 = vadd.f32 %v476, %v553
  %v556 = vadd.f32 %v477, %v553
  %v557 = vadd.f32 %v478, %v553
  %v558 = vadd.f32 %v479, %v553
  %v559 = vadd.f32 %v480, %v553
  %v560 = vadd.f32 %v481, %v553
  %v561 = vadd.f32 %v482, %v553
  %v562 = vadd.f32 %v483, %v553
  %v563 = vadd.f32 %v484, %v553
  %v564 = vadd.f32 %v485, %v553
  %v565 = vadd.f32 %v486, %v553
  %v566 = vadd.f32 %v487, %v553
  %v567 = vadd.f32 %v488, %v553
  %v568 = vadd.f32 %v489, %v553
  %v569 = vadd.f32 %v490, %v553
  %v570 = vadd.f32 %v491, %v553
  %v571 = vadd.f32 %v492, %v553
  %v572 = vadd.f32 %v493, %v553
  %v573 = vadd.f32 %v494, %v553
  %v574 = vadd.f32 %v495, %v553
  %v575 = vadd.f32 %v496, %v553
  %v576 = vadd.f32 %v497, %v553
  %v577 = vadd.f32 %v498, %v553
  %v578 = vadd.f32 %v499, %v553
  %v579 = vadd.f32 %v500, %v553
  %v580 = vadd.f32 %v501, %v553
  %v581 = vadd.f32 %v502, %v553
  %v582 = vadd.f32 %v503, %v553
  %v583 = vadd.f32 %v504, %v553
  %v584 = vadd.f32 %v505, %v553
  %v585 = vadd.f32 %v506, %v553
  %v586 = vadd.f32 %v507, %v553
  %v587 = vadd.f32 %v508, %v553
  %v588 = vadd.f32 %v509, %v553
  %v589 = vadd.f32 %v510, %v553
  %v590 = vadd.f32 %v511, %v553
  %v591 = vadd.f32 %v512, %v553
  %v592 = vadd.f32 %v513, %v553
  %v593 = vadd.f32 %v514, %v553
  %v594 = vadd.f32 %v515, %v553
  %v595 = vadd.f32 %v516, %v553
  %v596 = vadd.f32 %v517, %v553
  %v597 = vadd.f32 %v518, %v553
  %v598 = vadd.f32 %v519, %v553
  %v599 = vadd.f32 %v520, %v553
  %v600 = vadd.f32 %v521, %v553
  %v601 = vadd.f32 %v522, %v553
  %v602 = vadd.f32 %v523, %v553
  %v603 = vadd.f32 %v524, %v553
  %v604 = vadd.f32 %v525, %v553
  %v605 = vadd.f32 %v526, %v553
  %v606 = vadd.f32 %v527, %v553
  %v607 = vadd.f32 %v528, %v553
  %v608 = vadd.f32 %v529, %v553
  %v609 = vadd.f32 %v530, %v553
  %v610 = vadd.f32 %v531, %v553
  %v611 = vadd.f32 %v532, %v553
  %v612 = vadd.f32 %v533, %v553
  %v613 = vadd.f32 %v534, %v553
  %v614 = vadd.f32 %v535, %v553
  %v615 = vadd.f32 %v536, %v553
  %v616 = vadd.f32 %v537, %v553
  %v617 = vadd.f32 %v538, %v553
  %v618 = vadd.f32 %v539, %v553
  %v619 = vadd.f32 %v540, %v553
  %v620 = vadd.f32 %v541, %v553
  %v621 = vadd.f32 %v542, %v553
  %v622 = vadd.f32 %v543, %v553
  %v623 = vadd.f32 %v544, %v553
  %v624 = vadd.f32 %v545, %v553
  %v625 = vadd.f32 %v546, %v553
  %v626 = vadd.f32 %v547, %v553
  %v627 = vadd.f32 %v253, %v555
  %v628 = vadd.f32 %v254, %v556
  %v629 = vadd.f32 %v255, %v557
  %v630 = vadd.f32 %v256, %v558
  %v631 = vadd.f32 %v257, %v559
  %v632 = vadd.f32 %v258, %v560
  %v633 = vadd.f32 %v259, %v561
  %v634 = vadd.f32 %v260, %v562
  %v635 = vadd.f32 %v261, %v563
  %v636 = vadd.f32 %v262, %v564
  %v637 = vadd.f32 %v263, %v565
  %v638 = vadd.f32 %v264, %v566
  %v639 = vadd.f32 %v265, %v567
  %v640 = vadd.f32 %v266, %v568
  %v641 = vadd.f32 %v267, %v569
  %v642 = vadd.f32 %v268, %v570
  %v643 = vadd.f32 %v269, %v571
  %v644 = vadd.f32 %v270, %v572
  %v645 = vadd.f32 %v271, %v573
  %v646 = vadd.f32 %v272, %v574
  %v647 = vadd.f32 %v273, %v575
  %v648 = vadd.f32 %v274, %v576
  %v649 = vadd.f32 %v275, %v577
  %v650 = vadd.f32 %v276, %v578
  %v651 = vadd.f32 %v277, %v579
  %v652 = vadd.f32 %v278, %v580
  %v653 = vadd.f32 %v279, %v581
  %v654 = vadd.f32 %v280, %v582
  %v655 = vadd.f32 %v281, %v583
  %v656 = vadd.f32 %v282, %v584
  %v657 = vadd.f32 %v283, %v585
  %v658 = vadd.f32 %v284, %v586
  %v659 = vadd.f32 %v285, %v587
  %v660 = vadd.f32 %v286, %v588
  %v661 = vadd.f32 %v287, %v589
  %v662 = vadd.f32 %v288, %v590
  %v663 = vadd.f32 %v289, %v591
  %v664 = vadd.f32 %v290, %v592
  %v665 = vadd.f32 %v291, %v593
  %v666 = vadd.f32 %v292, %v594
  %v667 = vadd.f32 %v293, %v595
  %v668 = vadd.f32 %v294, %v596
  %v669 = vadd.f32 %v295, %v597
  %v670 = vadd.f32 %v296, %v598
  %v671 = vadd.f32 %v297, %v599
  %v672 = vadd.f32 %v298, %v600
  %v673 = vadd.f32 %v299, %v601
  %v674 = vadd.f32 %v300, %v602
  %v675 = vadd.f32 %v301, %v603
  %v676 = vadd.f32 %v302, %v604
  %v677 = vadd.f32 %v303, %v605
  %v678 = vadd.f32 %v304, %v606
  %v679 = vadd.f32 %v305, %v607
  %v680 = vadd.f32 %v306, %v608
  %v681 = vadd.f32 %v307, %v609
  %v682 = vadd.f32 %v308, %v610
  %v683 = vadd.f32 %v309, %v611
  %v684 = vadd.f32 %v310, %v612
  %v685 = vadd.f32 %v311, %v613
  %v686 = vadd.f32 %v312, %v614
  %v687 = vadd.f32 %v313, %v615
  %v688 = vadd.f32 %v314, %v616
  %v689 = vadd.f32 %v315, %v617
  %v690 = vadd.f32 %v316, %v618
  %v691 = vadd.f32 %v317, %v619
  %v692 = vadd.f32 %v318, %v620
  %v693 = vadd.f32 %v319, %v621
  %v694 = vadd.f32 %v320, %v622
  %v695 = vadd.f32 %v321, %v623
  %v696 = vadd.f32 %v322, %v624
  %v697 = vadd.f32 %v323, %v625
  %v698 = vadd.f32 %v324, %v626
  %v699 = vmax.f32 %v627, 0.0
  %v700 = vmax.f32 %v628, 0.0
  %v701 = vmax.f32 %v629, 0.0
  %v702 = vmax.f32 %v630, 0.0
  %v703 = vmax.f32 %v631, 0.0
  %v704 = vmax.f32 %v632, 0.0
  %v705 = vmax.f32 %v633, 0.0
  %v706 = vmax.f32 %v634, 0.0
  %v707 = vmax.f32 %v635, 0.0
  %v708 = vmax.f32 %v636, 0.0
  %v709 = vmax.f32 %v637, 0.0
  %v710 = vmax.f32 %v638, 0.0
  %v711 = vmax.f32 %v639, 0.0
  %v712 = vmax.f32 %v640, 0.0
  %v713 = vmax.f32 %v641, 0.0
  %v714 = vmax.f32 %v642, 0.0
  %v715 = vmax.f32 %v643, 0.0
  %v716 = vmax.f32 %v644, 0.0
  %v717 = vmax.f32 %v645, 0.0
  %v718 = vmax.f32 %v646, 0.0
  %v719 = vmax.f32 %v647, 0.0
  %v720 = vmax.f32 %v648, 0.0
  %v721 = vmax.f32 %v649, 0.0
  %v722 = vmax.f32 %v650, 0.0
  %v723 = vmax.f32 %v651, 0.0
  %v724 = vmax.f32 %v652, 0.0
  %v725 = vmax.f32 %v653, 0.0
  %v726 = vmax.f32 %v654, 0.0
  %v727 = vmax.f32 %v655, 0.0
  %v728 = vmax.f32 %v656, 0.0
  %v729 = vmax.f32 %v657, 0.0
  %v730 = vmax.f32 %v658, 0.0
  %v731 = vmax.f32 %v659, 0.0
  %v732 = vmax.f32 %v660, 0.0
  %v733 = vmax.f32 %v661, 0.0
  %v734 = vmax.f32 %v662, 0.0
  %v735 = vmax.f32 %v663, 0.0
  %v736 = vmax.f32 %v664, 0.0
  %v737 = vmax.f32 %v665, 0.0
  %v738 = vmax.f32 %v666, 0.0
  %v739 = vmax.f32 %v667, 0.0
  %v740 = vmax.f32 %v668, 0.0
  %v741 = vmax.f32 %v669, 0.0
  %v742 = vmax.f32 %v670, 0.0
  %v743 = vmax.f32 %v671, 0.0
  %v744 = vmax.f32 %v672, 0.0
  %v745 = vmax.f32 %v673, 0.0
  %v746 = vmax.f32 %v674, 0.0
  %v747 = vmax.f32 %v675, 0.0
  %v748 = vmax.f32 %v676, 0.0
  %v749 = vmax.f32 %v677, 0.0
  %v750 = vmax.f32 %v678, 0.0
  %v751 = vmax.f32 %v679, 0.0
  %v752 = vmax.f32 %v680, 0.0
  %v753 = vmax.f32 %v681, 0.0
  %v754 = vmax.f32 %v682, 0.0
  %v755 = vmax.f32 %v683, 0.0
  %v756 = vmax.f32 %v684, 0.0
  %v757 = vmax.f32 %v685, 0.0
  %v758 = vmax.f32 %v686, 0.0
  %v759 = vmax.f32 %v687, 0.0
  %v760 = vmax.f32 %v688, 0.0
  %v761 = vmax.f32 %v689, 0.0
  %v762 = vmax.f32 %v690, 0.0
  %v763 = vmax.f32 %v691, 0.0
  %v764 = vmax.f32 %v692, 0.0
  %v765 = vmax.f32 %v693, 0.0
  %v766 = vmax.f32 %v694, 0.0
  %v767 = vmax.f32 %v695, 0.0
  %v768 = vmax.f32 %v696, 0.0
  %v769 = vmax.f32 %v697, 0.0
  %v770 = vmax.f32 %v698, 0.0
  %771 = vst [vmem:[%s6] sm:$0xff] %v699
  %772 = vst [vmem:[%s6 + $0x8] sm:$0xff] %v700
  %773 = vst [vmem:[%s6 + $0x10] sm:$0xff] %v701
  %774 = vst [vmem:[%s6 + $0x18] sm:$0xff] %v702
  %775 = vst [vmem:[%s6 + $0x20] sm:$0xff] %v703
  %776 = vst [vmem:[%s6 + $0x28] sm:$0xff] %v704
  %777 = vst [vmem:[%s6 + $0x30] sm:$0xff] %v705
  %778 = vst [vmem:[%s6 + $0x38] sm:$0xff] %v706
  %779 = vst [vmem:[%s6 + $0x40] sm:$0xff] %v707
  %780 = vst [vmem:[%s6 + $0x48] sm:$0xff] %v708
  %781 = vst [vmem:[%s6 + $0x50] sm:$0xff] %v709
  %782 = vst [vmem:[%s6 + $0x58] sm:$0xff] %v710
  %783 = vst [vmem:[%s6 + $0x60] sm:$0xff] %v711
  %784 = vst [vmem:[%s6 + $0x68] sm:$0xff] %v712
  %785 = vst [vmem:[%s6 + $0x70] sm:$0xff] %v713
  %786 = vst [vmem:[%s6 + $0x78] sm:$0xff] %v714
  %787 = vst [vmem:[%s6 + $0x80] sm:$0xff] %v715
  %788 = vst [vmem:[%s6 + $0x88] sm:$0xff] %v716
  %789 = vst [vmem:[%s6 + $0x90] sm:$0xff] %v717
  %790 = vst [vmem:[%s6 + $0x98] sm:$0xff] %v718
  %791 = vst [vmem:[%s6 + $0xa0] sm:$0xff] %v719
  %792 = vst [vmem:[%s6 + $0xa8] sm:$0xff] %v720
  %793 = vst [vmem:[%s6 + $0xb0] sm:$0xff] %v721
  %794 = vst [vmem:[%s6 + $0xb8] sm:$0xff] %v722
  %795 = vst [vmem:[%s6 + $0xc0] sm:$0xff] %v723
  %796 = vst [vmem:[%s6 + $0xc8] sm:$0xff] %v724
  %797 = vst [vmem:[%s6 + $0xd0] sm:$0xff] %v725
  %798 = vst [vmem:[%s6 + $0xd8] sm:$0xff] %v726
  %799 = vst [vmem:[%s6 + $0xe0] sm:$0xff] %v727
  %800 = vst [vmem:[%s6 + $0xe8] sm:$0xff] %v728
  %801 = vst [vmem:[%s6 + $0xf0] sm:$0xff] %v729
  %802 = vst [vmem:[%s6 + $0xf8] sm:$0xff] %v730
  %803 = vst [vmem:[%s6 + $0x100] sm:$0xff] %v731
  %804 = vst [vmem:[%s6 + $0x108] sm:$0xff] %v732
  %805 = vst [vmem:[%s6 + $0x110] sm:$0xff] %v733
  %806 = vst [vmem:[%s6 + $0x118] sm:$0xff] %v734
  %807 = vst [vmem:[%s6 + $0x120] sm:$0xff] %v735
  %808 = vst [vmem:[%s6 + $0x128] sm:$0xff] %v736
  %809 = vst [vmem:[%s6 + $0x130] sm:$0xff] %v737
  %810 = vst [vmem:[%s6 + $0x138] sm:$0xff] %v738
  %811 = vst [vmem:[%s6 + $0x140] sm:$0xff] %v739
  %812 = vst [vmem:[%s6 + $0x148] sm:$0xff] %v740
  %813 = vst [vmem:[%s6 + $0x150] sm:$0xff] %v741
  %814 = vst [vmem:[%s6 + $0x158] sm:$0xff] %v742
  %815 = vst [vmem:[%s6 + $0x160] sm:$0xff] %v743
  %816 = vst [vmem:[%s6 + $0x168] sm:$0xff] %v744
  %817 = vst [vmem:[%s6 + $0x170] sm:$0xff] %v745
  %818 = vst [vmem:[%s6 + $0x178] sm:$0xff] %v746
  %819 = vst [vmem:[%s6 + $0x180] sm:$0xff] %v747
  %820 = vst [vmem:[%s6 + $0x188] sm:$0xff] %v748
  %821 = vst [vmem:[%s6 + $0x190] sm:$0xff] %v749
  %822 = vst [vmem:[%s6 + $0x198] sm:$0xff] %v750
  %823 = vst [vmem:[%s6 + $0x1a0] sm:$0xff] %v751
  %824 = vst [vmem:[%s6 + $0x1a8] sm:$0xff] %v752
  %825 = vst [vmem:[%s6 + $0x1b0] sm:$0xff] %v753
  %826 = vst [vmem:[%s6 + $0x1b8] sm:$0xff] %v754
  %827 = vst [vmem:[%s6 + $0x1c0] sm:$0xff] %v755
  %828 = vst [vmem:[%s6 + $0x1c8] sm:$0xff] %v756
  %829 = vst [vmem:[%s6 + $0x1d0] sm:$0xff] %v757
  %830 = vst [vmem:[%s6 + $0x1d8] sm:$0xff] %v758
  %831 = vst [vmem:[%s6 + $0x1e0] sm:$0xff] %v759
  %832 = vst [vmem:[%s6 + $0x1e8] sm:$0xff] %v760
  %833 = vst [vmem:[%s6 + $0x1f0] sm:$0xff] %v761
  %834 = vst [vmem:[%s6 + $0x1f8] sm:$0xff] %v762
  %835 = vst [vmem:[%s6 + $0x200] sm:$0xff] %v763
  %836 = vst [vmem:[%s6 + $0x208] sm:$0xff] %v764
  %837 = vst [vmem:[%s6 + $0x210] sm:$0xff] %v765
  %838 = vst [vmem:[%s6 + $0x218] sm:$0xff] %v766
  %839 = vst [vmem:[%s6 + $0x220] sm:$0xff] %v767
  %840 = vst [vmem:[%s6 + $0x228] sm:$0xff] %v768
  %841 = vst [vmem:[%s6 + $0x230] sm:$0xff] %v769
  %842 = vst [vmem:[%s6 + $0x238] sm:$0xff] %v770
  // Predicated region
  $region26: #{basic_block_forward.9} parent=0 // pred_check
    _
  $region27: #{basic_block_forward.9} parent=0 // pred_check_branch
    %844 = sbr.rel (0) target = $region29
  $region28: #{basic_block_forward.9} parent=0 // pred_region
    _
  $region29: #{basic_block_forward.9} parent=0 // pred_fallthru
    _
  // Predicated region
  $region30: #{basic_block_forward.9} parent=0 // pred_check
    _
  $region31: #{basic_block_forward.9} parent=0 // pred_check_branch
    %846 = sbr.rel (0) target = $region33
  $region32: #{basic_block_forward.9} parent=0 // pred_region
    _
  $region33: #{basic_block_forward.9} parent=0 // pred_fallthru
    _

</llo_original>
